<compile_context>
chip_gen: v7x
topology: tpu7x:2x2x1
jax: 0.10.0
libtpu: 0.0.40
codegen_flags: <defaults>
</compile_context>

<pallas_src>
import jax
import jax.numpy as jnp
from jax import lax
from jax.experimental import pallas as pl
from jax.experimental.pallas import tpu as pltpu

BN_EPS = 1e-5


def _transpose_via_mxu(y, cout):
    """(R, Cout) f32 -> (Cout, R) using an identity NT-matmul (keeps the store
    lane-dense without relying on a standalone vector transpose/reshape)."""
    rows = lax.broadcasted_iota(jnp.int32, (cout, cout), 0)
    cols = lax.broadcasted_iota(jnp.int32, (cout, cout), 1)
    eye = (rows == cols).astype(jnp.float32)
    # out[c, r] = sum_k eye[c, k] * y[r, k]  (A @ B.T pattern, MXU-native)
    return lax.dot_general(eye, y, (((1,), (1,)), ((), ())),
                           preferred_element_type=jnp.float32)


def _make_deconv2x2_kernel(n_imgs, H, W, Cin, Cout):
    """ConvTranspose2d(k=4,s=2,p=1) + BatchNorm2d(train) + ReLU, one image/step."""
    HW = H * W
    inv_count = 1.0 / float(n_imgs * 4 * HW)        # Ho*Wo = 4*H*W per image

    def kernel(x_ref, w_ref, g_ref, b_ref, o_ref, sum_sc, ssq_sc):
        p = pl.program_id(0)        # 0: accumulate BN stats, 1: normalize+store
        n = pl.program_id(1)        # image index

        @pl.when(jnp.logical_and(p == 0, n == 0))
        def _init():
            sum_sc[...] = jnp.zeros_like(sum_sc)
            ssq_sc[...] = jnp.zeros_like(ssq_sc)

        xi = x_ref[0]               # (H+2, W+2, Cin): pad=1 original input

        # Sub-pixel decomposition: output parity (py, px) is a stride-1 2x2
        # conv; the 2x2 taps are folded into the contraction dim (im2col).
        acc = []
        for py in range(2):
            for px in range(2):
                cols = []
                for dy in range(2):
                    for dx in range(2):
                        cols.append(
                            xi[py + dy:py + dy + H, px + dx:px + dx + W, :]
                            .reshape(HW, Cin))
                patch = jnp.concatenate(cols, axis=1)            # (HW, 4*Cin)
                acc.append(jnp.dot(patch, w_ref[2 * py + px],
                                   preferred_element_type=jnp.float32))

        @pl.when(p == 0)
        def _stats():
            s = jnp.zeros((1, Cout), jnp.float32)
            q = jnp.zeros((1, Cout), jnp.float32)
            for a in acc:
                s = s + jnp.sum(a, axis=0, keepdims=True)
                q = q + jnp.sum(a * a, axis=0, keepdims=True)
            sum_sc[...] += s
            ssq_sc[...] += q

        @pl.when(p == 1)
        def _finalize():
            mean = sum_sc[...] * inv_count                       # (1, Cout)
            var = ssq_sc[...] * inv_count - mean * mean
            inv = lax.rsqrt(var + BN_EPS)
            scale = g_ref[...].astype(jnp.float32) * inv
            shift = b_ref[...].astype(jnp.float32) - mean * scale
            outs = []
            for a in acc:
                y = jnp.maximum(a * scale + shift, 0.0)          # (HW, Cout)
                outs.append(_transpose_via_mxu(y, Cout))         # (Cout, HW)
            # phase-major, channels-major, lane-dense (HW lanes) store.
            o_ref[0] = jnp.concatenate(outs, axis=0).astype(o_ref.dtype)

    return kernel


def _make_conv_bn_relu_kernel(n_imgs, KH, KW, Ho, Wo, Cin, Cout):
    """Stride-1 KHxKW conv (pre-padded input) + BatchNorm2d(train) + ReLU."""
    R = Ho * Wo
    inv_count = 1.0 / float(n_imgs * R)

    def kernel(x_ref, w_ref, g_ref, b_ref, o_ref, sum_sc, ssq_sc):
        p = pl.program_id(0)
        n = pl.program_id(1)

        @pl.when(jnp.logical_and(p == 0, n == 0))
        def _init():
            sum_sc[...] = jnp.zeros_like(sum_sc)
            ssq_sc[...] = jnp.zeros_like(ssq_sc)

        xi = x_ref[0]                                   # (Hp, Wp, Cin)
        # im2col: fold KH*KW taps into one MXU contraction of size KH*KW*Cin.
        # (For odd Wo this reshape is a relayout; all exercised paths have
        #  Wo a multiple of 8 so it is layout-preserving.)
        cols = []
        for kh in range(KH):
            for kw in range(KW):
                cols.append(xi[kh:kh + Ho, kw:kw + Wo, :].reshape(R, Cin))
        patch = jnp.concatenate(cols, axis=1)           # (R, KH*KW*Cin)
        acc = jnp.dot(patch, w_ref[...],
                      preferred_element_type=jnp.float32)        # (R, Cout)

        @pl.when(p == 0)
        def _stats():
            sum_sc[...] += jnp.sum(acc, axis=0, keepdims=True)
            ssq_sc[...] += jnp.sum(acc * acc, axis=0, keepdims=True)

        @pl.when(p == 1)
        def _finalize():
            mean = sum_sc[...] * inv_count
            var = ssq_sc[...] * inv_count - mean * mean
            inv = lax.rsqrt(var + BN_EPS)
            scale = g_ref[...].astype(jnp.float32) * inv
            shift = b_ref[...].astype(jnp.float32) - mean * scale
            y = jnp.maximum(acc * scale + shift, 0.0)            # (R, Cout)
            o_ref[0] = _transpose_via_mxu(y, Cout).astype(o_ref.dtype)

    return kernel


def _run_deconv2x_bn_relu(xp, w_ph, gamma, beta):
    """xp: (N, H+2, W+2, Cin) pad=1 NHWC input (NOT stride-dilated).
    Returns phase-separated, channels-major (N, 4*Cout, H*W)."""
    N, Hp, Wp, Cin = xp.shape
    H, W = Hp - 2, Wp - 2
    Cout = w_ph.shape[-1]
    itemsize = jnp.dtype(xp.dtype).itemsize
    cost = pl.CostEstimate(
        flops=2 * 2 * N * (4 * H * W) * (4 * Cin) * Cout,
        transcendentals=0,
        bytes_accessed=(2 * xp.size * itemsize
                        + w_ph.size * jnp.dtype(w_ph.dtype).itemsize
                        + N * 4 * H * W * Cout * itemsize),
    )
    return pl.pallas_call(
        _make_deconv2x2_kernel(N, H, W, Cin, Cout),
        out_shape=jax.ShapeDtypeStruct((N, 4 * Cout, H * W), xp.dtype),
        grid_spec=pltpu.PrefetchScalarGridSpec(
            num_scalar_prefetch=0,
            grid=(2, N),                                # (pass, image)
            in_specs=[
                pl.BlockSpec((1, Hp, Wp, Cin), lambda p, n: (n, 0, 0, 0)),
                pl.BlockSpec((4, 4 * Cin, Cout), lambda p, n: (0, 0, 0)),
                pl.BlockSpec((1, Cout), lambda p, n: (0, 0)),
                pl.BlockSpec((1, Cout), lambda p, n: (0, 0)),
            ],
            # Stats pass parks on block 0 (no writeback); normalize pass streams
            # one lane-dense output block per image.
            out_specs=pl.BlockSpec((1, 4 * Cout, H * W),
                                   lambda p, n: (p * n, 0, 0)),
            scratch_shapes=[pltpu.VMEM((1, Cout), jnp.float32),
                            pltpu.VMEM((1, Cout), jnp.float32)],
        ),
        compiler_params=pltpu.CompilerParams(
            dimension_semantics=("arbitrary", "arbitrary")),
        cost_estimate=cost,
    )(xp, w_ph, gamma.reshape(1, Cout), beta.reshape(1, Cout))


def _run_conv_bn_relu(xp, w2d, ksize, gamma, beta, out_hw):
    """xp: (N, Hp, Wp, Cin) pre-padded NHWC input; w2d: (KH*KW*Cin, Cout).
    Returns channels-major (N, Cout, Ho*Wo)."""
    N, Hp, Wp, Cin = xp.shape
    KH, KW = ksize
    Cout = w2d.shape[-1]
    Ho, Wo = out_hw
    itemsize = jnp.dtype(xp.dtype).itemsize
    cost = pl.CostEstimate(
        flops=2 * 2 * N * Ho * Wo * KH * KW * Cin * Cout,
        transcendentals=0,
        bytes_accessed=(2 * xp.size * itemsize
                        + w2d.size * jnp.dtype(w2d.dtype).itemsize
                        + N * Ho * Wo * Cout * itemsize),
    )
    return pl.pallas_call(
        _make_conv_bn_relu_kernel(N, KH, KW, Ho, Wo, Cin, Cout),
        out_shape=jax.ShapeDtypeStruct((N, Cout, Ho * Wo), xp.dtype),
        grid_spec=pltpu.PrefetchScalarGridSpec(
            num_scalar_prefetch=0,
            grid=(2, N),
            in_specs=[
                pl.BlockSpec((1, Hp, Wp, Cin), lambda p, n: (n, 0, 0, 0)),
                pl.BlockSpec((KH * KW * Cin, Cout), lambda p, n: (0, 0)),
                pl.BlockSpec((1, Cout), lambda p, n: (0, 0)),
                pl.BlockSpec((1, Cout), lambda p, n: (0, 0)),
            ],
            out_specs=pl.BlockSpec((1, Cout, Ho * Wo),
                                   lambda p, n: (p * n, 0, 0)),
            scratch_shapes=[pltpu.VMEM((1, Cout), jnp.float32),
                            pltpu.VMEM((1, Cout), jnp.float32)],
        ),
        compiler_params=pltpu.CompilerParams(
            dimension_semantics=("arbitrary", "arbitrary")),
        cost_estimate=cost,
    )(xp, w2d, gamma.reshape(1, Cout), beta.reshape(1, Cout))


def _flip_transpose_deconv_weight(w):
    """ConvTranspose2d weight (Cin, Cout, 4, 4) -> flipped HWIO (4, 4, Cin, Cout)."""
    return jnp.transpose(w[:, :, ::-1, ::-1], (2, 3, 0, 1))


def _subpixel_phase_weights(w):
    """(Cin, Cout, 4, 4) -> (4, 2*2*Cin, Cout).  Phase ph = 2*py + px gets taps
    wf[py::2, px::2] laid out (dy, dx, ci), matching the kernel's im2col order."""
    wf = _flip_transpose_deconv_weight(w)                 # (4, 4, Cin, Cout)
    Cin, Cout = w.shape[0], w.shape[1]
    phases = []
    for py in range(2):
        for px in range(2):
            phases.append(wf[py::2, px::2].reshape(4 * Cin, Cout))
    return jnp.stack(phases, axis=0)


def init_gblock_params(key, in_channels, out_channels, hidden_channels=False,
                       upsample=False):
    """Deterministic synthetic parameters matching the PyTorch module's shapes."""
    del upsample  # weight shapes are identical for both conv1 variants
    k1, k2 = jax.random.split(key)
    params = {
        # ConvTranspose2d weight: (in_channels, out_channels, 4, 4), bias=False
        "conv1_w": jax.random.normal(k1, (in_channels, out_channels, 4, 4),
                                     jnp.float32)
        * (1.0 / (in_channels * 16) ** 0.5),
        "bn1_gamma": jnp.ones((out_channels,), jnp.float32),
        "bn1_beta": jnp.zeros((out_channels,), jnp.float32),
    }
    if hidden_channels:
        # Conv2d weight: (out_channels, out_channels, 3, 3), bias=False
        params["conv2_w"] = jax.random.normal(
            k2, (out_channels, out_channels, 3, 3), jnp.float32
        ) * (1.0 / (out_channels * 9) ** 0.5)
        params["bn2_gamma"] = jnp.ones((out_channels,), jnp.float32)
        params["bn2_beta"] = jnp.zeros((out_channels,), jnp.float32)
    return params


def gblock_forward(params, x, *, hidden_channels=False, upsample=False):
    """x: NCHW float32 -> NCHW float32, matching GBlock.forward (training BN).

    NOTE: when chaining GBlocks, hoist the NCHW<->NHWC glue to the model
    boundary and keep activations channels-last between blocks.
    """
    N, Cin, H, W = x.shape
    Cout = params["conv1_w"].shape[1]
    x_nhwc = jnp.transpose(x, (0, 2, 3, 1))

    if upsample:
        Ho, Wo = 2 * H, 2 * W
        xp = jnp.pad(x_nhwc, ((0, 0), (1, 1), (1, 1), (0, 0)))
        w_ph = _subpixel_phase_weights(params["conv1_w"])
        raw = _run_deconv2x_bn_relu(xp, w_ph,
                                    params["bn1_gamma"], params["bn1_beta"])
        # (N, 4*Cout, H*W): phase-separated, channels-major.  One XLA transpose
        # interleaves the 2x2 phases back into the spatial layout.
        raw6 = raw.reshape(N, 2, 2, Cout, H, W)           # (n, py, px, c, m, w)
        if hidden_channels:
            h = jnp.transpose(raw6, (0, 4, 1, 5, 2, 3)).reshape(N, Ho, Wo, Cout)
        else:
            return jnp.transpose(raw6, (0, 3, 4, 1, 5, 2)).reshape(
                N, Cout, Ho, Wo)
    else:
        # ConvTranspose2d(k=4, s=1, p=0) == full conv: pad 3 + flipped kernel.
        Ho, Wo = H + 3, W + 3
        xp = jnp.pad(x_nhwc, ((0, 0), (3, 3), (3, 3), (0, 0)))
        w1 = _flip_transpose_deconv_weight(params["conv1_w"]).reshape(
            16 * Cin, Cout)
        raw = _run_conv_bn_relu(xp, w1, (4, 4),
                                params["bn1_gamma"], params["bn1_beta"],
                                (Ho, Wo))
        if hidden_channels:
            h = jnp.transpose(raw.reshape(N, Cout, Ho, Wo), (0, 2, 3, 1))
        else:
            return raw.reshape(N, Cout, Ho, Wo)

    # identity branch: Conv2d(3x3, pad=1) -> BN -> ReLU
    # TODO(synk): fuse this branch into the first kernel (keep h in VMEM) to
    #             drop the intermediate HBM round trip and the wrapper-side pad.
    hp = jnp.pad(h, ((0, 0), (1, 1), (1, 1), (0, 0)))
    w2 = jnp.transpose(params["conv2_w"], (2, 3, 1, 0)).reshape(9 * Cout, Cout)
    out = _run_conv_bn_relu(hp, w2, (3, 3),
                            params["bn2_gamma"], params["bn2_beta"], (Ho, Wo))
    return out.reshape(N, Cout, Ho, Wo)


def _reference(params, x, hidden_channels, upsample):
    """Pure-JAX reference of the same forward pass (correctness check)."""
    K = 4
    stride, pad = (2, 1) if upsample else (1, 0)
    edge = K - 1 - pad
    x_nhwc = jnp.transpose(x, (0, 2, 3, 1))
    w1 = jnp.transpose(params["conv1_w"][:, :, ::-1, ::-1], (2, 3, 0, 1))
    y = lax.conv_general_dilated(
        x_nhwc, w1, (1, 1), [(edge, edge), (edge, edge)],
        lhs_dilation=(stride, stride),
        dimension_numbers=("NHWC", "HWIO", "NHWC"),
    )

    def bn_relu(y, g, b):
        m = jnp.mean(y, axis=(0, 1, 2), keepdims=True)
        v = jnp.mean((y - m) ** 2, axis=(0, 1, 2), keepdims=True)
        return jnp.maximum((y - m) * lax.rsqrt(v + BN_EPS) * g + b, 0.0)

    h = bn_relu(y, params["bn1_gamma"], params["bn1_beta"])
    if hidden_channels:
        w2 = jnp.transpose(params["conv2_w"], (2, 3, 1, 0))
        y2 = lax.conv_general_dilated(
            h, w2, (1, 1), [(1, 1), (1, 1)],
            dimension_numbers=("NHWC", "HWIO", "NHWC"),
        )
        h = bn_relu(y2, params["bn2_gamma"], params["bn2_beta"])
    return jnp.transpose(h, (0, 3, 1, 2))


if __name__ == "__main__":
    key = jax.random.PRNGKey(0)
    kx, kp = jax.random.split(key)

    in_channels, out_channels = 4, 8
    x = jax.random.normal(kx, (2, in_channels, 16, 16), jnp.float32)
    params = init_gblock_params(kp, in_channels, out_channels,
                                hidden_channels=True, upsample=True)

    # Full GBlock path: upsample (ConvTranspose k4/s2/p1) + hidden identity branch.
    out = gblock_forward(params, x, hidden_channels=True, upsample=True)
    out = jax.block_until_ready(out)
    assert out.shape == (2, out_channels, 32, 32), out.shape
    ref = jax.block_until_ready(_reference(params, x, True, True))
    assert jnp.allclose(out, ref, atol=1e-4, rtol=1e-4), \
        float(jnp.max(jnp.abs(out - ref)))

    # Upsample path without the hidden branch (exercises NCHW re-assembly).
    out2 = gblock_forward(params, x, hidden_channels=False, upsample=True)
    out2 = jax.block_until_ready(out2)
    assert out2.shape == (2, out_channels, 32, 32), out2.shape
    ref2 = jax.block_until_ready(_reference(params, x, False, True))
    assert jnp.allclose(out2, ref2, atol=1e-4, rtol=1e-4), \
        float(jnp.max(jnp.abs(out2 - ref2)))

    print("KERNEL_OK")
</pallas_src>

<mosaic_0001>
module attributes {stable_mosaic.version = 11 : i64} {
  func.func @kernel(%arg0: i32, %arg1: i32, %arg2: memref<1x18x18x4xf32, #tpu.memory_space<vmem>>, %arg3: memref<4x16x8xf32, #tpu.memory_space<vmem>>, %arg4: memref<1x8xf32, #tpu.memory_space<vmem>>, %arg5: memref<1x8xf32, #tpu.memory_space<vmem>>, %arg6: memref<1x32x256xf32, #tpu.memory_space<vmem>>, %arg7: memref<1x8xf32, #tpu.memory_space<vmem>>, %arg8: memref<1x8xf32, #tpu.memory_space<vmem>>) attributes {dimension_semantics = [#tpu.dimension_semantics<arbitrary>, #tpu.dimension_semantics<arbitrary>], iteration_bounds = array<i64: 2, 2>, scalar_prefetch = 0 : i64, scratch_operands = 2 : i64, tpu.core_type = #tpu.core_type<tc>, window_params = [{transform_indices = @transform_0, window_bounds = array<i64: 1, 18, 18, 4>}, {pipeline_mode = #tpu.pipeline_mode<synchronous>, transform_indices = @transform_1, window_bounds = array<i64: 4, 16, 8>}, {pipeline_mode = #tpu.pipeline_mode<synchronous>, transform_indices = @transform_2, window_bounds = array<i64: 1, 8>}, {pipeline_mode = #tpu.pipeline_mode<synchronous>, transform_indices = @transform_3, window_bounds = array<i64: 1, 8>}, {transform_indices = @transform_4, window_bounds = array<i64: 1, 32, 256>}]} {
    %c0_i32 = arith.constant 0 : i32
    %0 = arith.cmpi eq, %arg0, %c0_i32 : i32
    %c0_i32_0 = arith.constant 0 : i32
    %1 = arith.cmpi eq, %arg1, %c0_i32_0 : i32
    %2 = arith.andi %0, %1 : i1
    %3 = arith.extui %2 : i1 to i32
    %c0_i32_1 = arith.constant 0 : i32
    %4 = arith.cmpi ne, %3, %c0_i32_1 : i32
    scf.if %4 {
      %cst_20 = arith.constant 0.000000e+00 : f32
      %61 = vector.broadcast %cst_20 : f32 to vector<1x8xf32>
      %c0_21 = arith.constant 0 : index
      %c0_22 = arith.constant 0 : index
      %62 = vector.load %arg7[%c0_21, %c0_22] : memref<1x8xf32, #tpu.memory_space<vmem>>, vector<1x8xf32>
      tpu.vector_store %arg7[%c0_21, %c0_22], %61 {strides = array<i32>} : memref<1x8xf32, #tpu.memory_space<vmem>>, vector<1x8xf32>,
      %cst_23 = arith.constant 0.000000e+00 : f32
      %63 = vector.broadcast %cst_23 : f32 to vector<1x8xf32>
      %c0_24 = arith.constant 0 : index
      %c0_25 = arith.constant 0 : index
      %64 = vector.load %arg8[%c0_24, %c0_25] : memref<1x8xf32, #tpu.memory_space<vmem>>, vector<1x8xf32>
      tpu.vector_store %arg8[%c0_24, %c0_25], %63 {strides = array<i32>} : memref<1x8xf32, #tpu.memory_space<vmem>>, vector<1x8xf32>,
    } else {
    }
    %c0 = arith.constant 0 : index
    %c0_2 = arith.constant 0 : index
    %c0_3 = arith.constant 0 : index
    %c0_4 = arith.constant 0 : index
    %5 = vector.load %arg2[%c0, %c0_2, %c0_3, %c0_4] : memref<1x18x18x4xf32, #tpu.memory_space<vmem>>, vector<1x18x18x4xf32>
    %6 = vector.shape_cast %5 : vector<1x18x18x4xf32> to vector<18x18x4xf32>
    %7 = vector.extract_strided_slice %6 {offsets = [0, 0, 0], sizes = [16, 16, 4], strides = [1, 1, 1]} : vector<18x18x4xf32> to vector<16x16x4xf32>
    %8 = vector.shape_cast %7 : vector<16x16x4xf32> to vector<256x4xf32>
    %9 = vector.extract_strided_slice %6 {offsets = [0, 1, 0], sizes = [16, 16, 4], strides = [1, 1, 1]} : vector<18x18x4xf32> to vector<16x16x4xf32>
    %10 = vector.shape_cast %9 : vector<16x16x4xf32> to vector<256x4xf32>
    %11 = vector.extract_strided_slice %6 {offsets = [1, 0, 0], sizes = [16, 16, 4], strides = [1, 1, 1]} : vector<18x18x4xf32> to vector<16x16x4xf32>
    %12 = vector.shape_cast %11 : vector<16x16x4xf32> to vector<256x4xf32>
    %13 = vector.extract_strided_slice %6 {offsets = [1, 1, 0], sizes = [16, 16, 4], strides = [1, 1, 1]} : vector<18x18x4xf32> to vector<16x16x4xf32>
    %14 = vector.shape_cast %13 : vector<16x16x4xf32> to vector<256x4xf32>
    %15 = tpu.concatenate %8, %10, %12, %14 in 1 : vector<256x4xf32>, vector<256x4xf32>, vector<256x4xf32>, vector<256x4xf32> -> vector<256x16xf32>
    %c0_5 = arith.constant 0 : index
    %c0_6 = arith.constant 0 : index
    %c0_7 = arith.constant 0 : index
    %16 = vector.load %arg3[%c0_5, %c0_6, %c0_7] : memref<4x16x8xf32, #tpu.memory_space<vmem>>, vector<1x16x8xf32>
    %17 = vector.shape_cast %16 : vector<1x16x8xf32> to vector<16x8xf32>
    %cst = arith.constant dense<0.000000e+00> : vector<256x8xf32>
    %18 = tpu.matmul %15, %17, %cst {dimension_numbers = #tpu.dot_dimension_numbers<[1], [0], [0], [1], [0, 0, 1, 1], [], []>} : vector<256x16xf32>, vector<16x8xf32>, vector<256x8xf32> -> vector<256x8xf32>
    %19 = vector.extract_strided_slice %6 {offsets = [0, 1, 0], sizes = [16, 16, 4], strides = [1, 1, 1]} : vector<18x18x4xf32> to vector<16x16x4xf32>
    %20 = vector.shape_cast %19 : vector<16x16x4xf32> to vector<256x4xf32>
    %21 = vector.extract_strided_slice %6 {offsets = [0, 2, 0], sizes = [16, 16, 4], strides = [1, 1, 1]} : vector<18x18x4xf32> to vector<16x16x4xf32>
    %22 = vector.shape_cast %21 : vector<16x16x4xf32> to vector<256x4xf32>
    %23 = vector.extract_strided_slice %6 {offsets = [1, 1, 0], sizes = [16, 16, 4], strides = [1, 1, 1]} : vector<18x18x4xf32> to vector<16x16x4xf32>
    %24 = vector.shape_cast %23 : vector<16x16x4xf32> to vector<256x4xf32>
    %25 = vector.extract_strided_slice %6 {offsets = [1, 2, 0], sizes = [16, 16, 4], strides = [1, 1, 1]} : vector<18x18x4xf32> to vector<16x16x4xf32>
    %26 = vector.shape_cast %25 : vector<16x16x4xf32> to vector<256x4xf32>
    %27 = tpu.concatenate %20, %22, %24, %26 in 1 : vector<256x4xf32>, vector<256x4xf32>, vector<256x4xf32>, vector<256x4xf32> -> vector<256x16xf32>
    %c1 = arith.constant 1 : index
    %c0_8 = arith.constant 0 : index
    %c0_9 = arith.constant 0 : index
    %28 = vector.load %arg3[%c1, %c0_8, %c0_9] : memref<4x16x8xf32, #tpu.memory_space<vmem>>, vector<1x16x8xf32>
    %29 = vector.shape_cast %28 : vector<1x16x8xf32> to vector<16x8xf32>
    %cst_10 = arith.constant dense<0.000000e+00> : vector<256x8xf32>
    %30 = tpu.matmul %27, %29, %cst_10 {dimension_numbers = #tpu.dot_dimension_numbers<[1], [0], [0], [1], [0, 0, 1, 1], [], []>} : vector<256x16xf32>, vector<16x8xf32>, vector<256x8xf32> -> vector<256x8xf32>
    %31 = vector.extract_strided_slice %6 {offsets = [1, 0, 0], sizes = [16, 16, 4], strides = [1, 1, 1]} : vector<18x18x4xf32> to vector<16x16x4xf32>
    %32 = vector.shape_cast %31 : vector<16x16x4xf32> to vector<256x4xf32>
    %33 = vector.extract_strided_slice %6 {offsets = [1, 1, 0], sizes = [16, 16, 4], strides = [1, 1, 1]} : vector<18x18x4xf32> to vector<16x16x4xf32>
    %34 = vector.shape_cast %33 : vector<16x16x4xf32> to vector<256x4xf32>
    %35 = vector.extract_strided_slice %6 {offsets = [2, 0, 0], sizes = [16, 16, 4], strides = [1, 1, 1]} : vector<18x18x4xf32> to vector<16x16x4xf32>
    %36 = vector.shape_cast %35 : vector<16x16x4xf32> to vector<256x4xf32>
    %37 = vector.extract_strided_slice %6 {offsets = [2, 1, 0], sizes = [16, 16, 4], strides = [1, 1, 1]} : vector<18x18x4xf32> to vector<16x16x4xf32>
    %38 = vector.shape_cast %37 : vector<16x16x4xf32> to vector<256x4xf32>
    %39 = tpu.concatenate %32, %34, %36, %38 in 1 : vector<256x4xf32>, vector<256x4xf32>, vector<256x4xf32>, vector<256x4xf32> -> vector<256x16xf32>
    %c2 = arith.constant 2 : index
    %c0_11 = arith.constant 0 : index
    %c0_12 = arith.constant 0 : index
    %40 = vector.load %arg3[%c2, %c0_11, %c0_12] : memref<4x16x8xf32, #tpu.memory_space<vmem>>, vector<1x16x8xf32>
    %41 = vector.shape_cast %40 : vector<1x16x8xf32> to vector<16x8xf32>
    %cst_13 = arith.constant dense<0.000000e+00> : vector<256x8xf32>
    %42 = tpu.matmul %39, %41, %cst_13 {dimension_numbers = #tpu.dot_dimension_numbers<[1], [0], [0], [1], [0, 0, 1, 1], [], []>} : vector<256x16xf32>, vector<16x8xf32>, vector<256x8xf32> -> vector<256x8xf32>
    %43 = vector.extract_strided_slice %6 {offsets = [1, 1, 0], sizes = [16, 16, 4], strides = [1, 1, 1]} : vector<18x18x4xf32> to vector<16x16x4xf32>
    %44 = vector.shape_cast %43 : vector<16x16x4xf32> to vector<256x4xf32>
    %45 = vector.extract_strided_slice %6 {offsets = [1, 2, 0], sizes = [16, 16, 4], strides = [1, 1, 1]} : vector<18x18x4xf32> to vector<16x16x4xf32>
    %46 = vector.shape_cast %45 : vector<16x16x4xf32> to vector<256x4xf32>
    %47 = vector.extract_strided_slice %6 {offsets = [2, 1, 0], sizes = [16, 16, 4], strides = [1, 1, 1]} : vector<18x18x4xf32> to vector<16x16x4xf32>
    %48 = vector.shape_cast %47 : vector<16x16x4xf32> to vector<256x4xf32>
    %49 = vector.extract_strided_slice %6 {offsets = [2, 2, 0], sizes = [16, 16, 4], strides = [1, 1, 1]} : vector<18x18x4xf32> to vector<16x16x4xf32>
    %50 = vector.shape_cast %49 : vector<16x16x4xf32> to vector<256x4xf32>
    %51 = tpu.concatenate %44, %46, %48, %50 in 1 : vector<256x4xf32>, vector<256x4xf32>, vector<256x4xf32>, vector<256x4xf32> -> vector<256x16xf32>
    %c3 = arith.constant 3 : index
    %c0_14 = arith.constant 0 : index
    %c0_15 = arith.constant 0 : index
    %52 = vector.load %arg3[%c3, %c0_14, %c0_15] : memref<4x16x8xf32, #tpu.memory_space<vmem>>, vector<1x16x8xf32>
    %53 = vector.shape_cast %52 : vector<1x16x8xf32> to vector<16x8xf32>
    %cst_16 = arith.constant dense<0.000000e+00> : vector<256x8xf32>
    %54 = tpu.matmul %51, %53, %cst_16 {dimension_numbers = #tpu.dot_dimension_numbers<[1], [0], [0], [1], [0, 0, 1, 1], [], []>} : vector<256x16xf32>, vector<16x8xf32>, vector<256x8xf32> -> vector<256x8xf32>
    %c0_i32_17 = arith.constant 0 : i32
    %55 = arith.cmpi eq, %arg0, %c0_i32_17 : i32
    %56 = arith.extui %55 : i1 to i32
    %c0_i32_18 = arith.constant 0 : i32
    %57 = arith.cmpi ne, %56, %c0_i32_18 : i32
    scf.if %57 {
      %cst_20 = arith.constant 0.000000e+00 : f32
      %61 = vector.broadcast %cst_20 : f32 to vector<1x8xf32>
      %cst_21 = arith.constant 0.000000e+00 : f32
      %62 = vector.broadcast %cst_21 : f32 to vector<1x8xf32>
      %cst_22 = arith.constant dense<0.000000e+00> : vector<8xf32>
      %63 = vector.multi_reduction <add>, %18, %cst_22 [0] : vector<256x8xf32> to vector<8xf32>
      %64 = vector.shape_cast %63 : vector<8xf32> to vector<1x8xf32>
      %65 = arith.addf %61, %64 : vector<1x8xf32>
      %66 = arith.mulf %18, %18 : vector<256x8xf32>
      %cst_23 = arith.constant dense<0.000000e+00> : vector<8xf32>
      %67 = vector.multi_reduction <add>, %66, %cst_23 [0] : vector<256x8xf32> to vector<8xf32>
      %68 = vector.shape_cast %67 : vector<8xf32> to vector<1x8xf32>
      %69 = arith.addf %62, %68 : vector<1x8xf32>
      %cst_24 = arith.constant dense<0.000000e+00> : vector<8xf32>
      %70 = vector.multi_reduction <add>, %30, %cst_24 [0] : vector<256x8xf32> to vector<8xf32>
      %71 = vector.shape_cast %70 : vector<8xf32> to vector<1x8xf32>
      %72 = arith.addf %65, %71 : vector<1x8xf32>
      %73 = arith.mulf %30, %30 : vector<256x8xf32>
      %cst_25 = arith.constant dense<0.000000e+00> : vector<8xf32>
      %74 = vector.multi_reduction <add>, %73, %cst_25 [0] : vector<256x8xf32> to vector<8xf32>
      %75 = vector.shape_cast %74 : vector<8xf32> to vector<1x8xf32>
      %76 = arith.addf %69, %75 : vector<1x8xf32>
      %cst_26 = arith.constant dense<0.000000e+00> : vector<8xf32>
      %77 = vector.multi_reduction <add>, %42, %cst_26 [0] : vector<256x8xf32> to vector<8xf32>
      %78 = vector.shape_cast %77 : vector<8xf32> to vector<1x8xf32>
      %79 = arith.addf %72, %78 : vector<1x8xf32>
      %80 = arith.mulf %42, %42 : vector<256x8xf32>
      %cst_27 = arith.constant dense<0.000000e+00> : vector<8xf32>
      %81 = vector.multi_reduction <add>, %80, %cst_27 [0] : vector<256x8xf32> to vector<8xf32>
      %82 = vector.shape_cast %81 : vector<8xf32> to vector<1x8xf32>
      %83 = arith.addf %76, %82 : vector<1x8xf32>
      %cst_28 = arith.constant dense<0.000000e+00> : vector<8xf32>
      %84 = vector.multi_reduction <add>, %54, %cst_28 [0] : vector<256x8xf32> to vector<8xf32>
      %85 = vector.shape_cast %84 : vector<8xf32> to vector<1x8xf32>
      %86 = arith.addf %79, %85 : vector<1x8xf32>
      %87 = arith.mulf %54, %54 : vector<256x8xf32>
      %cst_29 = arith.constant dense<0.000000e+00> : vector<8xf32>
      %88 = vector.multi_reduction <add>, %87, %cst_29 [0] : vector<256x8xf32> to vector<8xf32>
      %89 = vector.shape_cast %88 : vector<8xf32> to vector<1x8xf32>
      %90 = arith.addf %83, %89 : vector<1x8xf32>
      %c0_30 = arith.constant 0 : index
      %c0_31 = arith.constant 0 : index
      %91 = vector.load %arg7[%c0_30, %c0_31] : memref<1x8xf32, #tpu.memory_space<vmem>>, vector<1x8xf32>
      %92 = arith.addf %91, %86 : vector<1x8xf32>
      %c0_32 = arith.constant 0 : index
      %c0_33 = arith.constant 0 : index
      %93 = vector.load %arg7[%c0_32, %c0_33] : memref<1x8xf32, #tpu.memory_space<vmem>>, vector<1x8xf32>
      tpu.vector_store %arg7[%c0_32, %c0_33], %92 {strides = array<i32>} : memref<1x8xf32, #tpu.memory_space<vmem>>, vector<1x8xf32>,
      %c0_34 = arith.constant 0 : index
      %c0_35 = arith.constant 0 : index
      %94 = vector.load %arg8[%c0_34, %c0_35] : memref<1x8xf32, #tpu.memory_space<vmem>>, vector<1x8xf32>
      %95 = arith.addf %94, %90 : vector<1x8xf32>
      %c0_36 = arith.constant 0 : index
      %c0_37 = arith.constant 0 : index
      %96 = vector.load %arg8[%c0_36, %c0_37] : memref<1x8xf32, #tpu.memory_space<vmem>>, vector<1x8xf32>
      tpu.vector_store %arg8[%c0_36, %c0_37], %95 {strides = array<i32>} : memref<1x8xf32, #tpu.memory_space<vmem>>, vector<1x8xf32>,
    } else {
    }
    %c1_i32 = arith.constant 1 : i32
    %58 = arith.cmpi eq, %arg0, %c1_i32 : i32
    %59 = arith.extui %58 : i1 to i32
    %c0_i32_19 = arith.constant 0 : i32
    %60 = arith.cmpi ne, %59, %c0_i32_19 : i32
    scf.if %60 {
      %c0_20 = arith.constant 0 : index
      %c0_21 = arith.constant 0 : index
      %61 = vector.load %arg7[%c0_20, %c0_21] : memref<1x8xf32, #tpu.memory_space<vmem>>, vector<1x8xf32>
      %cst_22 = arith.constant 4.8828125E-4 : f32
      %62 = vector.broadcast %cst_22 : f32 to vector<1x8xf32>
      %63 = arith.mulf %61, %62 : vector<1x8xf32>
      %c0_23 = arith.constant 0 : index
      %c0_24 = arith.constant 0 : index
      %64 = vector.load %arg8[%c0_23, %c0_24] : memref<1x8xf32, #tpu.memory_space<vmem>>, vector<1x8xf32>
      %cst_25 = arith.constant 4.8828125E-4 : f32
      %65 = vector.broadcast %cst_25 : f32 to vector<1x8xf32>
      %66 = arith.mulf %64, %65 : vector<1x8xf32>
      %67 = arith.mulf %63, %63 : vector<1x8xf32>
      %68 = arith.subf %66, %67 : vector<1x8xf32>
      %cst_26 = arith.constant 9.99999974E-6 : f32
      %69 = vector.broadcast %cst_26 : f32 to vector<1x8xf32>
      %70 = arith.addf %68, %69 : vector<1x8xf32>
      %71 = math.rsqrt %70 : vector<1x8xf32>
      %c0_27 = arith.constant 0 : index
      %c0_28 = arith.constant 0 : index
      %72 = vector.load %arg4[%c0_27, %c0_28] : memref<1x8xf32, #tpu.memory_space<vmem>>, vector<1x8xf32>
      %73 = arith.mulf %72, %71 : vector<1x8xf32>
      %c0_29 = arith.constant 0 : index
      %c0_30 = arith.constant 0 : index
      %74 = vector.load %arg5[%c0_29, %c0_30] : memref<1x8xf32, #tpu.memory_space<vmem>>, vector<1x8xf32>
      %75 = arith.mulf %63, %73 : vector<1x8xf32>
      %76 = arith.subf %74, %75 : vector<1x8xf32>
      %77 = vector.broadcast %73 : vector<1x8xf32> to vector<256x8xf32>
      %78 = arith.mulf %18, %77 : vector<256x8xf32>
      %79 = vector.broadcast %76 : vector<1x8xf32> to vector<256x8xf32>
      %80 = arith.addf %78, %79 : vector<256x8xf32>
      %cst_31 = arith.constant 0.000000e+00 : f32
      %81 = vector.broadcast %cst_31 : f32 to vector<256x8xf32>
      %82 = arith.maximumf %80, %81 : vector<256x8xf32>
      %83 = tpu.iota {dimensions = array<i32: 0>} : vector<8x8xi32>
      %84 = tpu.iota {dimensions = array<i32: 1>} : vector<8x8xi32>
      %85 = arith.cmpi eq, %83, %84 : vector<8x8xi32>
      %86 = arith.extui %85 : vector<8x8xi1> to vector<8x8xi32>
      %87 = arith.sitofp %86 : vector<8x8xi32> to vector<8x8xf32>
      %cst_32 = arith.constant dense<0.000000e+00> : vector<8x256xf32>
      %88 = tpu.matmul %87, %82, %cst_32 {dimension_numbers = #tpu.dot_dimension_numbers<[1], [1], [0], [0], [0, 0, 1, 0], [], []>} : vector<8x8xf32>, vector<256x8xf32>, vector<8x256xf32> -> vector<8x256xf32>
      %89 = vector.broadcast %73 : vector<1x8xf32> to vector<256x8xf32>
      %90 = arith.mulf %30, %89 : vector<256x8xf32>
      %91 = vector.broadcast %76 : vector<1x8xf32> to vector<256x8xf32>
      %92 = arith.addf %90, %91 : vector<256x8xf32>
      %cst_33 = arith.constant 0.000000e+00 : f32
      %93 = vector.broadcast %cst_33 : f32 to vector<256x8xf32>
      %94 = arith.maximumf %92, %93 : vector<256x8xf32>
      %95 = tpu.iota {dimensions = array<i32: 0>} : vector<8x8xi32>
      %96 = tpu.iota {dimensions = array<i32: 1>} : vector<8x8xi32>
      %97 = arith.cmpi eq, %95, %96 : vector<8x8xi32>
      %98 = arith.extui %97 : vector<8x8xi1> to vector<8x8xi32>
      %99 = arith.sitofp %98 : vector<8x8xi32> to vector<8x8xf32>
      %cst_34 = arith.constant dense<0.000000e+00> : vector<8x256xf32>
      %100 = tpu.matmul %99, %94, %cst_34 {dimension_numbers = #tpu.dot_dimension_numbers<[1], [1], [0], [0], [0, 0, 1, 0], [], []>} : vector<8x8xf32>, vector<256x8xf32>, vector<8x256xf32> -> vector<8x256xf32>
      %101 = vector.broadcast %73 : vector<1x8xf32> to vector<256x8xf32>
      %102 = arith.mulf %42, %101 : vector<256x8xf32>
      %103 = vector.broadcast %76 : vector<1x8xf32> to vector<256x8xf32>
      %104 = arith.addf %102, %103 : vector<256x8xf32>
      %cst_35 = arith.constant 0.000000e+00 : f32
      %105 = vector.broadcast %cst_35 : f32 to vector<256x8xf32>
      %106 = arith.maximumf %104, %105 : vector<256x8xf32>
      %107 = tpu.iota {dimensions = array<i32: 0>} : vector<8x8xi32>
      %108 = tpu.iota {dimensions = array<i32: 1>} : vector<8x8xi32>
      %109 = arith.cmpi eq, %107, %108 : vector<8x8xi32>
      %110 = arith.extui %109 : vector<8x8xi1> to vector<8x8xi32>
      %111 = arith.sitofp %110 : vector<8x8xi32> to vector<8x8xf32>
      %cst_36 = arith.constant dense<0.000000e+00> : vector<8x256xf32>
      %112 = tpu.matmul %111, %106, %cst_36 {dimension_numbers = #tpu.dot_dimension_numbers<[1], [1], [0], [0], [0, 0, 1, 0], [], []>} : vector<8x8xf32>, vector<256x8xf32>, vector<8x256xf32> -> vector<8x256xf32>
      %113 = vector.broadcast %73 : vector<1x8xf32> to vector<256x8xf32>
      %114 = arith.mulf %54, %113 : vector<256x8xf32>
      %115 = vector.broadcast %76 : vector<1x8xf32> to vector<256x8xf32>
      %116 = arith.addf %114, %115 : vector<256x8xf32>
      %cst_37 = arith.constant 0.000000e+00 : f32
      %117 = vector.broadcast %cst_37 : f32 to vector<256x8xf32>
      %118 = arith.maximumf %116, %117 : vector<256x8xf32>
      %119 = tpu.iota {dimensions = array<i32: 0>} : vector<8x8xi32>
      %120 = tpu.iota {dimensions = array<i32: 1>} : vector<8x8xi32>
      %121 = arith.cmpi eq, %119, %120 : vector<8x8xi32>
      %122 = arith.extui %121 : vector<8x8xi1> to vector<8x8xi32>
      %123 = arith.sitofp %122 : vector<8x8xi32> to vector<8x8xf32>
      %cst_38 = arith.constant dense<0.000000e+00> : vector<8x256xf32>
      %124 = tpu.matmul %123, %118, %cst_38 {dimension_numbers = #tpu.dot_dimension_numbers<[1], [1], [0], [0], [0, 0, 1, 0], [], []>} : vector<8x8xf32>, vector<256x8xf32>, vector<8x256xf32> -> vector<8x256xf32>
      %125 = tpu.concatenate %88, %100, %112, %124 in 0 : vector<8x256xf32>, vector<8x256xf32>, vector<8x256xf32>, vector<8x256xf32> -> vector<32x256xf32>
      %c0_39 = arith.constant 0 : index
      %c0_40 = arith.constant 0 : index
      %c0_41 = arith.constant 0 : index
      %126 = vector.load %arg6[%c0_39, %c0_40, %c0_41] : memref<1x32x256xf32, #tpu.memory_space<vmem>>, vector<1x32x256xf32>
      %127 = vector.shape_cast %126 : vector<1x32x256xf32> to vector<32x256xf32>
      %128 = vector.shape_cast %125 : vector<32x256xf32> to vector<1x32x256xf32>
      tpu.vector_store %arg6[%c0_39, %c0_40, %c0_41], %128 {strides = array<i32>} : memref<1x32x256xf32, #tpu.memory_space<vmem>>, vector<1x32x256xf32>,
    } else {
    }
    return
  }
  func.func @transform_0(%arg0: i32, %arg1: i32) -> (i32, i32, i32, i32) {
    %c0_i32 = arith.constant 0 : i32
    %c0_i32_0 = arith.constant 0 : i32
    %c0_i32_1 = arith.constant 0 : i32
    %c0_i32_2 = arith.constant 0 : i32
    return %arg1, %c0_i32, %c0_i32_0, %c0_i32_1 : i32, i32, i32, i32
  }
  func.func @transform_1(%arg0: i32, %arg1: i32) -> (i32, i32, i32) {
    %c0_i32 = arith.constant 0 : i32
    %c0_i32_0 = arith.constant 0 : i32
    %c0_i32_1 = arith.constant 0 : i32
    %c0_i32_2 = arith.constant 0 : i32
    return %c0_i32, %c0_i32_0, %c0_i32_1 : i32, i32, i32
  }
  func.func @transform_2(%arg0: i32, %arg1: i32) -> (i32, i32) {
    %c0_i32 = arith.constant 0 : i32
    %c0_i32_0 = arith.constant 0 : i32
    %c0_i32_1 = arith.constant 0 : i32
    return %c0_i32, %c0_i32_0 : i32, i32
  }
  func.func @transform_3(%arg0: i32, %arg1: i32) -> (i32, i32) {
    %c0_i32 = arith.constant 0 : i32
    %c0_i32_0 = arith.constant 0 : i32
    %c0_i32_1 = arith.constant 0 : i32
    return %c0_i32, %c0_i32_0 : i32, i32
  }
  func.func @transform_4(%arg0: i32, %arg1: i32) -> (i32, i32, i32) {
    %0 = arith.muli %arg0, %arg1 : i32
    %c0_i32 = arith.constant 0 : i32
    %c0_i32_0 = arith.constant 0 : i32
    %c0_i32_1 = arith.constant 0 : i32
    return %0, %c0_i32, %c0_i32_0 : i32, i32, i32
  }
}

</mosaic_0001>

<llo_original>
// kernel: tpu_custom_call.1
$region0: #{tpu_custom_call.1}
  #allocation0 [shape = 'u32[]', space=smem, size = 0x4, offset = 0x4, fixed_abs, tag = 'smem constant byte address 0x4 - core index']
  #allocation1 [shape = 'u32[144,128]{1,0:T(1,128)}', space=vmem, size = 0x12000, scoped, tag = 'internal scratch']
  #allocation2 [shape = 'f32[1,8]{1,0:T(1,128)}', space=vmem, size = 0x200, scoped, tag = 'scratch operand']
  #allocation3 [shape = 'f32[1,8]{1,0:T(1,128)}', space=vmem, size = 0x200, scoped, tag = 'scratch operand']
  %s0 = inlined_call_operand.vmem [shape: f32[2,18,18,4], index: 0, kind: input, shape index: {}]
  %s1 = inlined_call_operand.vmem [shape: f32[4,16,8], index: 1, kind: input, shape index: {}]
  %s2 = inlined_call_operand.vmem [shape: f32[1,8], index: 2, kind: input, shape index: {}]
  %s3 = inlined_call_operand.vmem [shape: f32[1,8], index: 3, kind: input, shape index: {}]
  %s4 = inlined_call_operand.hbm [shape: f32[2,32,256], index: 4, kind: output, shape index: {}]
  %s5 = sld [smem:[#allocation0]]
  $region61: #{tpu_custom_call.1} parent=0
    _
  %s7 = ssub.s32 1, %s5
  %s8 = scalar_select 0, %s7, %s5
  $region1: #{tpu_custom_call.1} parent=0
    #allocation4 [shape = 'u8[65536]{0}', space=vmem, size = 0x10000, scoped, tag = 'output window, operand 0']
    #allocation5 [shape = 's32[2]{0}', space=sflag, size = 0x8, scoped, tag = 'scoped memory for tpu_custom_call.1']
    %9 = vsyncpa [#allocation5], 0
    %s10 = scalar_lea.sflag [#allocation5], 1
    %11 = vsyncpa %s10, 0
    loop: start=0, step=1, limit=6
    $region2: #{tpu_custom_call.1} parent=1 // loop_pre_header
      _
    $region3: #{tpu_custom_call.1} parent=1 // loop_header
      %s13 = sphi 0, %s17
      %p14 = scmp.ge.s32.totalorder %s13, 6
      %s20 = sphi 0, %s32
      %s21 = sphi 0, %s28
      %s22 = sphi 0, %s20
      %s23 = sphi 0, %s21
      %s24 = sphi 0, %s22
      %s25 = sphi 0, %s23
      %s35 = sphi 0, %s37
      %s38 = sphi 0, %s35
      %s39 = sphi 0, %s38
      %s55 = sphi 0, %s39
      %s59 = sphi 0, %s59
      %s61 = sphi 0, %s59
      %s62 = sphi 0, %s61
      %s76 = sphi 0, %s62
      %s80 = sphi 0, %s80
      %s82 = sphi 0, %s80
      %s83 = sphi 0, %s82
      %s97 = sphi 0, %s83
      %s101 = sphi 0, %s101
      %s103 = sphi 0, %s101
      %s104 = sphi 0, %s103
      %s118 = sphi 0, %s104
      %s126 = sphi 0, %s128
      %s129 = sphi 0, %s126
      %s130 = sphi 0, %s129
      %s146 = sphi 0, %s130
    $region4: #{tpu_custom_call.1} parent=1 // loop_header_branch
      %16 = sbr.rel (%p14) target = $region8
    $region5: #{tpu_custom_call.1} parent=1 // loop_body
      %s18 = ssub.s32 %s13, 1
      %s19 = ssub.s32 %s13, 2
      %s26 = sadd.s32 1, %s21
      %p27 = scmp.ge.s32.totalorder %s26, 2
      %s28 = scalar_select %p27, 0, %s26
      %s29 = sadd.s32 1, %s20
      %s30 = scalar_select %p27, %s29, %s20
      %p31 = scmp.ge.s32.totalorder %s30, 2
      %s32 = scalar_select %p31, 0, %s30
      %s33 = ssub.s32 %s21, %s28
      %p34 = scmp.eq.s32.totalorder %s33, 0
      %s36 = sadd.s32 %s35, 1
      %s37 = scalar_select %p34, %s35, %s36
      %p40 = pneg %p34
      %p41 = scmp.eq.s32.totalorder %s13, 3
      %p42 = por %p40, %p41
      %p43 = scmp.ne.s32.totalorder %s35, %s38
      %p44 = scmp.eq.s32.totalorder %s13, 0
      %p45 = por %p43, %p44
      %p46 = scmp.ne.s32.totalorder %s35, %s38
      %p47 = scmp.eq.s32.totalorder %s18, 3
      %p48 = por %p46, %p47
      %p49 = scmp.ne.s32.totalorder %s38, %s39
      %p50 = scmp.eq.s32.totalorder %s18, 0
      %p51 = por %p49, %p50
      %p52 = scmp.ne.s32.totalorder %s38, %s39
      %p53 = scmp.eq.s32.totalorder %s19, 3
      %p54 = por %p52, %p53
      %p56 = scmp.ne.s32.totalorder %s39, %s55
      %p57 = scmp.eq.s32.totalorder %s19, 0
      %p58 = por %p56, %p57
      %s60 = sadd.s32 %s59, 1
      %p63 = scmp.eq.s32.totalorder %s13, 3
      %p64 = scmp.ne.s32.totalorder %s59, %s61
      %p65 = scmp.eq.s32.totalorder %s13, 0
      %p66 = por %p64, %p65
      %p67 = scmp.ne.s32.totalorder %s59, %s61
      %p68 = scmp.eq.s32.totalorder %s18, 3
      %p69 = por %p67, %p68
      %p70 = scmp.ne.s32.totalorder %s61, %s62
      %p71 = scmp.eq.s32.totalorder %s18, 0
      %p72 = por %p70, %p71
      %p73 = scmp.ne.s32.totalorder %s61, %s62
      %p74 = scmp.eq.s32.totalorder %s19, 3
      %p75 = por %p73, %p74
      %p77 = scmp.ne.s32.totalorder %s62, %s76
      %p78 = scmp.eq.s32.totalorder %s19, 0
      %p79 = por %p77, %p78
      %s81 = sadd.s32 %s80, 1
      %p84 = scmp.eq.s32.totalorder %s13, 3
      %p85 = scmp.ne.s32.totalorder %s80, %s82
      %p86 = scmp.eq.s32.totalorder %s13, 0
      %p87 = por %p85, %p86
      %p88 = scmp.ne.s32.totalorder %s80, %s82
      %p89 = scmp.eq.s32.totalorder %s18, 3
      %p90 = por %p88, %p89
      %p91 = scmp.ne.s32.totalorder %s82, %s83
      %p92 = scmp.eq.s32.totalorder %s18, 0
      %p93 = por %p91, %p92
      %p94 = scmp.ne.s32.totalorder %s82, %s83
      %p95 = scmp.eq.s32.totalorder %s19, 3
      %p96 = por %p94, %p95
      %p98 = scmp.ne.s32.totalorder %s83, %s97
      %p99 = scmp.eq.s32.totalorder %s19, 0
      %p100 = por %p98, %p99
      %s102 = sadd.s32 %s101, 1
      %p105 = scmp.eq.s32.totalorder %s13, 3
      %p106 = scmp.ne.s32.totalorder %s101, %s103
      %p107 = scmp.eq.s32.totalorder %s13, 0
      %p108 = por %p106, %p107
      %p109 = scmp.ne.s32.totalorder %s101, %s103
      %p110 = scmp.eq.s32.totalorder %s18, 3
      %p111 = por %p109, %p110
      %p112 = scmp.ne.s32.totalorder %s103, %s104
      %p113 = scmp.eq.s32.totalorder %s18, 0
      %p114 = por %p112, %p113
      %p115 = scmp.ne.s32.totalorder %s103, %s104
      %p116 = scmp.eq.s32.totalorder %s19, 3
      %p117 = por %p115, %p116
      %p119 = scmp.ne.s32.totalorder %s104, %s118
      %p120 = scmp.eq.s32.totalorder %s19, 0
      %p121 = por %p119, %p120
      %s122 = smul.u32 %s20, %s21
      %s123 = smul.u32 %s32, %s28
      %s124 = ssub.s32 %s122, %s123
      %p125 = scmp.eq.s32.totalorder %s124, 0
      %s127 = sadd.s32 %s126, 1
      %s128 = scalar_select %p125, %s126, %s127
      %p131 = pneg %p125
      %p132 = scmp.eq.s32.totalorder %s13, 3
      %p133 = por %p131, %p132
      %p134 = scmp.ne.s32.totalorder %s126, %s129
      %p135 = scmp.eq.s32.totalorder %s13, 0
      %p136 = por %p134, %p135
      %p137 = scmp.ne.s32.totalorder %s126, %s129
      %p138 = scmp.eq.s32.totalorder %s18, 3
      %p139 = por %p137, %p138
      %p140 = scmp.ne.s32.totalorder %s129, %s130
      %p141 = scmp.eq.s32.totalorder %s18, 0
      %p142 = por %p140, %p141
      %p143 = scmp.ne.s32.totalorder %s129, %s130
      %p144 = scmp.eq.s32.totalorder %s19, 3
      %p145 = por %p143, %p144
      %p147 = scmp.ne.s32.totalorder %s130, %s146
      %p148 = scmp.eq.s32.totalorder %s19, 0
      %p149 = por %p147, %p148
      %p150 = scmp.le.s32.totalorder 1, %s13
      %p151 = scmp.lt.s32.totalorder %s13, 5
      %p152 = pnand %p150, %p151
      %p153 = pneg %p152
      // Predicated region
      $region9: #{tpu_custom_call.1} parent=5 // pred_check
        _
      $region10: #{tpu_custom_call.1} parent=5 // pred_check_branch
        %155 = sbr.rel (%p152) target = $region12
      $region11: #{tpu_custom_call.1} parent=5 // pred_region
        %s156 = ssub.s32 %s13, 1
        // Predicated region
        $region13: #{tpu_custom_call.1} parent=11 // pred_check
          %p157 = pneg %p72
        $region14: #{tpu_custom_call.1} parent=11 // pred_check_branch
          %159 = sbr.rel (%p157) target = $region16
        $region15: #{tpu_custom_call.1} parent=11 // pred_region
          _
        $region16: #{tpu_custom_call.1} parent=11 // pred_fallthru
          _
        // Predicated region
        $region17: #{tpu_custom_call.1} parent=11 // pred_check
          %p160 = pneg %p93
        $region18: #{tpu_custom_call.1} parent=11 // pred_check_branch
          %162 = sbr.rel (%p160) target = $region20
        $region19: #{tpu_custom_call.1} parent=11 // pred_region
          _
        $region20: #{tpu_custom_call.1} parent=11 // pred_fallthru
          _
        // Predicated region
        $region21: #{tpu_custom_call.1} parent=11 // pred_check
          %p163 = pneg %p114
        $region22: #{tpu_custom_call.1} parent=11 // pred_check_branch
          %165 = sbr.rel (%p163) target = $region24
        $region23: #{tpu_custom_call.1} parent=11 // pred_region
          _
        $region24: #{tpu_custom_call.1} parent=11 // pred_fallthru
          _
      $region12: #{tpu_custom_call.1} parent=5 // pred_fallthru
        _
      %p166 = scmp.lt.s32.totalorder %s13, 4
      // Predicated region
      $region25: #{tpu_custom_call.1} parent=5 // pred_check
        %p167 = pneg %p166
      $region26: #{tpu_custom_call.1} parent=5 // pred_check_branch
        %169 = sbr.rel (%p167) target = $region28
      $region27: #{tpu_custom_call.1} parent=5 // pred_region
        // Predicated region
        $region29: #{tpu_custom_call.1} parent=27 // pred_check
          %p170 = pneg %p45
        $region30: #{tpu_custom_call.1} parent=27 // pred_check_branch
          %172 = sbr.rel (%p170) target = $region32
        $region31: #{tpu_custom_call.1} parent=27 // pred_region
          %p173 = scmp.lt.s32.totalorder %s21, 1
          %s174 = scalar_select %p173, %s21, 1
          %s175 = smul.addr %s174, 54
          %s176 = smul.addr %s175, 8
          %s177 = scalar_lea.vmem %s0, %s176
        $region32: #{tpu_custom_call.1} parent=27 // pred_fallthru
          _
      $region28: #{tpu_custom_call.1} parent=5 // pred_fallthru
        _
      %p178 = scmp.le.s32.totalorder 1, %s13
      %p179 = scmp.lt.s32.totalorder %s13, 5
      %p180 = pnand %p178, %p179
      %p181 = pneg %p180
      // Predicated region
      $region33: #{tpu_custom_call.1} parent=5 // pred_check
        _
      $region34: #{tpu_custom_call.1} parent=5 // pred_check_branch
        %183 = sbr.rel (%p180) target = $region36
      $region35: #{tpu_custom_call.1} parent=5 // pred_region
        %s184 = ssub.s32 %s13, 1
        %p185 = scmp.lt.s32.totalorder %s23, 1
        %s186 = scalar_select %p185, %s23, 1
        %s187 = smul.addr %s186, 54
        %s188 = smul.addr %s187, 8
        %s189 = scalar_lea.vmem %s0, %s188
        %p190 = pneg %p51
        %p191 = pneg %p48
        %p192 = pneg %p72
        %p193 = pneg %p69
        %p194 = pneg %p93
        %p195 = pneg %p90
        %p196 = pneg %p114
        %p197 = pneg %p111
        %p198 = pneg %p142
        %p199 = pneg %p139
        %s200 = sand.u32 %s129, 1
        %s201 = scalar_lea.sflag [#allocation5], %s200
        %s202 = sand.u32 %s129, 1
        %s203 = smul.addr %s202, 64
        %s204 = scalar_lea.vmem [#allocation4], %s203
        %p205 = scmp.lt.s32.totalorder %s23, 1
        %s206 = scalar_select %p205, %s23, 1
        %s207 = smul.addr %s206, 54
        %s208 = smul.addr %s207, 8
        %s209 = scalar_lea.vmem %s0, %s208
        %s210 = smul.u32 %s22, %s23
        %p211 = scmp.eq.s32.totalorder %s22, 0
        %p212 = scmp.eq.s32.totalorder %s23, 0
        %p213 = pnand %p211, %p212
        %p214 = pneg %p213
        // Predicated region
        $region37: #{tpu_custom_call.1} parent=35 // pred_check
          _
        $region38: #{tpu_custom_call.1} parent=35 // pred_check_branch
          %216 = sbr.rel (%p213) target = $region40
        $region39: #{tpu_custom_call.1} parent=35 // pred_region
          %vm217 = vcmask 57344
          %218 = vst.msk [vmem:[#allocation2] sm:$0x1] %vm217, 0.0
          %219 = vst.msk [vmem:[#allocation3] sm:$0x1] %vm217, 0.0
        $region40: #{tpu_custom_call.1} parent=35 // pred_fallthru
          _
        %v220 = vld [vmem:[%s209] sm:$0xff]
        %v221 = vld [vmem:[%s209 + $0x8] sm:$0xff]
        %v222 = vld [vmem:[%s209 + $0x10] sm:$0x3]
        %v223 = vld [vmem:[%s209 + $0x18] sm:$0xff]
        %v224 = vld [vmem:[%s209 + $0x20] sm:$0xff]
        %v225 = vld [vmem:[%s209 + $0x28] sm:$0x3]
        %v226 = vld [vmem:[%s209 + $0x30] sm:$0xff]
        %v227 = vld [vmem:[%s209 + $0x38] sm:$0xff]
        %v228 = vld [vmem:[%s209 + $0x40] sm:$0x3]
        %v229 = vld [vmem:[%s209 + $0x48] sm:$0xff]
        %v230 = vld [vmem:[%s209 + $0x50] sm:$0xff]
        %v231 = vld [vmem:[%s209 + $0x58] sm:$0x3]
        %v232 = vld [vmem:[%s209 + $0x60] sm:$0xff]
        %v233 = vld [vmem:[%s209 + $0x68] sm:$0xff]
        %v234 = vld [vmem:[%s209 + $0x70] sm:$0x3]
        %v235 = vld [vmem:[%s209 + $0x78] sm:$0xff]
        %v236 = vld [vmem:[%s209 + $0x80] sm:$0xff]
        %v237 = vld [vmem:[%s209 + $0x88] sm:$0x3]
        %v238 = vld [vmem:[%s209 + $0x90] sm:$0xff]
        %v239 = vld [vmem:[%s209 + $0x98] sm:$0xff]
        %v240 = vld [vmem:[%s209 + $0xa0] sm:$0x3]
        %v241 = vld [vmem:[%s209 + $0xa8] sm:$0xff]
        %v242 = vld [vmem:[%s209 + $0xb0] sm:$0xff]
        %v243 = vld [vmem:[%s209 + $0xb8] sm:$0x3]
        %v244 = vld [vmem:[%s209 + $0xc0] sm:$0xff]
        %v245 = vld [vmem:[%s209 + $0xc8] sm:$0xff]
        %v246 = vld [vmem:[%s209 + $0xd0] sm:$0x3]
        %v247 = vld [vmem:[%s209 + $0xd8] sm:$0xff]
        %v248 = vld [vmem:[%s209 + $0xe0] sm:$0xff]
        %v249 = vld [vmem:[%s209 + $0xe8] sm:$0x3]
        %v250 = vld [vmem:[%s209 + $0xf0] sm:$0xff]
        %v251 = vld [vmem:[%s209 + $0xf8] sm:$0xff]
        %v252 = vld [vmem:[%s209 + $0x100] sm:$0x3]
        %v253 = vld [vmem:[%s209 + $0x108] sm:$0xff]
        %v254 = vld [vmem:[%s209 + $0x110] sm:$0xff]
        %v255 = vld [vmem:[%s209 + $0x118] sm:$0x3]
        %v256 = vld [vmem:[%s209 + $0x120] sm:$0xff]
        %v257 = vld [vmem:[%s209 + $0x128] sm:$0xff]
        %v258 = vld [vmem:[%s209 + $0x130] sm:$0x3]
        %v259 = vld [vmem:[%s209 + $0x138] sm:$0xff]
        %v260 = vld [vmem:[%s209 + $0x140] sm:$0xff]
        %v261 = vld [vmem:[%s209 + $0x148] sm:$0x3]
        %v262 = vld [vmem:[%s209 + $0x150] sm:$0xff]
        %v263 = vld [vmem:[%s209 + $0x158] sm:$0xff]
        %v264 = vld [vmem:[%s209 + $0x160] sm:$0x3]
        %v265 = vld [vmem:[%s209 + $0x168] sm:$0xff]
        %v266 = vld [vmem:[%s209 + $0x170] sm:$0xff]
        %v267 = vld [vmem:[%s209 + $0x178] sm:$0x3]
        %v268 = vld [vmem:[%s209 + $0x180] sm:$0xff]
        %v269 = vld [vmem:[%s209 + $0x188] sm:$0xff]
        %v270 = vld [vmem:[%s209 + $0x190] sm:$0x3]
        %v271 = vld [vmem:[%s209 + $0x198] sm:$0xff]
        %v272 = vld [vmem:[%s209 + $0x1a0] sm:$0xff]
        %v273 = vld [vmem:[%s209 + $0x1a8] sm:$0x3]
        %vm322 = vcmask 1046528
        %v323 = vrot.slane %v220, 1
        %v324 = vrot.slane %v221, 1
        %v325 = vsel %vm322, %v323, %v324
        %v326 = vrot.slane %v222, 1
        %v327 = vsel %vm322, %v324, %v326
        %v328 = vrot.slane %v223, 1
        %v329 = vrot.slane %v224, 1
        %v330 = vsel %vm322, %v328, %v329
        %v331 = vrot.slane %v225, 1
        %v332 = vsel %vm322, %v329, %v331
        %v333 = vrot.slane %v226, 1
        %v334 = vrot.slane %v227, 1
        %v335 = vsel %vm322, %v333, %v334
        %v336 = vrot.slane %v228, 1
        %v337 = vsel %vm322, %v334, %v336
        %v338 = vrot.slane %v229, 1
        %v339 = vrot.slane %v230, 1
        %v340 = vsel %vm322, %v338, %v339
        %v341 = vrot.slane %v231, 1
        %v342 = vsel %vm322, %v339, %v341
        %v343 = vrot.slane %v232, 1
        %v344 = vrot.slane %v233, 1
        %v345 = vsel %vm322, %v343, %v344
        %v346 = vrot.slane %v234, 1
        %v347 = vsel %vm322, %v344, %v346
        %v348 = vrot.slane %v235, 1
        %v349 = vrot.slane %v236, 1
        %v350 = vsel %vm322, %v348, %v349
        %v351 = vrot.slane %v237, 1
        %v352 = vsel %vm322, %v349, %v351
        %v353 = vrot.slane %v238, 1
        %v354 = vrot.slane %v239, 1
        %v355 = vsel %vm322, %v353, %v354
        %v356 = vrot.slane %v240, 1
        %v357 = vsel %vm322, %v354, %v356
        %v358 = vrot.slane %v241, 1
        %v359 = vrot.slane %v242, 1
        %v360 = vsel %vm322, %v358, %v359
        %v361 = vrot.slane %v243, 1
        %v362 = vsel %vm322, %v359, %v361
        %v363 = vrot.slane %v244, 1
        %v364 = vrot.slane %v245, 1
        %v365 = vsel %vm322, %v363, %v364
        %v366 = vrot.slane %v246, 1
        %v367 = vsel %vm322, %v364, %v366
        %v368 = vrot.slane %v247, 1
        %v369 = vrot.slane %v248, 1
        %v370 = vsel %vm322, %v368, %v369
        %v371 = vrot.slane %v249, 1
        %v372 = vsel %vm322, %v369, %v371
        %v373 = vrot.slane %v250, 1
        %v374 = vrot.slane %v251, 1
        %v375 = vsel %vm322, %v373, %v374
        %v376 = vrot.slane %v252, 1
        %v377 = vsel %vm322, %v374, %v376
        %v378 = vrot.slane %v253, 1
        %v379 = vrot.slane %v254, 1
        %v380 = vsel %vm322, %v378, %v379
        %v381 = vrot.slane %v255, 1
        %v382 = vsel %vm322, %v379, %v381
        %v383 = vrot.slane %v256, 1
        %v384 = vrot.slane %v257, 1
        %v385 = vsel %vm322, %v383, %v384
        %v386 = vrot.slane %v258, 1
        %v387 = vsel %vm322, %v384, %v386
        %v388 = vrot.slane %v259, 1
        %v389 = vrot.slane %v260, 1
        %v390 = vsel %vm322, %v388, %v389
        %v391 = vrot.slane %v261, 1
        %v392 = vsel %vm322, %v389, %v391
        %v393 = vrot.slane %v262, 1
        %v394 = vrot.slane %v263, 1
        %v395 = vsel %vm322, %v393, %v394
        %v396 = vrot.slane %v264, 1
        %v397 = vsel %vm322, %v394, %v396
        %v398 = vrot.slane %v265, 1
        %v399 = vrot.slane %v266, 1
        %v400 = vsel %vm322, %v398, %v399
        %v401 = vrot.slane %v267, 1
        %v402 = vsel %vm322, %v399, %v401
        %v438 = vrot.slane %v268, 1
        %v439 = vrot.slane %v269, 1
        %v440 = vsel %vm322, %v438, %v439
        %v441 = vrot.slane %v270, 1
        %v442 = vsel %vm322, %v439, %v441
        %445 = vrot.lane.b32.xlu0 %v325, 4
        %v446 = vpop.permute.xlu0 %445
        %447 = vrot.lane.b32.xlu0 %v327, 4
        %v448 = vpop.permute.xlu0 %447
        %449 = vrot.lane.b32.xlu0 %v330, 4
        %v450 = vpop.permute.xlu0 %449
        %451 = vrot.lane.b32.xlu0 %v332, 4
        %v452 = vpop.permute.xlu0 %451
        %453 = vrot.lane.b32.xlu0 %v335, 4
        %v454 = vpop.permute.xlu0 %453
        %455 = vrot.lane.b32.xlu0 %v337, 4
        %v456 = vpop.permute.xlu0 %455
        %457 = vrot.lane.b32.xlu0 %v340, 4
        %v458 = vpop.permute.xlu0 %457
        %459 = vrot.lane.b32.xlu0 %v342, 4
        %v460 = vpop.permute.xlu0 %459
        %461 = vrot.lane.b32.xlu0 %v345, 4
        %v462 = vpop.permute.xlu0 %461
        %463 = vrot.lane.b32.xlu0 %v347, 4
        %v464 = vpop.permute.xlu0 %463
        %465 = vrot.lane.b32.xlu0 %v350, 4
        %v466 = vpop.permute.xlu0 %465
        %467 = vrot.lane.b32.xlu0 %v352, 4
        %v468 = vpop.permute.xlu0 %467
        %469 = vrot.lane.b32.xlu0 %v355, 4
        %v470 = vpop.permute.xlu0 %469
        %471 = vrot.lane.b32.xlu0 %v357, 4
        %v472 = vpop.permute.xlu0 %471
        %473 = vrot.lane.b32.xlu0 %v360, 4
        %v474 = vpop.permute.xlu0 %473
        %475 = vrot.lane.b32.xlu0 %v362, 4
        %v476 = vpop.permute.xlu0 %475
        %477 = vrot.lane.b32.xlu0 %v365, 4
        %v478 = vpop.permute.xlu0 %477
        %479 = vrot.lane.b32.xlu0 %v367, 4
        %v480 = vpop.permute.xlu0 %479
        %481 = vrot.lane.b32.xlu0 %v370, 4
        %v482 = vpop.permute.xlu0 %481
        %483 = vrot.lane.b32.xlu0 %v372, 4
        %v484 = vpop.permute.xlu0 %483
        %485 = vrot.lane.b32.xlu0 %v375, 4
        %v486 = vpop.permute.xlu0 %485
        %487 = vrot.lane.b32.xlu0 %v377, 4
        %v488 = vpop.permute.xlu0 %487
        %489 = vrot.lane.b32.xlu0 %v380, 4
        %v490 = vpop.permute.xlu0 %489
        %491 = vrot.lane.b32.xlu0 %v382, 4
        %v492 = vpop.permute.xlu0 %491
        %493 = vrot.lane.b32.xlu0 %v385, 4
        %v494 = vpop.permute.xlu0 %493
        %495 = vrot.lane.b32.xlu0 %v387, 4
        %v496 = vpop.permute.xlu0 %495
        %497 = vrot.lane.b32.xlu0 %v390, 4
        %v498 = vpop.permute.xlu0 %497
        %499 = vrot.lane.b32.xlu0 %v392, 4
        %v500 = vpop.permute.xlu0 %499
        %501 = vrot.lane.b32.xlu0 %v395, 4
        %v502 = vpop.permute.xlu0 %501
        %503 = vrot.lane.b32.xlu0 %v397, 4
        %v504 = vpop.permute.xlu0 %503
        %505 = vrot.lane.b32.xlu0 %v400, 4
        %v506 = vpop.permute.xlu0 %505
        %507 = vrot.lane.b32.xlu0 %v402, 4
        %v508 = vpop.permute.xlu0 %507
        %541 = vrot.lane.b32.xlu0 %v223, 8
        %v542 = vpop.permute.xlu0 %541
        %543 = vrot.lane.b32.xlu0 %v224, 8
        %v544 = vpop.permute.xlu0 %543
        %545 = vrot.lane.b32.xlu0 %v226, 8
        %v546 = vpop.permute.xlu0 %545
        %547 = vrot.lane.b32.xlu0 %v227, 8
        %v548 = vpop.permute.xlu0 %547
        %549 = vrot.lane.b32.xlu0 %v229, 8
        %v550 = vpop.permute.xlu0 %549
        %551 = vrot.lane.b32.xlu0 %v230, 8
        %v552 = vpop.permute.xlu0 %551
        %553 = vrot.lane.b32.xlu0 %v232, 8
        %v554 = vpop.permute.xlu0 %553
        %555 = vrot.lane.b32.xlu0 %v233, 8
        %v556 = vpop.permute.xlu0 %555
        %557 = vrot.lane.b32.xlu0 %v235, 8
        %v558 = vpop.permute.xlu0 %557
        %559 = vrot.lane.b32.xlu0 %v236, 8
        %v560 = vpop.permute.xlu0 %559
        %561 = vrot.lane.b32.xlu0 %v238, 8
        %v562 = vpop.permute.xlu0 %561
        %563 = vrot.lane.b32.xlu0 %v239, 8
        %v564 = vpop.permute.xlu0 %563
        %565 = vrot.lane.b32.xlu0 %v241, 8
        %v566 = vpop.permute.xlu0 %565
        %567 = vrot.lane.b32.xlu0 %v242, 8
        %v568 = vpop.permute.xlu0 %567
        %569 = vrot.lane.b32.xlu0 %v244, 8
        %v570 = vpop.permute.xlu0 %569
        %571 = vrot.lane.b32.xlu0 %v245, 8
        %v572 = vpop.permute.xlu0 %571
        %573 = vrot.lane.b32.xlu0 %v247, 8
        %v574 = vpop.permute.xlu0 %573
        %575 = vrot.lane.b32.xlu0 %v248, 8
        %v576 = vpop.permute.xlu0 %575
        %577 = vrot.lane.b32.xlu0 %v250, 8
        %v578 = vpop.permute.xlu0 %577
        %579 = vrot.lane.b32.xlu0 %v251, 8
        %v580 = vpop.permute.xlu0 %579
        %581 = vrot.lane.b32.xlu0 %v253, 8
        %v582 = vpop.permute.xlu0 %581
        %583 = vrot.lane.b32.xlu0 %v254, 8
        %v584 = vpop.permute.xlu0 %583
        %585 = vrot.lane.b32.xlu0 %v256, 8
        %v586 = vpop.permute.xlu0 %585
        %587 = vrot.lane.b32.xlu0 %v257, 8
        %v588 = vpop.permute.xlu0 %587
        %589 = vrot.lane.b32.xlu0 %v259, 8
        %v590 = vpop.permute.xlu0 %589
        %591 = vrot.lane.b32.xlu0 %v260, 8
        %v592 = vpop.permute.xlu0 %591
        %593 = vrot.lane.b32.xlu0 %v262, 8
        %v594 = vpop.permute.xlu0 %593
        %595 = vrot.lane.b32.xlu0 %v263, 8
        %v596 = vpop.permute.xlu0 %595
        %597 = vrot.lane.b32.xlu0 %v265, 8
        %v598 = vpop.permute.xlu0 %597
        %599 = vrot.lane.b32.xlu0 %v266, 8
        %v600 = vpop.permute.xlu0 %599
        %601 = vrot.lane.b32.xlu0 %v268, 8
        %v602 = vpop.permute.xlu0 %601
        %603 = vrot.lane.b32.xlu0 %v269, 8
        %v604 = vpop.permute.xlu0 %603
        %637 = vrot.lane.b32.xlu0 %v330, 12
        %v638 = vpop.permute.xlu0 %637
        %639 = vrot.lane.b32.xlu0 %v332, 12
        %v640 = vpop.permute.xlu0 %639
        %641 = vrot.lane.b32.xlu0 %v335, 12
        %v642 = vpop.permute.xlu0 %641
        %643 = vrot.lane.b32.xlu0 %v337, 12
        %v644 = vpop.permute.xlu0 %643
        %645 = vrot.lane.b32.xlu0 %v340, 12
        %v646 = vpop.permute.xlu0 %645
        %647 = vrot.lane.b32.xlu0 %v342, 12
        %v648 = vpop.permute.xlu0 %647
        %649 = vrot.lane.b32.xlu0 %v345, 12
        %v650 = vpop.permute.xlu0 %649
        %651 = vrot.lane.b32.xlu0 %v347, 12
        %v652 = vpop.permute.xlu0 %651
        %653 = vrot.lane.b32.xlu0 %v350, 12
        %v654 = vpop.permute.xlu0 %653
        %655 = vrot.lane.b32.xlu0 %v352, 12
        %v656 = vpop.permute.xlu0 %655
        %657 = vrot.lane.b32.xlu0 %v355, 12
        %v658 = vpop.permute.xlu0 %657
        %659 = vrot.lane.b32.xlu0 %v357, 12
        %v660 = vpop.permute.xlu0 %659
        %661 = vrot.lane.b32.xlu0 %v360, 12
        %v662 = vpop.permute.xlu0 %661
        %663 = vrot.lane.b32.xlu0 %v362, 12
        %v664 = vpop.permute.xlu0 %663
        %665 = vrot.lane.b32.xlu0 %v365, 12
        %v666 = vpop.permute.xlu0 %665
        %667 = vrot.lane.b32.xlu0 %v367, 12
        %v668 = vpop.permute.xlu0 %667
        %669 = vrot.lane.b32.xlu0 %v370, 12
        %v670 = vpop.permute.xlu0 %669
        %671 = vrot.lane.b32.xlu0 %v372, 12
        %v672 = vpop.permute.xlu0 %671
        %673 = vrot.lane.b32.xlu0 %v375, 12
        %v674 = vpop.permute.xlu0 %673
        %675 = vrot.lane.b32.xlu0 %v377, 12
        %v676 = vpop.permute.xlu0 %675
        %677 = vrot.lane.b32.xlu0 %v380, 12
        %v678 = vpop.permute.xlu0 %677
        %679 = vrot.lane.b32.xlu0 %v382, 12
        %v680 = vpop.permute.xlu0 %679
        %681 = vrot.lane.b32.xlu0 %v385, 12
        %v682 = vpop.permute.xlu0 %681
        %683 = vrot.lane.b32.xlu0 %v387, 12
        %v684 = vpop.permute.xlu0 %683
        %685 = vrot.lane.b32.xlu0 %v390, 12
        %v686 = vpop.permute.xlu0 %685
        %687 = vrot.lane.b32.xlu0 %v392, 12
        %v688 = vpop.permute.xlu0 %687
        %689 = vrot.lane.b32.xlu0 %v395, 12
        %v690 = vpop.permute.xlu0 %689
        %691 = vrot.lane.b32.xlu0 %v397, 12
        %v692 = vpop.permute.xlu0 %691
        %693 = vrot.lane.b32.xlu0 %v400, 12
        %v694 = vpop.permute.xlu0 %693
        %695 = vrot.lane.b32.xlu0 %v402, 12
        %v696 = vpop.permute.xlu0 %695
        %697 = vrot.lane.b32.xlu0 %v440, 12
        %v698 = vpop.permute.xlu0 %697
        %699 = vrot.lane.b32.xlu0 %v442, 12
        %v700 = vpop.permute.xlu0 %699
        %vm733 = vcmask 31744
        %v734 = vsel %vm733, %v220, %v446
        %v735 = vsel %vm733, %v221, %v448
        %v736 = vsel %vm733, %v223, %v450
        %v737 = vsel %vm733, %v224, %v452
        %v738 = vsel %vm733, %v226, %v454
        %v739 = vsel %vm733, %v227, %v456
        %v740 = vsel %vm733, %v229, %v458
        %v741 = vsel %vm733, %v230, %v460
        %v742 = vsel %vm733, %v232, %v462
        %v743 = vsel %vm733, %v233, %v464
        %v744 = vsel %vm733, %v235, %v466
        %v745 = vsel %vm733, %v236, %v468
        %v746 = vsel %vm733, %v238, %v470
        %v747 = vsel %vm733, %v239, %v472
        %v748 = vsel %vm733, %v241, %v474
        %v749 = vsel %vm733, %v242, %v476
        %v750 = vsel %vm733, %v244, %v478
        %v751 = vsel %vm733, %v245, %v480
        %v752 = vsel %vm733, %v247, %v482
        %v753 = vsel %vm733, %v248, %v484
        %v754 = vsel %vm733, %v250, %v486
        %v755 = vsel %vm733, %v251, %v488
        %v756 = vsel %vm733, %v253, %v490
        %v757 = vsel %vm733, %v254, %v492
        %v758 = vsel %vm733, %v256, %v494
        %v759 = vsel %vm733, %v257, %v496
        %v760 = vsel %vm733, %v259, %v498
        %v761 = vsel %vm733, %v260, %v500
        %v762 = vsel %vm733, %v262, %v502
        %v763 = vsel %vm733, %v263, %v504
        %v764 = vsel %vm733, %v265, %v506
        %v765 = vsel %vm733, %v266, %v508
        %vm766 = vcmask 64512
        %v767 = vsel %vm766, %v734, %v542
        %v768 = vsel %vm766, %v735, %v544
        %v769 = vsel %vm766, %v736, %v546
        %v770 = vsel %vm766, %v737, %v548
        %v771 = vsel %vm766, %v738, %v550
        %v772 = vsel %vm766, %v739, %v552
        %v773 = vsel %vm766, %v740, %v554
        %v774 = vsel %vm766, %v741, %v556
        %v775 = vsel %vm766, %v742, %v558
        %v776 = vsel %vm766, %v743, %v560
        %v777 = vsel %vm766, %v744, %v562
        %v778 = vsel %vm766, %v745, %v564
        %v779 = vsel %vm766, %v746, %v566
        %v780 = vsel %vm766, %v747, %v568
        %v781 = vsel %vm766, %v748, %v570
        %v782 = vsel %vm766, %v749, %v572
        %v783 = vsel %vm766, %v750, %v574
        %v784 = vsel %vm766, %v751, %v576
        %v785 = vsel %vm766, %v752, %v578
        %v786 = vsel %vm766, %v753, %v580
        %v787 = vsel %vm766, %v754, %v582
        %v788 = vsel %vm766, %v755, %v584
        %v789 = vsel %vm766, %v756, %v586
        %v790 = vsel %vm766, %v757, %v588
        %v791 = vsel %vm766, %v758, %v590
        %v792 = vsel %vm766, %v759, %v592
        %v793 = vsel %vm766, %v760, %v594
        %v794 = vsel %vm766, %v761, %v596
        %v795 = vsel %vm766, %v762, %v598
        %v796 = vsel %vm766, %v763, %v600
        %v797 = vsel %vm766, %v764, %v602
        %v798 = vsel %vm766, %v765, %v604
        %vm799 = vcmask 97280
        %v800 = vsel %vm799, %v767, %v638
        %v801 = vsel %vm799, %v768, %v640
        %v802 = vsel %vm799, %v769, %v642
        %v803 = vsel %vm799, %v770, %v644
        %v804 = vsel %vm799, %v771, %v646
        %v805 = vsel %vm799, %v772, %v648
        %v806 = vsel %vm799, %v773, %v650
        %v807 = vsel %vm799, %v774, %v652
        %v808 = vsel %vm799, %v775, %v654
        %v809 = vsel %vm799, %v776, %v656
        %v810 = vsel %vm799, %v777, %v658
        %v811 = vsel %vm799, %v778, %v660
        %v812 = vsel %vm799, %v779, %v662
        %v813 = vsel %vm799, %v780, %v664
        %v814 = vsel %vm799, %v781, %v666
        %v815 = vsel %vm799, %v782, %v668
        %v816 = vsel %vm799, %v783, %v670
        %v817 = vsel %vm799, %v784, %v672
        %v818 = vsel %vm799, %v785, %v674
        %v819 = vsel %vm799, %v786, %v676
        %v820 = vsel %vm799, %v787, %v678
        %v821 = vsel %vm799, %v788, %v680
        %v822 = vsel %vm799, %v789, %v682
        %v823 = vsel %vm799, %v790, %v684
        %v824 = vsel %vm799, %v791, %v686
        %v825 = vsel %vm799, %v792, %v688
        %v826 = vsel %vm799, %v793, %v690
        %v827 = vsel %vm799, %v794, %v692
        %v828 = vsel %vm799, %v795, %v694
        %v829 = vsel %vm799, %v796, %v696
        %v830 = vsel %vm799, %v797, %v698
        %v831 = vsel %vm799, %v798, %v700
        %v832 = vld [vmem:[%s1] sm:$0xff]
        %v833 = vld [vmem:[%s1 + $0x8] sm:$0xff]
        %vm834 = vcmask 130048
        %v836 = vsel %vm834, %v800, 0
        %v839 = vsel %vm834, %v801, 0
        %v842 = vsel %vm834, %v802, 0
        %v845 = vsel %vm834, %v803, 0
        %v848 = vsel %vm834, %v804, 0
        %v851 = vsel %vm834, %v805, 0
        %v854 = vsel %vm834, %v806, 0
        %v857 = vsel %vm834, %v807, 0
        %v860 = vsel %vm834, %v808, 0
        %v863 = vsel %vm834, %v809, 0
        %v866 = vsel %vm834, %v810, 0
        %v869 = vsel %vm834, %v811, 0
        %v872 = vsel %vm834, %v812, 0
        %v875 = vsel %vm834, %v813, 0
        %v878 = vsel %vm834, %v814, 0
        %v881 = vsel %vm834, %v815, 0
        %v884 = vsel %vm834, %v816, 0
        %v887 = vsel %vm834, %v817, 0
        %v890 = vsel %vm834, %v818, 0
        %v893 = vsel %vm834, %v819, 0
        %v896 = vsel %vm834, %v820, 0
        %v899 = vsel %vm834, %v821, 0
        %v902 = vsel %vm834, %v822, 0
        %v905 = vsel %vm834, %v823, 0
        %v908 = vsel %vm834, %v824, 0
        %v911 = vsel %vm834, %v825, 0
        %v914 = vsel %vm834, %v826, 0
        %v917 = vsel %vm834, %v827, 0
        %v920 = vsel %vm834, %v828, 0
        %v923 = vsel %vm834, %v829, 0
        %v926 = vsel %vm834, %v830, 0
        %v929 = vsel %vm834, %v831, 0
        %931 = vmatprep.subr.mxu0 0.0
        %932 = vmatpush1.msra.mxu0 %v832
        %933 = vmatprep.subr.mxu0 0.0
        %934 = vmatpush1.msra.mxu0 %v833
        %935 = vmatprep.subr.mxu0 0.0
        %936 = vmatpush1.msra.mxu0 0.0
        %937 = vmatprep.subr.mxu0 0.0
        %938 = vmatpush1.msra.mxu0 0.0
        %939 = vmatprep.subr.mxu0 0.0
        %940 = vmatpush1.msra.mxu0 0.0
        %941 = vmatprep.subr.mxu0 0.0
        %942 = vmatpush1.msra.mxu0 0.0
        %943 = vmatprep.subr.mxu0 0.0
        %944 = vmatpush1.msra.mxu0 0.0
        %945 = vmatprep.subr.mxu0 0.0
        %946 = vmatpush1.msra.mxu0 0.0
        %947 = vmatprep.subr.mxu0 0.0
        %948 = vmatpush1.msra.mxu0 0.0
        %949 = vmatprep.subr.mxu0 0.0
        %950 = vmatpush1.msra.mxu0 0.0
        %951 = vmatprep.subr.mxu0 0.0
        %952 = vmatpush1.msra.mxu0 0.0
        %953 = vmatprep.subr.mxu0 0.0
        %954 = vmatpush1.msra.mxu0 0.0
        %955 = vmatprep.subr.mxu0 0.0
        %956 = vmatpush1.msra.mxu0 0.0
        %957 = vmatprep.subr.mxu0 0.0
        %958 = vmatpush1.msra.mxu0 0.0
        %959 = vmatprep.subr.mxu0 0.0
        %960 = vmatpush1.msra.mxu0 0.0
        %961 = vmatprep.subr.mxu0 0.0
        %962 = vmatpush1.msra.mxu0 0.0
        %963 = vmatprep.subr.mxu0 0.0
        %964 = vmatpush1.msra.mxu0 0.0
        %965 = vmatprep.subr.mxu0 0.0
        %966 = vmatpush1.msra.mxu0 0.0
        %967 = vmatprep.subr.mxu0 0.0
        %968 = vmatpush1.msra.mxu0 0.0
        %969 = vmatprep.subr.mxu0 0.0
        %970 = vmatpush1.msra.mxu0 0.0
        %971 = vmatprep.subr.mxu0 0.0
        %972 = vmatpush1.msra.mxu0 0.0
        %973 = vmatprep.subr.mxu0 0.0
        %974 = vmatpush1.msra.mxu0 0.0
        %975 = vmatprep.subr.mxu0 0.0
        %976 = vmatpush1.msra.mxu0 0.0
        %977 = vmatprep.subr.mxu0 0.0
        %978 = vmatpush1.msra.mxu0 0.0
        %979 = vmatprep.subr.mxu0 0.0
        %980 = vmatpush1.msra.mxu0 0.0
        %981 = vmatprep.subr.mxu0 0.0
        %982 = vmatpush1.msra.mxu0 0.0
        %983 = vmatprep.subr.mxu0 0.0
        %984 = vmatpush1.msra.mxu0 0.0
        %985 = vmatprep.subr.mxu0 0.0
        %986 = vmatpush1.msra.mxu0 0.0
        %987 = vmatprep.subr.mxu0 0.0
        %988 = vmatpush1.msra.mxu0 0.0
        %989 = vmatprep.subr.mxu0 0.0
        %990 = vmatpush1.msra.mxu0 0.0
        %991 = vmatprep.subr.mxu0 0.0
        %992 = vmatpush1.msra.mxu0 0.0
        %993 = vmatprep.subr.mxu0 0.0
        %994 = vmatpush1.msra.mxu0 0.0
        %995 = vmatprep.mubr.f32.mxu0 0.0
        %996 = vmatmul.mubr.f32.gmra.mrb[0].mxu0 %v836
        %v997 = vpop.f32.mrb[0].mxu0
        %v998 = vadd.f32 0.0, %v997
        %v999 = vpop.f32.mrb[0].mxu0
        %1000 = vmatprep.mubr.f32.mxu0 0.0
        %1001 = vmatmul.mubr.f32.gmra.mrb[0].mxu0 %v839
        %v1002 = vpop.f32.mrb[0].mxu0
        %v1003 = vadd.f32 0.0, %v1002
        %v1004 = vpop.f32.mrb[0].mxu0
        %1005 = vmatprep.mubr.f32.mxu0 0.0
        %1006 = vmatmul.mubr.f32.gmra.mrb[0].mxu0 %v842
        %v1007 = vpop.f32.mrb[0].mxu0
        %v1008 = vadd.f32 0.0, %v1007
        %v1009 = vpop.f32.mrb[0].mxu0
        %1010 = vmatprep.mubr.f32.mxu0 0.0
        %1011 = vmatmul.mubr.f32.gmra.mrb[0].mxu0 %v845
        %v1012 = vpop.f32.mrb[0].mxu0
        %v1013 = vadd.f32 0.0, %v1012
        %v1014 = vpop.f32.mrb[0].mxu0
        %1015 = vmatprep.mubr.f32.mxu0 0.0
        %1016 = vmatmul.mubr.f32.gmra.mrb[0].mxu0 %v848
        %v1017 = vpop.f32.mrb[0].mxu0
        %v1018 = vadd.f32 0.0, %v1017
        %v1019 = vpop.f32.mrb[0].mxu0
        %1020 = vmatprep.mubr.f32.mxu0 0.0
        %1021 = vmatmul.mubr.f32.gmra.mrb[0].mxu0 %v851
        %v1022 = vpop.f32.mrb[0].mxu0
        %v1023 = vadd.f32 0.0, %v1022
        %v1024 = vpop.f32.mrb[0].mxu0
        %1025 = vmatprep.mubr.f32.mxu0 0.0
        %1026 = vmatmul.mubr.f32.gmra.mrb[0].mxu0 %v854
        %v1027 = vpop.f32.mrb[0].mxu0
        %v1028 = vadd.f32 0.0, %v1027
        %v1029 = vpop.f32.mrb[0].mxu0
        %1030 = vmatprep.mubr.f32.mxu0 0.0
        %1031 = vmatmul.mubr.f32.gmra.mrb[0].mxu0 %v857
        %v1032 = vpop.f32.mrb[0].mxu0
        %v1033 = vadd.f32 0.0, %v1032
        %v1034 = vpop.f32.mrb[0].mxu0
        %1035 = vmatprep.mubr.f32.mxu0 0.0
        %1036 = vmatmul.mubr.f32.gmra.mrb[0].mxu0 %v860
        %v1037 = vpop.f32.mrb[0].mxu0
        %v1038 = vadd.f32 0.0, %v1037
        %v1039 = vpop.f32.mrb[0].mxu0
        %1040 = vmatprep.mubr.f32.mxu0 0.0
        %1041 = vmatmul.mubr.f32.gmra.mrb[0].mxu0 %v863
        %v1042 = vpop.f32.mrb[0].mxu0
        %v1043 = vadd.f32 0.0, %v1042
        %v1044 = vpop.f32.mrb[0].mxu0
        %1045 = vmatprep.mubr.f32.mxu0 0.0
        %1046 = vmatmul.mubr.f32.gmra.mrb[0].mxu0 %v866
        %v1047 = vpop.f32.mrb[0].mxu0
        %v1048 = vadd.f32 0.0, %v1047
        %v1049 = vpop.f32.mrb[0].mxu0
        %1050 = vmatprep.mubr.f32.mxu0 0.0
        %1051 = vmatmul.mubr.f32.gmra.mrb[0].mxu0 %v869
        %v1052 = vpop.f32.mrb[0].mxu0
        %v1053 = vadd.f32 0.0, %v1052
        %v1054 = vpop.f32.mrb[0].mxu0
        %1055 = vmatprep.mubr.f32.mxu0 0.0
        %1056 = vmatmul.mubr.f32.gmra.mrb[0].mxu0 %v872
        %v1057 = vpop.f32.mrb[0].mxu0
        %v1058 = vadd.f32 0.0, %v1057
        %v1059 = vpop.f32.mrb[0].mxu0
        %1060 = vmatprep.mubr.f32.mxu0 0.0
        %1061 = vmatmul.mubr.f32.gmra.mrb[0].mxu0 %v875
        %v1062 = vpop.f32.mrb[0].mxu0
        %v1063 = vadd.f32 0.0, %v1062
        %v1064 = vpop.f32.mrb[0].mxu0
        %1065 = vmatprep.mubr.f32.mxu0 0.0
        %1066 = vmatmul.mubr.f32.gmra.mrb[0].mxu0 %v878
        %v1067 = vpop.f32.mrb[0].mxu0
        %v1068 = vadd.f32 0.0, %v1067
        %v1069 = vpop.f32.mrb[0].mxu0
        %1070 = vmatprep.mubr.f32.mxu0 0.0
        %1071 = vmatmul.mubr.f32.gmra.mrb[0].mxu0 %v881
        %v1072 = vpop.f32.mrb[0].mxu0
        %v1073 = vadd.f32 0.0, %v1072
        %v1074 = vpop.f32.mrb[0].mxu0
        %1075 = vmatprep.mubr.f32.mxu0 0.0
        %1076 = vmatmul.mubr.f32.gmra.mrb[0].mxu0 %v884
        %v1077 = vpop.f32.mrb[0].mxu0
        %v1078 = vadd.f32 0.0, %v1077
        %v1079 = vpop.f32.mrb[0].mxu0
        %1080 = vmatprep.mubr.f32.mxu0 0.0
        %1081 = vmatmul.mubr.f32.gmra.mrb[0].mxu0 %v887
        %v1082 = vpop.f32.mrb[0].mxu0
        %v1083 = vadd.f32 0.0, %v1082
        %v1084 = vpop.f32.mrb[0].mxu0
        %1085 = vmatprep.mubr.f32.mxu0 0.0
        %1086 = vmatmul.mubr.f32.gmra.mrb[0].mxu0 %v890
        %v1087 = vpop.f32.mrb[0].mxu0
        %v1088 = vadd.f32 0.0, %v1087
        %v1089 = vpop.f32.mrb[0].mxu0
        %1090 = vmatprep.mubr.f32.mxu0 0.0
        %1091 = vmatmul.mubr.f32.gmra.mrb[0].mxu0 %v893
        %v1092 = vpop.f32.mrb[0].mxu0
        %v1093 = vadd.f32 0.0, %v1092
        %v1094 = vpop.f32.mrb[0].mxu0
        %1095 = vmatprep.mubr.f32.mxu0 0.0
        %1096 = vmatmul.mubr.f32.gmra.mrb[0].mxu0 %v896
        %v1097 = vpop.f32.mrb[0].mxu0
        %v1098 = vadd.f32 0.0, %v1097
        %v1099 = vpop.f32.mrb[0].mxu0
        %1100 = vmatprep.mubr.f32.mxu0 0.0
        %1101 = vmatmul.mubr.f32.gmra.mrb[0].mxu0 %v899
        %v1102 = vpop.f32.mrb[0].mxu0
        %v1103 = vadd.f32 0.0, %v1102
        %v1104 = vpop.f32.mrb[0].mxu0
        %1105 = vmatprep.mubr.f32.mxu0 0.0
        %1106 = vmatmul.mubr.f32.gmra.mrb[0].mxu0 %v902
        %v1107 = vpop.f32.mrb[0].mxu0
        %v1108 = vadd.f32 0.0, %v1107
        %v1109 = vpop.f32.mrb[0].mxu0
        %1110 = vmatprep.mubr.f32.mxu0 0.0
        %1111 = vmatmul.mubr.f32.gmra.mrb[0].mxu0 %v905
        %v1112 = vpop.f32.mrb[0].mxu0
        %v1113 = vadd.f32 0.0, %v1112
        %v1114 = vpop.f32.mrb[0].mxu0
        %1115 = vmatprep.mubr.f32.mxu0 0.0
        %1116 = vmatmul.mubr.f32.gmra.mrb[0].mxu0 %v908
        %v1117 = vpop.f32.mrb[0].mxu0
        %v1118 = vadd.f32 0.0, %v1117
        %v1119 = vpop.f32.mrb[0].mxu0
        %1120 = vmatprep.mubr.f32.mxu0 0.0
        %1121 = vmatmul.mubr.f32.gmra.mrb[0].mxu0 %v911
        %v1122 = vpop.f32.mrb[0].mxu0
        %v1123 = vadd.f32 0.0, %v1122
        %v1124 = vpop.f32.mrb[0].mxu0
        %1125 = vmatprep.mubr.f32.mxu0 0.0
        %1126 = vmatmul.mubr.f32.gmra.mrb[0].mxu0 %v914
        %v1127 = vpop.f32.mrb[0].mxu0
        %v1128 = vadd.f32 0.0, %v1127
        %v1129 = vpop.f32.mrb[0].mxu0
        %1130 = vmatprep.mubr.f32.mxu0 0.0
        %1131 = vmatmul.mubr.f32.gmra.mrb[0].mxu0 %v917
        %v1132 = vpop.f32.mrb[0].mxu0
        %v1133 = vadd.f32 0.0, %v1132
        %v1134 = vpop.f32.mrb[0].mxu0
        %1135 = vmatprep.mubr.f32.mxu0 0.0
        %1136 = vmatmul.mubr.f32.gmra.mrb[0].mxu0 %v920
        %v1137 = vpop.f32.mrb[0].mxu0
        %v1138 = vadd.f32 0.0, %v1137
        %v1139 = vpop.f32.mrb[0].mxu0
        %1140 = vmatprep.mubr.f32.mxu0 0.0
        %1141 = vmatmul.mubr.f32.gmra.mrb[0].mxu0 %v923
        %v1142 = vpop.f32.mrb[0].mxu0
        %v1143 = vadd.f32 0.0, %v1142
        %v1144 = vpop.f32.mrb[0].mxu0
        %1145 = vmatprep.mubr.f32.mxu0 0.0
        %1146 = vmatmul.mubr.f32.gmra.mrb[0].mxu0 %v926
        %v1147 = vpop.f32.mrb[0].mxu0
        %v1148 = vadd.f32 0.0, %v1147
        %v1149 = vpop.f32.mrb[0].mxu0
        %1150 = vmatprep.mubr.f32.mxu0 0.0
        %1151 = vmatmul.mubr.f32.gmra.mrb[0].mxu0 %v929
        %v1152 = vpop.f32.mrb[0].mxu0
        %v1153 = vadd.f32 0.0, %v1152
        %v1154 = vpop.f32.mrb[0].mxu0
        %1155 = vdwg.mxu0
        %vm1156 = vcmask 1045504
        %v1157 = vrot.slane %v220, 2
        %v1158 = vrot.slane %v221, 2
        %v1159 = vsel %vm1156, %v1157, %v1158
        %v1160 = vrot.slane %v222, 2
        %v1161 = vsel %vm1156, %v1158, %v1160
        %v1162 = vrot.slane %v223, 2
        %v1163 = vrot.slane %v224, 2
        %v1164 = vsel %vm1156, %v1162, %v1163
        %v1165 = vrot.slane %v225, 2
        %v1166 = vsel %vm1156, %v1163, %v1165
        %v1167 = vrot.slane %v226, 2
        %v1168 = vrot.slane %v227, 2
        %v1169 = vsel %vm1156, %v1167, %v1168
        %v1170 = vrot.slane %v228, 2
        %v1171 = vsel %vm1156, %v1168, %v1170
        %v1172 = vrot.slane %v229, 2
        %v1173 = vrot.slane %v230, 2
        %v1174 = vsel %vm1156, %v1172, %v1173
        %v1175 = vrot.slane %v231, 2
        %v1176 = vsel %vm1156, %v1173, %v1175
        %v1177 = vrot.slane %v232, 2
        %v1178 = vrot.slane %v233, 2
        %v1179 = vsel %vm1156, %v1177, %v1178
        %v1180 = vrot.slane %v234, 2
        %v1181 = vsel %vm1156, %v1178, %v1180
        %v1182 = vrot.slane %v235, 2
        %v1183 = vrot.slane %v236, 2
        %v1184 = vsel %vm1156, %v1182, %v1183
        %v1185 = vrot.slane %v237, 2
        %v1186 = vsel %vm1156, %v1183, %v1185
        %v1187 = vrot.slane %v238, 2
        %v1188 = vrot.slane %v239, 2
        %v1189 = vsel %vm1156, %v1187, %v1188
        %v1190 = vrot.slane %v240, 2
        %v1191 = vsel %vm1156, %v1188, %v1190
        %v1192 = vrot.slane %v241, 2
        %v1193 = vrot.slane %v242, 2
        %v1194 = vsel %vm1156, %v1192, %v1193
        %v1195 = vrot.slane %v243, 2
        %v1196 = vsel %vm1156, %v1193, %v1195
        %v1197 = vrot.slane %v244, 2
        %v1198 = vrot.slane %v245, 2
        %v1199 = vsel %vm1156, %v1197, %v1198
        %v1200 = vrot.slane %v246, 2
        %v1201 = vsel %vm1156, %v1198, %v1200
        %v1202 = vrot.slane %v247, 2
        %v1203 = vrot.slane %v248, 2
        %v1204 = vsel %vm1156, %v1202, %v1203
        %v1205 = vrot.slane %v249, 2
        %v1206 = vsel %vm1156, %v1203, %v1205
        %v1207 = vrot.slane %v250, 2
        %v1208 = vrot.slane %v251, 2
        %v1209 = vsel %vm1156, %v1207, %v1208
        %v1210 = vrot.slane %v252, 2
        %v1211 = vsel %vm1156, %v1208, %v1210
        %v1212 = vrot.slane %v253, 2
        %v1213 = vrot.slane %v254, 2
        %v1214 = vsel %vm1156, %v1212, %v1213
        %v1215 = vrot.slane %v255, 2
        %v1216 = vsel %vm1156, %v1213, %v1215
        %v1217 = vrot.slane %v256, 2
        %v1218 = vrot.slane %v257, 2
        %v1219 = vsel %vm1156, %v1217, %v1218
        %v1220 = vrot.slane %v258, 2
        %v1221 = vsel %vm1156, %v1218, %v1220
        %v1222 = vrot.slane %v259, 2
        %v1223 = vrot.slane %v260, 2
        %v1224 = vsel %vm1156, %v1222, %v1223
        %v1225 = vrot.slane %v261, 2
        %v1226 = vsel %vm1156, %v1223, %v1225
        %v1227 = vrot.slane %v262, 2
        %v1228 = vrot.slane %v263, 2
        %v1229 = vsel %vm1156, %v1227, %v1228
        %v1230 = vrot.slane %v264, 2
        %v1231 = vsel %vm1156, %v1228, %v1230
        %v1232 = vrot.slane %v265, 2
        %v1233 = vrot.slane %v266, 2
        %v1234 = vsel %vm1156, %v1232, %v1233
        %v1235 = vrot.slane %v267, 2
        %v1236 = vsel %vm1156, %v1233, %v1235
        %v1237 = vrot.slane %v268, 2
        %v1238 = vrot.slane %v269, 2
        %v1239 = vsel %vm1156, %v1237, %v1238
        %v1240 = vrot.slane %v270, 2
        %v1241 = vsel %vm1156, %v1238, %v1240
        %1242 = vrot.lane.b32.xlu0 %v1159, 4
        %v1243 = vpop.permute.xlu0 %1242
        %1244 = vrot.lane.b32.xlu0 %v1161, 4
        %v1245 = vpop.permute.xlu0 %1244
        %1246 = vrot.lane.b32.xlu0 %v1164, 4
        %v1247 = vpop.permute.xlu0 %1246
        %1248 = vrot.lane.b32.xlu0 %v1166, 4
        %v1249 = vpop.permute.xlu0 %1248
        %1250 = vrot.lane.b32.xlu0 %v1169, 4
        %v1251 = vpop.permute.xlu0 %1250
        %1252 = vrot.lane.b32.xlu0 %v1171, 4
        %v1253 = vpop.permute.xlu0 %1252
        %1254 = vrot.lane.b32.xlu0 %v1174, 4
        %v1255 = vpop.permute.xlu0 %1254
        %1256 = vrot.lane.b32.xlu0 %v1176, 4
        %v1257 = vpop.permute.xlu0 %1256
        %1258 = vrot.lane.b32.xlu0 %v1179, 4
        %v1259 = vpop.permute.xlu0 %1258
        %1260 = vrot.lane.b32.xlu0 %v1181, 4
        %v1261 = vpop.permute.xlu0 %1260
        %1262 = vrot.lane.b32.xlu0 %v1184, 4
        %v1263 = vpop.permute.xlu0 %1262
        %1264 = vrot.lane.b32.xlu0 %v1186, 4
        %v1265 = vpop.permute.xlu0 %1264
        %1266 = vrot.lane.b32.xlu0 %v1189, 4
        %v1267 = vpop.permute.xlu0 %1266
        %1268 = vrot.lane.b32.xlu0 %v1191, 4
        %v1269 = vpop.permute.xlu0 %1268
        %1270 = vrot.lane.b32.xlu0 %v1194, 4
        %v1271 = vpop.permute.xlu0 %1270
        %1272 = vrot.lane.b32.xlu0 %v1196, 4
        %v1273 = vpop.permute.xlu0 %1272
        %1274 = vrot.lane.b32.xlu0 %v1199, 4
        %v1275 = vpop.permute.xlu0 %1274
        %1276 = vrot.lane.b32.xlu0 %v1201, 4
        %v1277 = vpop.permute.xlu0 %1276
        %1278 = vrot.lane.b32.xlu0 %v1204, 4
        %v1279 = vpop.permute.xlu0 %1278
        %1280 = vrot.lane.b32.xlu0 %v1206, 4
        %v1281 = vpop.permute.xlu0 %1280
        %1282 = vrot.lane.b32.xlu0 %v1209, 4
        %v1283 = vpop.permute.xlu0 %1282
        %1284 = vrot.lane.b32.xlu0 %v1211, 4
        %v1285 = vpop.permute.xlu0 %1284
        %1286 = vrot.lane.b32.xlu0 %v1214, 4
        %v1287 = vpop.permute.xlu0 %1286
        %1288 = vrot.lane.b32.xlu0 %v1216, 4
        %v1289 = vpop.permute.xlu0 %1288
        %1290 = vrot.lane.b32.xlu0 %v1219, 4
        %v1291 = vpop.permute.xlu0 %1290
        %1292 = vrot.lane.b32.xlu0 %v1221, 4
        %v1293 = vpop.permute.xlu0 %1292
        %1294 = vrot.lane.b32.xlu0 %v1224, 4
        %v1295 = vpop.permute.xlu0 %1294
        %1296 = vrot.lane.b32.xlu0 %v1226, 4
        %v1297 = vpop.permute.xlu0 %1296
        %1298 = vrot.lane.b32.xlu0 %v1229, 4
        %v1299 = vpop.permute.xlu0 %1298
        %1300 = vrot.lane.b32.xlu0 %v1231, 4
        %v1301 = vpop.permute.xlu0 %1300
        %1302 = vrot.lane.b32.xlu0 %v1234, 4
        %v1303 = vpop.permute.xlu0 %1302
        %1304 = vrot.lane.b32.xlu0 %v1236, 4
        %v1305 = vpop.permute.xlu0 %1304
        %1338 = vrot.lane.b32.xlu0 %v330, 8
        %v1339 = vpop.permute.xlu0 %1338
        %1340 = vrot.lane.b32.xlu0 %v332, 8
        %v1341 = vpop.permute.xlu0 %1340
        %1342 = vrot.lane.b32.xlu0 %v335, 8
        %v1343 = vpop.permute.xlu0 %1342
        %1344 = vrot.lane.b32.xlu0 %v337, 8
        %v1345 = vpop.permute.xlu0 %1344
        %1346 = vrot.lane.b32.xlu0 %v340, 8
        %v1347 = vpop.permute.xlu0 %1346
        %1348 = vrot.lane.b32.xlu0 %v342, 8
        %v1349 = vpop.permute.xlu0 %1348
        %1350 = vrot.lane.b32.xlu0 %v345, 8
        %v1351 = vpop.permute.xlu0 %1350
        %1352 = vrot.lane.b32.xlu0 %v347, 8
        %v1353 = vpop.permute.xlu0 %1352
        %1354 = vrot.lane.b32.xlu0 %v350, 8
        %v1355 = vpop.permute.xlu0 %1354
        %1356 = vrot.lane.b32.xlu0 %v352, 8
        %v1357 = vpop.permute.xlu0 %1356
        %1358 = vrot.lane.b32.xlu0 %v355, 8
        %v1359 = vpop.permute.xlu0 %1358
        %1360 = vrot.lane.b32.xlu0 %v357, 8
        %v1361 = vpop.permute.xlu0 %1360
        %1362 = vrot.lane.b32.xlu0 %v360, 8
        %v1363 = vpop.permute.xlu0 %1362
        %1364 = vrot.lane.b32.xlu0 %v362, 8
        %v1365 = vpop.permute.xlu0 %1364
        %1366 = vrot.lane.b32.xlu0 %v365, 8
        %v1367 = vpop.permute.xlu0 %1366
        %1368 = vrot.lane.b32.xlu0 %v367, 8
        %v1369 = vpop.permute.xlu0 %1368
        %1370 = vrot.lane.b32.xlu0 %v370, 8
        %v1371 = vpop.permute.xlu0 %1370
        %1372 = vrot.lane.b32.xlu0 %v372, 8
        %v1373 = vpop.permute.xlu0 %1372
        %1374 = vrot.lane.b32.xlu0 %v375, 8
        %v1375 = vpop.permute.xlu0 %1374
        %1376 = vrot.lane.b32.xlu0 %v377, 8
        %v1377 = vpop.permute.xlu0 %1376
        %1378 = vrot.lane.b32.xlu0 %v380, 8
        %v1379 = vpop.permute.xlu0 %1378
        %1380 = vrot.lane.b32.xlu0 %v382, 8
        %v1381 = vpop.permute.xlu0 %1380
        %1382 = vrot.lane.b32.xlu0 %v385, 8
        %v1383 = vpop.permute.xlu0 %1382
        %1384 = vrot.lane.b32.xlu0 %v387, 8
        %v1385 = vpop.permute.xlu0 %1384
        %1386 = vrot.lane.b32.xlu0 %v390, 8
        %v1387 = vpop.permute.xlu0 %1386
        %1388 = vrot.lane.b32.xlu0 %v392, 8
        %v1389 = vpop.permute.xlu0 %1388
        %1390 = vrot.lane.b32.xlu0 %v395, 8
        %v1391 = vpop.permute.xlu0 %1390
        %1392 = vrot.lane.b32.xlu0 %v397, 8
        %v1393 = vpop.permute.xlu0 %1392
        %1394 = vrot.lane.b32.xlu0 %v400, 8
        %v1395 = vpop.permute.xlu0 %1394
        %1396 = vrot.lane.b32.xlu0 %v402, 8
        %v1397 = vpop.permute.xlu0 %1396
        %1398 = vrot.lane.b32.xlu0 %v440, 8
        %v1399 = vpop.permute.xlu0 %1398
        %1400 = vrot.lane.b32.xlu0 %v442, 8
        %v1401 = vpop.permute.xlu0 %1400
        %1434 = vrot.lane.b32.xlu0 %v1164, 12
        %v1435 = vpop.permute.xlu0 %1434
        %1436 = vrot.lane.b32.xlu0 %v1166, 12
        %v1437 = vpop.permute.xlu0 %1436
        %1438 = vrot.lane.b32.xlu0 %v1169, 12
        %v1439 = vpop.permute.xlu0 %1438
        %1440 = vrot.lane.b32.xlu0 %v1171, 12
        %v1441 = vpop.permute.xlu0 %1440
        %1442 = vrot.lane.b32.xlu0 %v1174, 12
        %v1443 = vpop.permute.xlu0 %1442
        %1444 = vrot.lane.b32.xlu0 %v1176, 12
        %v1445 = vpop.permute.xlu0 %1444
        %1446 = vrot.lane.b32.xlu0 %v1179, 12
        %v1447 = vpop.permute.xlu0 %1446
        %1448 = vrot.lane.b32.xlu0 %v1181, 12
        %v1449 = vpop.permute.xlu0 %1448
        %1450 = vrot.lane.b32.xlu0 %v1184, 12
        %v1451 = vpop.permute.xlu0 %1450
        %1452 = vrot.lane.b32.xlu0 %v1186, 12
        %v1453 = vpop.permute.xlu0 %1452
        %1454 = vrot.lane.b32.xlu0 %v1189, 12
        %v1455 = vpop.permute.xlu0 %1454
        %1456 = vrot.lane.b32.xlu0 %v1191, 12
        %v1457 = vpop.permute.xlu0 %1456
        %1458 = vrot.lane.b32.xlu0 %v1194, 12
        %v1459 = vpop.permute.xlu0 %1458
        %1460 = vrot.lane.b32.xlu0 %v1196, 12
        %v1461 = vpop.permute.xlu0 %1460
        %1462 = vrot.lane.b32.xlu0 %v1199, 12
        %v1463 = vpop.permute.xlu0 %1462
        %1464 = vrot.lane.b32.xlu0 %v1201, 12
        %v1465 = vpop.permute.xlu0 %1464
        %1466 = vrot.lane.b32.xlu0 %v1204, 12
        %v1467 = vpop.permute.xlu0 %1466
        %1468 = vrot.lane.b32.xlu0 %v1206, 12
        %v1469 = vpop.permute.xlu0 %1468
        %1470 = vrot.lane.b32.xlu0 %v1209, 12
        %v1471 = vpop.permute.xlu0 %1470
        %1472 = vrot.lane.b32.xlu0 %v1211, 12
        %v1473 = vpop.permute.xlu0 %1472
        %1474 = vrot.lane.b32.xlu0 %v1214, 12
        %v1475 = vpop.permute.xlu0 %1474
        %1476 = vrot.lane.b32.xlu0 %v1216, 12
        %v1477 = vpop.permute.xlu0 %1476
        %1478 = vrot.lane.b32.xlu0 %v1219, 12
        %v1479 = vpop.permute.xlu0 %1478
        %1480 = vrot.lane.b32.xlu0 %v1221, 12
        %v1481 = vpop.permute.xlu0 %1480
        %1482 = vrot.lane.b32.xlu0 %v1224, 12
        %v1483 = vpop.permute.xlu0 %1482
        %1484 = vrot.lane.b32.xlu0 %v1226, 12
        %v1485 = vpop.permute.xlu0 %1484
        %1486 = vrot.lane.b32.xlu0 %v1229, 12
        %v1487 = vpop.permute.xlu0 %1486
        %1488 = vrot.lane.b32.xlu0 %v1231, 12
        %v1489 = vpop.permute.xlu0 %1488
        %1490 = vrot.lane.b32.xlu0 %v1234, 12
        %v1491 = vpop.permute.xlu0 %1490
        %1492 = vrot.lane.b32.xlu0 %v1236, 12
        %v1493 = vpop.permute.xlu0 %1492
        %1494 = vrot.lane.b32.xlu0 %v1239, 12
        %v1495 = vpop.permute.xlu0 %1494
        %1496 = vrot.lane.b32.xlu0 %v1241, 12
        %v1497 = vpop.permute.xlu0 %1496
        %v1530 = vsel %vm733, %v325, %v1243
        %v1531 = vsel %vm733, %v327, %v1245
        %v1532 = vsel %vm733, %v330, %v1247
        %v1533 = vsel %vm733, %v332, %v1249
        %v1534 = vsel %vm733, %v335, %v1251
        %v1535 = vsel %vm733, %v337, %v1253
        %v1536 = vsel %vm733, %v340, %v1255
        %v1537 = vsel %vm733, %v342, %v1257
        %v1538 = vsel %vm733, %v345, %v1259
        %v1539 = vsel %vm733, %v347, %v1261
        %v1540 = vsel %vm733, %v350, %v1263
        %v1541 = vsel %vm733, %v352, %v1265
        %v1542 = vsel %vm733, %v355, %v1267
        %v1543 = vsel %vm733, %v357, %v1269
        %v1544 = vsel %vm733, %v360, %v1271
        %v1545 = vsel %vm733, %v362, %v1273
        %v1546 = vsel %vm733, %v365, %v1275
        %v1547 = vsel %vm733, %v367, %v1277
        %v1548 = vsel %vm733, %v370, %v1279
        %v1549 = vsel %vm733, %v372, %v1281
        %v1550 = vsel %vm733, %v375, %v1283
        %v1551 = vsel %vm733, %v377, %v1285
        %v1552 = vsel %vm733, %v380, %v1287
        %v1553 = vsel %vm733, %v382, %v1289
        %v1554 = vsel %vm733, %v385, %v1291
        %v1555 = vsel %vm733, %v387, %v1293
        %v1556 = vsel %vm733, %v390, %v1295
        %v1557 = vsel %vm733, %v392, %v1297
        %v1558 = vsel %vm733, %v395, %v1299
        %v1559 = vsel %vm733, %v397, %v1301
        %v1560 = vsel %vm733, %v400, %v1303
        %v1561 = vsel %vm733, %v402, %v1305
        %v1562 = vsel %vm766, %v1530, %v1339
        %v1563 = vsel %vm766, %v1531, %v1341
        %v1564 = vsel %vm766, %v1532, %v1343
        %v1565 = vsel %vm766, %v1533, %v1345
        %v1566 = vsel %vm766, %v1534, %v1347
        %v1567 = vsel %vm766, %v1535, %v1349
        %v1568 = vsel %vm766, %v1536, %v1351
        %v1569 = vsel %vm766, %v1537, %v1353
        %v1570 = vsel %vm766, %v1538, %v1355
        %v1571 = vsel %vm766, %v1539, %v1357
        %v1572 = vsel %vm766, %v1540, %v1359
        %v1573 = vsel %vm766, %v1541, %v1361
        %v1574 = vsel %vm766, %v1542, %v1363
        %v1575 = vsel %vm766, %v1543, %v1365
        %v1576 = vsel %vm766, %v1544, %v1367
        %v1577 = vsel %vm766, %v1545, %v1369
        %v1578 = vsel %vm766, %v1546, %v1371
        %v1579 = vsel %vm766, %v1547, %v1373
        %v1580 = vsel %vm766, %v1548, %v1375
        %v1581 = vsel %vm766, %v1549, %v1377
        %v1582 = vsel %vm766, %v1550, %v1379
        %v1583 = vsel %vm766, %v1551, %v1381
        %v1584 = vsel %vm766, %v1552, %v1383
        %v1585 = vsel %vm766, %v1553, %v1385
        %v1586 = vsel %vm766, %v1554, %v1387
        %v1587 = vsel %vm766, %v1555, %v1389
        %v1588 = vsel %vm766, %v1556, %v1391
        %v1589 = vsel %vm766, %v1557, %v1393
        %v1590 = vsel %vm766, %v1558, %v1395
        %v1591 = vsel %vm766, %v1559, %v1397
        %v1592 = vsel %vm766, %v1560, %v1399
        %v1593 = vsel %vm766, %v1561, %v1401
        %v1594 = vsel %vm799, %v1562, %v1435
        %v1595 = vsel %vm799, %v1563, %v1437
        %v1596 = vsel %vm799, %v1564, %v1439
        %v1597 = vsel %vm799, %v1565, %v1441
        %v1598 = vsel %vm799, %v1566, %v1443
        %v1599 = vsel %vm799, %v1567, %v1445
        %v1600 = vsel %vm799, %v1568, %v1447
        %v1601 = vsel %vm799, %v1569, %v1449
        %v1602 = vsel %vm799, %v1570, %v1451
        %v1603 = vsel %vm799, %v1571, %v1453
        %v1604 = vsel %vm799, %v1572, %v1455
        %v1605 = vsel %vm799, %v1573, %v1457
        %v1606 = vsel %vm799, %v1574, %v1459
        %v1607 = vsel %vm799, %v1575, %v1461
        %v1608 = vsel %vm799, %v1576, %v1463
        %v1609 = vsel %vm799, %v1577, %v1465
        %v1610 = vsel %vm799, %v1578, %v1467
        %v1611 = vsel %vm799, %v1579, %v1469
        %v1612 = vsel %vm799, %v1580, %v1471
        %v1613 = vsel %vm799, %v1581, %v1473
        %v1614 = vsel %vm799, %v1582, %v1475
        %v1615 = vsel %vm799, %v1583, %v1477
        %v1616 = vsel %vm799, %v1584, %v1479
        %v1617 = vsel %vm799, %v1585, %v1481
        %v1618 = vsel %vm799, %v1586, %v1483
        %v1619 = vsel %vm799, %v1587, %v1485
        %v1620 = vsel %vm799, %v1588, %v1487
        %v1621 = vsel %vm799, %v1589, %v1489
        %v1622 = vsel %vm799, %v1590, %v1491
        %v1623 = vsel %vm799, %v1591, %v1493
        %v1624 = vsel %vm799, %v1592, %v1495
        %v1625 = vsel %vm799, %v1593, %v1497
        %s1626 = scalar_lea.vmem %s1, 16
        %v1627 = vld [vmem:[%s1626] sm:$0xff]
        %v1628 = vld [vmem:[%s1626 + $0x8] sm:$0xff]
        %v1630 = vsel %vm834, %v1594, 0
        %v1633 = vsel %vm834, %v1595, 0
        %v1636 = vsel %vm834, %v1596, 0
        %v1639 = vsel %vm834, %v1597, 0
        %v1642 = vsel %vm834, %v1598, 0
        %v1645 = vsel %vm834, %v1599, 0
        %v1648 = vsel %vm834, %v1600, 0
        %v1651 = vsel %vm834, %v1601, 0
        %v1654 = vsel %vm834, %v1602, 0
        %v1657 = vsel %vm834, %v1603, 0
        %v1660 = vsel %vm834, %v1604, 0
        %v1663 = vsel %vm834, %v1605, 0
        %v1666 = vsel %vm834, %v1606, 0
        %v1669 = vsel %vm834, %v1607, 0
        %v1672 = vsel %vm834, %v1608, 0
        %v1675 = vsel %vm834, %v1609, 0
        %v1678 = vsel %vm834, %v1610, 0
        %v1681 = vsel %vm834, %v1611, 0
        %v1684 = vsel %vm834, %v1612, 0
        %v1687 = vsel %vm834, %v1613, 0
        %v1690 = vsel %vm834, %v1614, 0
        %v1693 = vsel %vm834, %v1615, 0
        %v1696 = vsel %vm834, %v1616, 0
        %v1699 = vsel %vm834, %v1617, 0
        %v1702 = vsel %vm834, %v1618, 0
        %v1705 = vsel %vm834, %v1619, 0
        %v1708 = vsel %vm834, %v1620, 0
        %v1711 = vsel %vm834, %v1621, 0
        %v1714 = vsel %vm834, %v1622, 0
        %v1717 = vsel %vm834, %v1623, 0
        %v1720 = vsel %vm834, %v1624, 0
        %v1723 = vsel %vm834, %v1625, 0
        %1725 = vmatprep.subr.mxu0 0.0
        %1726 = vmatpush1.msra.mxu0 %v1627
        %1727 = vmatprep.subr.mxu0 0.0
        %1728 = vmatpush1.msra.mxu0 %v1628
        %1729 = vmatprep.subr.mxu0 0.0
        %1730 = vmatpush1.msra.mxu0 0.0
        %1731 = vmatprep.subr.mxu0 0.0
        %1732 = vmatpush1.msra.mxu0 0.0
        %1733 = vmatprep.subr.mxu0 0.0
        %1734 = vmatpush1.msra.mxu0 0.0
        %1735 = vmatprep.subr.mxu0 0.0
        %1736 = vmatpush1.msra.mxu0 0.0
        %1737 = vmatprep.subr.mxu0 0.0
        %1738 = vmatpush1.msra.mxu0 0.0
        %1739 = vmatprep.subr.mxu0 0.0
        %1740 = vmatpush1.msra.mxu0 0.0
        %1741 = vmatprep.subr.mxu0 0.0
        %1742 = vmatpush1.msra.mxu0 0.0
        %1743 = vmatprep.subr.mxu0 0.0
        %1744 = vmatpush1.msra.mxu0 0.0
        %1745 = vmatprep.subr.mxu0 0.0
        %1746 = vmatpush1.msra.mxu0 0.0
        %1747 = vmatprep.subr.mxu0 0.0
        %1748 = vmatpush1.msra.mxu0 0.0
        %1749 = vmatprep.subr.mxu0 0.0
        %1750 = vmatpush1.msra.mxu0 0.0
        %1751 = vmatprep.subr.mxu0 0.0
        %1752 = vmatpush1.msra.mxu0 0.0
        %1753 = vmatprep.subr.mxu0 0.0
        %1754 = vmatpush1.msra.mxu0 0.0
        %1755 = vmatprep.subr.mxu0 0.0
        %1756 = vmatpush1.msra.mxu0 0.0
        %1757 = vmatprep.subr.mxu0 0.0
        %1758 = vmatpush1.msra.mxu0 0.0
        %1759 = vmatprep.subr.mxu0 0.0
        %1760 = vmatpush1.msra.mxu0 0.0
        %1761 = vmatprep.subr.mxu0 0.0
        %1762 = vmatpush1.msra.mxu0 0.0
        %1763 = vmatprep.subr.mxu0 0.0
        %1764 = vmatpush1.msra.mxu0 0.0
        %1765 = vmatprep.subr.mxu0 0.0
        %1766 = vmatpush1.msra.mxu0 0.0
        %1767 = vmatprep.subr.mxu0 0.0
        %1768 = vmatpush1.msra.mxu0 0.0
        %1769 = vmatprep.subr.mxu0 0.0
        %1770 = vmatpush1.msra.mxu0 0.0
        %1771 = vmatprep.subr.mxu0 0.0
        %1772 = vmatpush1.msra.mxu0 0.0
        %1773 = vmatprep.subr.mxu0 0.0
        %1774 = vmatpush1.msra.mxu0 0.0
        %1775 = vmatprep.subr.mxu0 0.0
        %1776 = vmatpush1.msra.mxu0 0.0
        %1777 = vmatprep.subr.mxu0 0.0
        %1778 = vmatpush1.msra.mxu0 0.0
        %1779 = vmatprep.subr.mxu0 0.0
        %1780 = vmatpush1.msra.mxu0 0.0
        %1781 = vmatprep.subr.mxu0 0.0
        %1782 = vmatpush1.msra.mxu0 0.0
        %1783 = vmatprep.subr.mxu0 0.0
        %1784 = vmatpush1.msra.mxu0 0.0
        %1785 = vmatprep.subr.mxu0 0.0
        %1786 = vmatpush1.msra.mxu0 0.0
        %1787 = vmatprep.subr.mxu0 0.0
        %1788 = vmatpush1.msra.mxu0 0.0
        %1789 = vmatprep.mubr.f32.mxu0 0.0
        %1790 = vmatmul.mubr.f32.gmra.mrb[0].mxu0 %v1630
        %v1791 = vpop.f32.mrb[0].mxu0
        %v1792 = vadd.f32 0.0, %v1791
        %v1793 = vpop.f32.mrb[0].mxu0
        %1794 = vmatprep.mubr.f32.mxu0 0.0
        %1795 = vmatmul.mubr.f32.gmra.mrb[0].mxu0 %v1633
        %v1796 = vpop.f32.mrb[0].mxu0
        %v1797 = vadd.f32 0.0, %v1796
        %v1798 = vpop.f32.mrb[0].mxu0
        %1799 = vmatprep.mubr.f32.mxu0 0.0
        %1800 = vmatmul.mubr.f32.gmra.mrb[0].mxu0 %v1636
        %v1801 = vpop.f32.mrb[0].mxu0
        %v1802 = vadd.f32 0.0, %v1801
        %v1803 = vpop.f32.mrb[0].mxu0
        %1804 = vmatprep.mubr.f32.mxu0 0.0
        %1805 = vmatmul.mubr.f32.gmra.mrb[0].mxu0 %v1639
        %v1806 = vpop.f32.mrb[0].mxu0
        %v1807 = vadd.f32 0.0, %v1806
        %v1808 = vpop.f32.mrb[0].mxu0
        %1809 = vmatprep.mubr.f32.mxu0 0.0
        %1810 = vmatmul.mubr.f32.gmra.mrb[0].mxu0 %v1642
        %v1811 = vpop.f32.mrb[0].mxu0
        %v1812 = vadd.f32 0.0, %v1811
        %v1813 = vpop.f32.mrb[0].mxu0
        %1814 = vmatprep.mubr.f32.mxu0 0.0
        %1815 = vmatmul.mubr.f32.gmra.mrb[0].mxu0 %v1645
        %v1816 = vpop.f32.mrb[0].mxu0
        %v1817 = vadd.f32 0.0, %v1816
        %v1818 = vpop.f32.mrb[0].mxu0
        %1819 = vmatprep.mubr.f32.mxu0 0.0
        %1820 = vmatmul.mubr.f32.gmra.mrb[0].mxu0 %v1648
        %v1821 = vpop.f32.mrb[0].mxu0
        %v1822 = vadd.f32 0.0, %v1821
        %v1823 = vpop.f32.mrb[0].mxu0
        %1824 = vmatprep.mubr.f32.mxu0 0.0
        %1825 = vmatmul.mubr.f32.gmra.mrb[0].mxu0 %v1651
        %v1826 = vpop.f32.mrb[0].mxu0
        %v1827 = vadd.f32 0.0, %v1826
        %v1828 = vpop.f32.mrb[0].mxu0
        %1829 = vmatprep.mubr.f32.mxu0 0.0
        %1830 = vmatmul.mubr.f32.gmra.mrb[0].mxu0 %v1654
        %v1831 = vpop.f32.mrb[0].mxu0
        %v1832 = vadd.f32 0.0, %v1831
        %v1833 = vpop.f32.mrb[0].mxu0
        %1834 = vmatprep.mubr.f32.mxu0 0.0
        %1835 = vmatmul.mubr.f32.gmra.mrb[0].mxu0 %v1657
        %v1836 = vpop.f32.mrb[0].mxu0
        %v1837 = vadd.f32 0.0, %v1836
        %v1838 = vpop.f32.mrb[0].mxu0
        %1839 = vmatprep.mubr.f32.mxu0 0.0
        %1840 = vmatmul.mubr.f32.gmra.mrb[0].mxu0 %v1660
        %v1841 = vpop.f32.mrb[0].mxu0
        %v1842 = vadd.f32 0.0, %v1841
        %v1843 = vpop.f32.mrb[0].mxu0
        %1844 = vmatprep.mubr.f32.mxu0 0.0
        %1845 = vmatmul.mubr.f32.gmra.mrb[0].mxu0 %v1663
        %v1846 = vpop.f32.mrb[0].mxu0
        %v1847 = vadd.f32 0.0, %v1846
        %v1848 = vpop.f32.mrb[0].mxu0
        %1849 = vmatprep.mubr.f32.mxu0 0.0
        %1850 = vmatmul.mubr.f32.gmra.mrb[0].mxu0 %v1666
        %v1851 = vpop.f32.mrb[0].mxu0
        %v1852 = vadd.f32 0.0, %v1851
        %v1853 = vpop.f32.mrb[0].mxu0
        %1854 = vmatprep.mubr.f32.mxu0 0.0
        %1855 = vmatmul.mubr.f32.gmra.mrb[0].mxu0 %v1669
        %v1856 = vpop.f32.mrb[0].mxu0
        %v1857 = vadd.f32 0.0, %v1856
        %v1858 = vpop.f32.mrb[0].mxu0
        %1859 = vmatprep.mubr.f32.mxu0 0.0
        %1860 = vmatmul.mubr.f32.gmra.mrb[0].mxu0 %v1672
        %v1861 = vpop.f32.mrb[0].mxu0
        %v1862 = vadd.f32 0.0, %v1861
        %v1863 = vpop.f32.mrb[0].mxu0
        %1864 = vmatprep.mubr.f32.mxu0 0.0
        %1865 = vmatmul.mubr.f32.gmra.mrb[0].mxu0 %v1675
        %v1866 = vpop.f32.mrb[0].mxu0
        %v1867 = vadd.f32 0.0, %v1866
        %v1868 = vpop.f32.mrb[0].mxu0
        %1869 = vmatprep.mubr.f32.mxu0 0.0
        %1870 = vmatmul.mubr.f32.gmra.mrb[0].mxu0 %v1678
        %v1871 = vpop.f32.mrb[0].mxu0
        %v1872 = vadd.f32 0.0, %v1871
        %v1873 = vpop.f32.mrb[0].mxu0
        %1874 = vmatprep.mubr.f32.mxu0 0.0
        %1875 = vmatmul.mubr.f32.gmra.mrb[0].mxu0 %v1681
        %v1876 = vpop.f32.mrb[0].mxu0
        %v1877 = vadd.f32 0.0, %v1876
        %v1878 = vpop.f32.mrb[0].mxu0
        %1879 = vmatprep.mubr.f32.mxu0 0.0
        %1880 = vmatmul.mubr.f32.gmra.mrb[0].mxu0 %v1684
        %v1881 = vpop.f32.mrb[0].mxu0
        %v1882 = vadd.f32 0.0, %v1881
        %v1883 = vpop.f32.mrb[0].mxu0
        %1884 = vmatprep.mubr.f32.mxu0 0.0
        %1885 = vmatmul.mubr.f32.gmra.mrb[0].mxu0 %v1687
        %v1886 = vpop.f32.mrb[0].mxu0
        %v1887 = vadd.f32 0.0, %v1886
        %v1888 = vpop.f32.mrb[0].mxu0
        %1889 = vmatprep.mubr.f32.mxu0 0.0
        %1890 = vmatmul.mubr.f32.gmra.mrb[0].mxu0 %v1690
        %v1891 = vpop.f32.mrb[0].mxu0
        %v1892 = vadd.f32 0.0, %v1891
        %v1893 = vpop.f32.mrb[0].mxu0
        %1894 = vmatprep.mubr.f32.mxu0 0.0
        %1895 = vmatmul.mubr.f32.gmra.mrb[0].mxu0 %v1693
        %v1896 = vpop.f32.mrb[0].mxu0
        %v1897 = vadd.f32 0.0, %v1896
        %v1898 = vpop.f32.mrb[0].mxu0
        %1899 = vmatprep.mubr.f32.mxu0 0.0
        %1900 = vmatmul.mubr.f32.gmra.mrb[0].mxu0 %v1696
        %v1901 = vpop.f32.mrb[0].mxu0
        %v1902 = vadd.f32 0.0, %v1901
        %v1903 = vpop.f32.mrb[0].mxu0
        %1904 = vmatprep.mubr.f32.mxu0 0.0
        %1905 = vmatmul.mubr.f32.gmra.mrb[0].mxu0 %v1699
        %v1906 = vpop.f32.mrb[0].mxu0
        %v1907 = vadd.f32 0.0, %v1906
        %v1908 = vpop.f32.mrb[0].mxu0
        %1909 = vmatprep.mubr.f32.mxu0 0.0
        %1910 = vmatmul.mubr.f32.gmra.mrb[0].mxu0 %v1702
        %v1911 = vpop.f32.mrb[0].mxu0
        %v1912 = vadd.f32 0.0, %v1911
        %v1913 = vpop.f32.mrb[0].mxu0
        %1914 = vmatprep.mubr.f32.mxu0 0.0
        %1915 = vmatmul.mubr.f32.gmra.mrb[0].mxu0 %v1705
        %v1916 = vpop.f32.mrb[0].mxu0
        %v1917 = vadd.f32 0.0, %v1916
        %v1918 = vpop.f32.mrb[0].mxu0
        %1919 = vmatprep.mubr.f32.mxu0 0.0
        %1920 = vmatmul.mubr.f32.gmra.mrb[0].mxu0 %v1708
        %v1921 = vpop.f32.mrb[0].mxu0
        %v1922 = vadd.f32 0.0, %v1921
        %v1923 = vpop.f32.mrb[0].mxu0
        %1924 = vmatprep.mubr.f32.mxu0 0.0
        %1925 = vmatmul.mubr.f32.gmra.mrb[0].mxu0 %v1711
        %v1926 = vpop.f32.mrb[0].mxu0
        %v1927 = vadd.f32 0.0, %v1926
        %v1928 = vpop.f32.mrb[0].mxu0
        %1929 = vmatprep.mubr.f32.mxu0 0.0
        %1930 = vmatmul.mubr.f32.gmra.mrb[0].mxu0 %v1714
        %v1931 = vpop.f32.mrb[0].mxu0
        %v1932 = vadd.f32 0.0, %v1931
        %v1933 = vpop.f32.mrb[0].mxu0
        %1934 = vmatprep.mubr.f32.mxu0 0.0
        %1935 = vmatmul.mubr.f32.gmra.mrb[0].mxu0 %v1717
        %v1936 = vpop.f32.mrb[0].mxu0
        %v1937 = vadd.f32 0.0, %v1936
        %v1938 = vpop.f32.mrb[0].mxu0
        %1939 = vmatprep.mubr.f32.mxu0 0.0
        %1940 = vmatmul.mubr.f32.gmra.mrb[0].mxu0 %v1720
        %v1941 = vpop.f32.mrb[0].mxu0
        %v1942 = vadd.f32 0.0, %v1941
        %v1943 = vpop.f32.mrb[0].mxu0
        %1944 = vmatprep.mubr.f32.mxu0 0.0
        %1945 = vmatmul.mubr.f32.gmra.mrb[0].mxu0 %v1723
        %v1946 = vpop.f32.mrb[0].mxu0
        %v1947 = vadd.f32 0.0, %v1946
        %v1948 = vpop.f32.mrb[0].mxu0
        %1949 = vdwg.mxu0
        %v1953 = vrot.slane %v271, 1
        %v1954 = vrot.slane %v272, 1
        %v1955 = vsel %vm322, %v1953, %v1954
        %v1956 = vrot.slane %v273, 1
        %v1957 = vsel %vm322, %v1954, %v1956
        %1958 = vrot.lane.b32.xlu0 %v440, 4
        %v1959 = vpop.permute.xlu0 %1958
        %1960 = vrot.lane.b32.xlu0 %v442, 4
        %v1961 = vpop.permute.xlu0 %1960
        %1964 = vrot.lane.b32.xlu0 %v271, 8
        %v1965 = vpop.permute.xlu0 %1964
        %1966 = vrot.lane.b32.xlu0 %v272, 8
        %v1967 = vpop.permute.xlu0 %1966
        %1970 = vrot.lane.b32.xlu0 %v1955, 12
        %v1971 = vpop.permute.xlu0 %1970
        %1972 = vrot.lane.b32.xlu0 %v1957, 12
        %v1973 = vpop.permute.xlu0 %1972
        %v1976 = vsel %vm733, %v268, %v1959
        %v1977 = vsel %vm733, %v269, %v1961
        %v1978 = vsel %vm766, %v1976, %v1965
        %v1979 = vsel %vm766, %v1977, %v1967
        %v1980 = vsel %vm799, %v1978, %v1971
        %v1981 = vsel %vm799, %v1979, %v1973
        %s1982 = scalar_lea.vmem %s1, 32
        %v1983 = vld [vmem:[%s1982] sm:$0xff]
        %v1984 = vld [vmem:[%s1982 + $0x8] sm:$0xff]
        %v1986 = vsel %vm834, %v1980, 0
        %v1989 = vsel %vm834, %v1981, 0
        %1991 = vmatprep.subr.mxu0 0.0
        %1992 = vmatpush1.msra.mxu0 %v1983
        %1993 = vmatprep.subr.mxu0 0.0
        %1994 = vmatpush1.msra.mxu0 %v1984
        %1995 = vmatprep.subr.mxu0 0.0
        %1996 = vmatpush1.msra.mxu0 0.0
        %1997 = vmatprep.subr.mxu0 0.0
        %1998 = vmatpush1.msra.mxu0 0.0
        %1999 = vmatprep.subr.mxu0 0.0
        %2000 = vmatpush1.msra.mxu0 0.0
        %2001 = vmatprep.subr.mxu0 0.0
        %2002 = vmatpush1.msra.mxu0 0.0
        %2003 = vmatprep.subr.mxu0 0.0
        %2004 = vmatpush1.msra.mxu0 0.0
        %2005 = vmatprep.subr.mxu0 0.0
        %2006 = vmatpush1.msra.mxu0 0.0
        %2007 = vmatprep.subr.mxu0 0.0
        %2008 = vmatpush1.msra.mxu0 0.0
        %2009 = vmatprep.subr.mxu0 0.0
        %2010 = vmatpush1.msra.mxu0 0.0
        %2011 = vmatprep.subr.mxu0 0.0
        %2012 = vmatpush1.msra.mxu0 0.0
        %2013 = vmatprep.subr.mxu0 0.0
        %2014 = vmatpush1.msra.mxu0 0.0
        %2015 = vmatprep.subr.mxu0 0.0
        %2016 = vmatpush1.msra.mxu0 0.0
        %2017 = vmatprep.subr.mxu0 0.0
        %2018 = vmatpush1.msra.mxu0 0.0
        %2019 = vmatprep.subr.mxu0 0.0
        %2020 = vmatpush1.msra.mxu0 0.0
        %2021 = vmatprep.subr.mxu0 0.0
        %2022 = vmatpush1.msra.mxu0 0.0
        %2023 = vmatprep.subr.mxu0 0.0
        %2024 = vmatpush1.msra.mxu0 0.0
        %2025 = vmatprep.subr.mxu0 0.0
        %2026 = vmatpush1.msra.mxu0 0.0
        %2027 = vmatprep.subr.mxu0 0.0
        %2028 = vmatpush1.msra.mxu0 0.0
        %2029 = vmatprep.subr.mxu0 0.0
        %2030 = vmatpush1.msra.mxu0 0.0
        %2031 = vmatprep.subr.mxu0 0.0
        %2032 = vmatpush1.msra.mxu0 0.0
        %2033 = vmatprep.subr.mxu0 0.0
        %2034 = vmatpush1.msra.mxu0 0.0
        %2035 = vmatprep.subr.mxu0 0.0
        %2036 = vmatpush1.msra.mxu0 0.0
        %2037 = vmatprep.subr.mxu0 0.0
        %2038 = vmatpush1.msra.mxu0 0.0
        %2039 = vmatprep.subr.mxu0 0.0
        %2040 = vmatpush1.msra.mxu0 0.0
        %2041 = vmatprep.subr.mxu0 0.0
        %2042 = vmatpush1.msra.mxu0 0.0
        %2043 = vmatprep.subr.mxu0 0.0
        %2044 = vmatpush1.msra.mxu0 0.0
        %2045 = vmatprep.subr.mxu0 0.0
        %2046 = vmatpush1.msra.mxu0 0.0
        %2047 = vmatprep.subr.mxu0 0.0
        %2048 = vmatpush1.msra.mxu0 0.0
        %2049 = vmatprep.subr.mxu0 0.0
        %2050 = vmatpush1.msra.mxu0 0.0
        %2051 = vmatprep.subr.mxu0 0.0
        %2052 = vmatpush1.msra.mxu0 0.0
        %2053 = vmatprep.subr.mxu0 0.0
        %2054 = vmatpush1.msra.mxu0 0.0
        %2055 = vmatprep.mubr.f32.mxu0 0.0
        %2056 = vmatmul.mubr.f32.gmra.mrb[0].mxu0 %v842
        %v2057 = vpop.f32.mrb[0].mxu0
        %v2058 = vadd.f32 0.0, %v2057
        %v2059 = vpop.f32.mrb[0].mxu0
        %2060 = vmatprep.mubr.f32.mxu0 0.0
        %2061 = vmatmul.mubr.f32.gmra.mrb[0].mxu0 %v845
        %v2062 = vpop.f32.mrb[0].mxu0
        %v2063 = vadd.f32 0.0, %v2062
        %v2064 = vpop.f32.mrb[0].mxu0
        %2065 = vmatprep.mubr.f32.mxu0 0.0
        %2066 = vmatmul.mubr.f32.gmra.mrb[0].mxu0 %v848
        %v2067 = vpop.f32.mrb[0].mxu0
        %v2068 = vadd.f32 0.0, %v2067
        %v2069 = vpop.f32.mrb[0].mxu0
        %2070 = vmatprep.mubr.f32.mxu0 0.0
        %2071 = vmatmul.mubr.f32.gmra.mrb[0].mxu0 %v851
        %v2072 = vpop.f32.mrb[0].mxu0
        %v2073 = vadd.f32 0.0, %v2072
        %v2074 = vpop.f32.mrb[0].mxu0
        %2075 = vmatprep.mubr.f32.mxu0 0.0
        %2076 = vmatmul.mubr.f32.gmra.mrb[0].mxu0 %v854
        %v2077 = vpop.f32.mrb[0].mxu0
        %v2078 = vadd.f32 0.0, %v2077
        %v2079 = vpop.f32.mrb[0].mxu0
        %2080 = vmatprep.mubr.f32.mxu0 0.0
        %2081 = vmatmul.mubr.f32.gmra.mrb[0].mxu0 %v857
        %v2082 = vpop.f32.mrb[0].mxu0
        %v2083 = vadd.f32 0.0, %v2082
        %v2084 = vpop.f32.mrb[0].mxu0
        %2085 = vmatprep.mubr.f32.mxu0 0.0
        %2086 = vmatmul.mubr.f32.gmra.mrb[0].mxu0 %v860
        %v2087 = vpop.f32.mrb[0].mxu0
        %v2088 = vadd.f32 0.0, %v2087
        %v2089 = vpop.f32.mrb[0].mxu0
        %2090 = vmatprep.mubr.f32.mxu0 0.0
        %2091 = vmatmul.mubr.f32.gmra.mrb[0].mxu0 %v863
        %v2092 = vpop.f32.mrb[0].mxu0
        %v2093 = vadd.f32 0.0, %v2092
        %v2094 = vpop.f32.mrb[0].mxu0
        %2095 = vmatprep.mubr.f32.mxu0 0.0
        %2096 = vmatmul.mubr.f32.gmra.mrb[0].mxu0 %v866
        %v2097 = vpop.f32.mrb[0].mxu0
        %v2098 = vadd.f32 0.0, %v2097
        %v2099 = vpop.f32.mrb[0].mxu0
        %2100 = vmatprep.mubr.f32.mxu0 0.0
        %2101 = vmatmul.mubr.f32.gmra.mrb[0].mxu0 %v869
        %v2102 = vpop.f32.mrb[0].mxu0
        %v2103 = vadd.f32 0.0, %v2102
        %v2104 = vpop.f32.mrb[0].mxu0
        %2105 = vmatprep.mubr.f32.mxu0 0.0
        %2106 = vmatmul.mubr.f32.gmra.mrb[0].mxu0 %v872
        %v2107 = vpop.f32.mrb[0].mxu0
        %v2108 = vadd.f32 0.0, %v2107
        %v2109 = vpop.f32.mrb[0].mxu0
        %2110 = vmatprep.mubr.f32.mxu0 0.0
        %2111 = vmatmul.mubr.f32.gmra.mrb[0].mxu0 %v875
        %v2112 = vpop.f32.mrb[0].mxu0
        %v2113 = vadd.f32 0.0, %v2112
        %v2114 = vpop.f32.mrb[0].mxu0
        %2115 = vmatprep.mubr.f32.mxu0 0.0
        %2116 = vmatmul.mubr.f32.gmra.mrb[0].mxu0 %v878
        %v2117 = vpop.f32.mrb[0].mxu0
        %v2118 = vadd.f32 0.0, %v2117
        %v2119 = vpop.f32.mrb[0].mxu0
        %2120 = vmatprep.mubr.f32.mxu0 0.0
        %2121 = vmatmul.mubr.f32.gmra.mrb[0].mxu0 %v881
        %v2122 = vpop.f32.mrb[0].mxu0
        %v2123 = vadd.f32 0.0, %v2122
        %v2124 = vpop.f32.mrb[0].mxu0
        %2125 = vmatprep.mubr.f32.mxu0 0.0
        %2126 = vmatmul.mubr.f32.gmra.mrb[0].mxu0 %v884
        %v2127 = vpop.f32.mrb[0].mxu0
        %v2128 = vadd.f32 0.0, %v2127
        %v2129 = vpop.f32.mrb[0].mxu0
        %2130 = vmatprep.mubr.f32.mxu0 0.0
        %2131 = vmatmul.mubr.f32.gmra.mrb[0].mxu0 %v887
        %v2132 = vpop.f32.mrb[0].mxu0
        %v2133 = vadd.f32 0.0, %v2132
        %v2134 = vpop.f32.mrb[0].mxu0
        %2135 = vmatprep.mubr.f32.mxu0 0.0
        %2136 = vmatmul.mubr.f32.gmra.mrb[0].mxu0 %v890
        %v2137 = vpop.f32.mrb[0].mxu0
        %v2138 = vadd.f32 0.0, %v2137
        %v2139 = vpop.f32.mrb[0].mxu0
        %2140 = vmatprep.mubr.f32.mxu0 0.0
        %2141 = vmatmul.mubr.f32.gmra.mrb[0].mxu0 %v893
        %v2142 = vpop.f32.mrb[0].mxu0
        %v2143 = vadd.f32 0.0, %v2142
        %v2144 = vpop.f32.mrb[0].mxu0
        %2145 = vmatprep.mubr.f32.mxu0 0.0
        %2146 = vmatmul.mubr.f32.gmra.mrb[0].mxu0 %v896
        %v2147 = vpop.f32.mrb[0].mxu0
        %v2148 = vadd.f32 0.0, %v2147
        %v2149 = vpop.f32.mrb[0].mxu0
        %2150 = vmatprep.mubr.f32.mxu0 0.0
        %2151 = vmatmul.mubr.f32.gmra.mrb[0].mxu0 %v899
        %v2152 = vpop.f32.mrb[0].mxu0
        %v2153 = vadd.f32 0.0, %v2152
        %v2154 = vpop.f32.mrb[0].mxu0
        %2155 = vmatprep.mubr.f32.mxu0 0.0
        %2156 = vmatmul.mubr.f32.gmra.mrb[0].mxu0 %v902
        %v2157 = vpop.f32.mrb[0].mxu0
        %v2158 = vadd.f32 0.0, %v2157
        %v2159 = vpop.f32.mrb[0].mxu0
        %2160 = vmatprep.mubr.f32.mxu0 0.0
        %2161 = vmatmul.mubr.f32.gmra.mrb[0].mxu0 %v905
        %v2162 = vpop.f32.mrb[0].mxu0
        %v2163 = vadd.f32 0.0, %v2162
        %v2164 = vpop.f32.mrb[0].mxu0
        %2165 = vmatprep.mubr.f32.mxu0 0.0
        %2166 = vmatmul.mubr.f32.gmra.mrb[0].mxu0 %v908
        %v2167 = vpop.f32.mrb[0].mxu0
        %v2168 = vadd.f32 0.0, %v2167
        %v2169 = vpop.f32.mrb[0].mxu0
        %2170 = vmatprep.mubr.f32.mxu0 0.0
        %2171 = vmatmul.mubr.f32.gmra.mrb[0].mxu0 %v911
        %v2172 = vpop.f32.mrb[0].mxu0
        %v2173 = vadd.f32 0.0, %v2172
        %v2174 = vpop.f32.mrb[0].mxu0
        %2175 = vmatprep.mubr.f32.mxu0 0.0
        %2176 = vmatmul.mubr.f32.gmra.mrb[0].mxu0 %v914
        %v2177 = vpop.f32.mrb[0].mxu0
        %v2178 = vadd.f32 0.0, %v2177
        %v2179 = vpop.f32.mrb[0].mxu0
        %2180 = vmatprep.mubr.f32.mxu0 0.0
        %2181 = vmatmul.mubr.f32.gmra.mrb[0].mxu0 %v917
        %v2182 = vpop.f32.mrb[0].mxu0
        %v2183 = vadd.f32 0.0, %v2182
        %v2184 = vpop.f32.mrb[0].mxu0
        %2185 = vmatprep.mubr.f32.mxu0 0.0
        %2186 = vmatmul.mubr.f32.gmra.mrb[0].mxu0 %v920
        %v2187 = vpop.f32.mrb[0].mxu0
        %v2188 = vadd.f32 0.0, %v2187
        %v2189 = vpop.f32.mrb[0].mxu0
        %2190 = vmatprep.mubr.f32.mxu0 0.0
        %2191 = vmatmul.mubr.f32.gmra.mrb[0].mxu0 %v923
        %v2192 = vpop.f32.mrb[0].mxu0
        %v2193 = vadd.f32 0.0, %v2192
        %v2194 = vpop.f32.mrb[0].mxu0
        %2195 = vmatprep.mubr.f32.mxu0 0.0
        %2196 = vmatmul.mubr.f32.gmra.mrb[0].mxu0 %v926
        %v2197 = vpop.f32.mrb[0].mxu0
        %v2198 = vadd.f32 0.0, %v2197
        %v2199 = vpop.f32.mrb[0].mxu0
        %2200 = vmatprep.mubr.f32.mxu0 0.0
        %2201 = vmatmul.mubr.f32.gmra.mrb[0].mxu0 %v929
        %v2202 = vpop.f32.mrb[0].mxu0
        %v2203 = vadd.f32 0.0, %v2202
        %v2204 = vpop.f32.mrb[0].mxu0
        %2205 = vmatprep.mubr.f32.mxu0 0.0
        %2206 = vmatmul.mubr.f32.gmra.mrb[0].mxu0 %v1986
        %v2207 = vpop.f32.mrb[0].mxu0
        %v2208 = vadd.f32 0.0, %v2207
        %v2209 = vpop.f32.mrb[0].mxu0
        %2210 = vmatprep.mubr.f32.mxu0 0.0
        %2211 = vmatmul.mubr.f32.gmra.mrb[0].mxu0 %v1989
        %v2212 = vpop.f32.mrb[0].mxu0
        %v2213 = vadd.f32 0.0, %v2212
        %v2214 = vpop.f32.mrb[0].mxu0
        %2215 = vdwg.mxu0
        %v2216 = vrot.slane %v271, 2
        %v2217 = vrot.slane %v272, 2
        %v2218 = vsel %vm1156, %v2216, %v2217
        %v2219 = vrot.slane %v273, 2
        %v2220 = vsel %vm1156, %v2217, %v2219
        %2221 = vrot.lane.b32.xlu0 %v1239, 4
        %v2222 = vpop.permute.xlu0 %2221
        %2223 = vrot.lane.b32.xlu0 %v1241, 4
        %v2224 = vpop.permute.xlu0 %2223
        %2227 = vrot.lane.b32.xlu0 %v1955, 8
        %v2228 = vpop.permute.xlu0 %2227
        %2229 = vrot.lane.b32.xlu0 %v1957, 8
        %v2230 = vpop.permute.xlu0 %2229
        %2233 = vrot.lane.b32.xlu0 %v2218, 12
        %v2234 = vpop.permute.xlu0 %2233
        %2235 = vrot.lane.b32.xlu0 %v2220, 12
        %v2236 = vpop.permute.xlu0 %2235
        %v2239 = vsel %vm733, %v440, %v2222
        %v2240 = vsel %vm733, %v442, %v2224
        %v2241 = vsel %vm766, %v2239, %v2228
        %v2242 = vsel %vm766, %v2240, %v2230
        %v2243 = vsel %vm799, %v2241, %v2234
        %v2244 = vsel %vm799, %v2242, %v2236
        %s2245 = scalar_lea.vmem %s1, 48
        %v2246 = vld [vmem:[%s2245] sm:$0xff]
        %v2247 = vld [vmem:[%s2245 + $0x8] sm:$0xff]
        %v2249 = vsel %vm834, %v2243, 0
        %v2252 = vsel %vm834, %v2244, 0
        %2254 = vmatprep.subr.mxu0 0.0
        %2255 = vmatpush1.msra.mxu0 %v2246
        %2256 = vmatprep.subr.mxu0 0.0
        %2257 = vmatpush1.msra.mxu0 %v2247
        %2258 = vmatprep.subr.mxu0 0.0
        %2259 = vmatpush1.msra.mxu0 0.0
        %2260 = vmatprep.subr.mxu0 0.0
        %2261 = vmatpush1.msra.mxu0 0.0
        %2262 = vmatprep.subr.mxu0 0.0
        %2263 = vmatpush1.msra.mxu0 0.0
        %2264 = vmatprep.subr.mxu0 0.0
        %2265 = vmatpush1.msra.mxu0 0.0
        %2266 = vmatprep.subr.mxu0 0.0
        %2267 = vmatpush1.msra.mxu0 0.0
        %2268 = vmatprep.subr.mxu0 0.0
        %2269 = vmatpush1.msra.mxu0 0.0
        %2270 = vmatprep.subr.mxu0 0.0
        %2271 = vmatpush1.msra.mxu0 0.0
        %2272 = vmatprep.subr.mxu0 0.0
        %2273 = vmatpush1.msra.mxu0 0.0
        %2274 = vmatprep.subr.mxu0 0.0
        %2275 = vmatpush1.msra.mxu0 0.0
        %2276 = vmatprep.subr.mxu0 0.0
        %2277 = vmatpush1.msra.mxu0 0.0
        %2278 = vmatprep.subr.mxu0 0.0
        %2279 = vmatpush1.msra.mxu0 0.0
        %2280 = vmatprep.subr.mxu0 0.0
        %2281 = vmatpush1.msra.mxu0 0.0
        %2282 = vmatprep.subr.mxu0 0.0
        %2283 = vmatpush1.msra.mxu0 0.0
        %2284 = vmatprep.subr.mxu0 0.0
        %2285 = vmatpush1.msra.mxu0 0.0
        %2286 = vmatprep.subr.mxu0 0.0
        %2287 = vmatpush1.msra.mxu0 0.0
        %2288 = vmatprep.subr.mxu0 0.0
        %2289 = vmatpush1.msra.mxu0 0.0
        %2290 = vmatprep.subr.mxu0 0.0
        %2291 = vmatpush1.msra.mxu0 0.0
        %2292 = vmatprep.subr.mxu0 0.0
        %2293 = vmatpush1.msra.mxu0 0.0
        %2294 = vmatprep.subr.mxu0 0.0
        %2295 = vmatpush1.msra.mxu0 0.0
        %2296 = vmatprep.subr.mxu0 0.0
        %2297 = vmatpush1.msra.mxu0 0.0
        %2298 = vmatprep.subr.mxu0 0.0
        %2299 = vmatpush1.msra.mxu0 0.0
        %2300 = vmatprep.subr.mxu0 0.0
        %2301 = vmatpush1.msra.mxu0 0.0
        %2302 = vmatprep.subr.mxu0 0.0
        %2303 = vmatpush1.msra.mxu0 0.0
        %2304 = vmatprep.subr.mxu0 0.0
        %2305 = vmatpush1.msra.mxu0 0.0
        %2306 = vmatprep.subr.mxu0 0.0
        %2307 = vmatpush1.msra.mxu0 0.0
        %2308 = vmatprep.subr.mxu0 0.0
        %2309 = vmatpush1.msra.mxu0 0.0
        %2310 = vmatprep.subr.mxu0 0.0
        %2311 = vmatpush1.msra.mxu0 0.0
        %2312 = vmatprep.subr.mxu0 0.0
        %2313 = vmatpush1.msra.mxu0 0.0
        %2314 = vmatprep.subr.mxu0 0.0
        %2315 = vmatpush1.msra.mxu0 0.0
        %2316 = vmatprep.subr.mxu0 0.0
        %2317 = vmatpush1.msra.mxu0 0.0
        %2318 = vmatprep.mubr.f32.mxu0 0.0
        %2319 = vmatmul.mubr.f32.gmra.mrb[0].mxu0 %v1636
        %v2320 = vpop.f32.mrb[0].mxu0
        %v2321 = vadd.f32 0.0, %v2320
        %v2322 = vpop.f32.mrb[0].mxu0
        %2323 = vmatprep.mubr.f32.mxu0 0.0
        %2324 = vmatmul.mubr.f32.gmra.mrb[0].mxu0 %v1639
        %v2325 = vpop.f32.mrb[0].mxu0
        %v2326 = vadd.f32 0.0, %v2325
        %v2327 = vpop.f32.mrb[0].mxu0
        %2328 = vmatprep.mubr.f32.mxu0 0.0
        %2329 = vmatmul.mubr.f32.gmra.mrb[0].mxu0 %v1642
        %v2330 = vpop.f32.mrb[0].mxu0
        %v2331 = vadd.f32 0.0, %v2330
        %v2332 = vpop.f32.mrb[0].mxu0
        %2333 = vmatprep.mubr.f32.mxu0 0.0
        %2334 = vmatmul.mubr.f32.gmra.mrb[0].mxu0 %v1645
        %v2335 = vpop.f32.mrb[0].mxu0
        %v2336 = vadd.f32 0.0, %v2335
        %v2337 = vpop.f32.mrb[0].mxu0
        %2338 = vmatprep.mubr.f32.mxu0 0.0
        %2339 = vmatmul.mubr.f32.gmra.mrb[0].mxu0 %v1648
        %v2340 = vpop.f32.mrb[0].mxu0
        %v2341 = vadd.f32 0.0, %v2340
        %v2342 = vpop.f32.mrb[0].mxu0
        %2343 = vmatprep.mubr.f32.mxu0 0.0
        %2344 = vmatmul.mubr.f32.gmra.mrb[0].mxu0 %v1651
        %v2345 = vpop.f32.mrb[0].mxu0
        %v2346 = vadd.f32 0.0, %v2345
        %v2347 = vpop.f32.mrb[0].mxu0
        %2348 = vmatprep.mubr.f32.mxu0 0.0
        %2349 = vmatmul.mubr.f32.gmra.mrb[0].mxu0 %v1654
        %v2350 = vpop.f32.mrb[0].mxu0
        %v2351 = vadd.f32 0.0, %v2350
        %v2352 = vpop.f32.mrb[0].mxu0
        %2353 = vmatprep.mubr.f32.mxu0 0.0
        %2354 = vmatmul.mubr.f32.gmra.mrb[0].mxu0 %v1657
        %v2355 = vpop.f32.mrb[0].mxu0
        %v2356 = vadd.f32 0.0, %v2355
        %v2357 = vpop.f32.mrb[0].mxu0
        %2358 = vmatprep.mubr.f32.mxu0 0.0
        %2359 = vmatmul.mubr.f32.gmra.mrb[0].mxu0 %v1660
        %v2360 = vpop.f32.mrb[0].mxu0
        %v2361 = vadd.f32 0.0, %v2360
        %v2362 = vpop.f32.mrb[0].mxu0
        %2363 = vmatprep.mubr.f32.mxu0 0.0
        %2364 = vmatmul.mubr.f32.gmra.mrb[0].mxu0 %v1663
        %v2365 = vpop.f32.mrb[0].mxu0
        %v2366 = vadd.f32 0.0, %v2365
        %v2367 = vpop.f32.mrb[0].mxu0
        %2368 = vmatprep.mubr.f32.mxu0 0.0
        %2369 = vmatmul.mubr.f32.gmra.mrb[0].mxu0 %v1666
        %v2370 = vpop.f32.mrb[0].mxu0
        %v2371 = vadd.f32 0.0, %v2370
        %v2372 = vpop.f32.mrb[0].mxu0
        %2373 = vmatprep.mubr.f32.mxu0 0.0
        %2374 = vmatmul.mubr.f32.gmra.mrb[0].mxu0 %v1669
        %v2375 = vpop.f32.mrb[0].mxu0
        %v2376 = vadd.f32 0.0, %v2375
        %v2377 = vpop.f32.mrb[0].mxu0
        %2378 = vmatprep.mubr.f32.mxu0 0.0
        %2379 = vmatmul.mubr.f32.gmra.mrb[0].mxu0 %v1672
        %v2380 = vpop.f32.mrb[0].mxu0
        %v2381 = vadd.f32 0.0, %v2380
        %v2382 = vpop.f32.mrb[0].mxu0
        %2383 = vmatprep.mubr.f32.mxu0 0.0
        %2384 = vmatmul.mubr.f32.gmra.mrb[0].mxu0 %v1675
        %v2385 = vpop.f32.mrb[0].mxu0
        %v2386 = vadd.f32 0.0, %v2385
        %v2387 = vpop.f32.mrb[0].mxu0
        %2388 = vmatprep.mubr.f32.mxu0 0.0
        %2389 = vmatmul.mubr.f32.gmra.mrb[0].mxu0 %v1678
        %v2390 = vpop.f32.mrb[0].mxu0
        %v2391 = vadd.f32 0.0, %v2390
        %v2392 = vpop.f32.mrb[0].mxu0
        %2393 = vmatprep.mubr.f32.mxu0 0.0
        %2394 = vmatmul.mubr.f32.gmra.mrb[0].mxu0 %v1681
        %v2395 = vpop.f32.mrb[0].mxu0
        %v2396 = vadd.f32 0.0, %v2395
        %v2397 = vpop.f32.mrb[0].mxu0
        %2398 = vmatprep.mubr.f32.mxu0 0.0
        %2399 = vmatmul.mubr.f32.gmra.mrb[0].mxu0 %v1684
        %v2400 = vpop.f32.mrb[0].mxu0
        %v2401 = vadd.f32 0.0, %v2400
        %v2402 = vpop.f32.mrb[0].mxu0
        %2403 = vmatprep.mubr.f32.mxu0 0.0
        %2404 = vmatmul.mubr.f32.gmra.mrb[0].mxu0 %v1687
        %v2405 = vpop.f32.mrb[0].mxu0
        %v2406 = vadd.f32 0.0, %v2405
        %v2407 = vpop.f32.mrb[0].mxu0
        %2408 = vmatprep.mubr.f32.mxu0 0.0
        %2409 = vmatmul.mubr.f32.gmra.mrb[0].mxu0 %v1690
        %v2410 = vpop.f32.mrb[0].mxu0
        %v2411 = vadd.f32 0.0, %v2410
        %v2412 = vpop.f32.mrb[0].mxu0
        %2413 = vmatprep.mubr.f32.mxu0 0.0
        %2414 = vmatmul.mubr.f32.gmra.mrb[0].mxu0 %v1693
        %v2415 = vpop.f32.mrb[0].mxu0
        %v2416 = vadd.f32 0.0, %v2415
        %v2417 = vpop.f32.mrb[0].mxu0
        %2418 = vmatprep.mubr.f32.mxu0 0.0
        %2419 = vmatmul.mubr.f32.gmra.mrb[0].mxu0 %v1696
        %v2420 = vpop.f32.mrb[0].mxu0
        %v2421 = vadd.f32 0.0, %v2420
        %v2422 = vpop.f32.mrb[0].mxu0
        %2423 = vmatprep.mubr.f32.mxu0 0.0
        %2424 = vmatmul.mubr.f32.gmra.mrb[0].mxu0 %v1699
        %v2425 = vpop.f32.mrb[0].mxu0
        %v2426 = vadd.f32 0.0, %v2425
        %v2427 = vpop.f32.mrb[0].mxu0
        %2428 = vmatprep.mubr.f32.mxu0 0.0
        %2429 = vmatmul.mubr.f32.gmra.mrb[0].mxu0 %v1702
        %v2430 = vpop.f32.mrb[0].mxu0
        %v2431 = vadd.f32 0.0, %v2430
        %v2432 = vpop.f32.mrb[0].mxu0
        %2433 = vmatprep.mubr.f32.mxu0 0.0
        %2434 = vmatmul.mubr.f32.gmra.mrb[0].mxu0 %v1705
        %v2435 = vpop.f32.mrb[0].mxu0
        %v2436 = vadd.f32 0.0, %v2435
        %v2437 = vpop.f32.mrb[0].mxu0
        %2438 = vmatprep.mubr.f32.mxu0 0.0
        %2439 = vmatmul.mubr.f32.gmra.mrb[0].mxu0 %v1708
        %v2440 = vpop.f32.mrb[0].mxu0
        %v2441 = vadd.f32 0.0, %v2440
        %v2442 = vpop.f32.mrb[0].mxu0
        %2443 = vmatprep.mubr.f32.mxu0 0.0
        %2444 = vmatmul.mubr.f32.gmra.mrb[0].mxu0 %v1711
        %v2445 = vpop.f32.mrb[0].mxu0
        %v2446 = vadd.f32 0.0, %v2445
        %v2447 = vpop.f32.mrb[0].mxu0
        %2448 = vmatprep.mubr.f32.mxu0 0.0
        %2449 = vmatmul.mubr.f32.gmra.mrb[0].mxu0 %v1714
        %v2450 = vpop.f32.mrb[0].mxu0
        %v2451 = vadd.f32 0.0, %v2450
        %v2452 = vpop.f32.mrb[0].mxu0
        %2453 = vmatprep.mubr.f32.mxu0 0.0
        %2454 = vmatmul.mubr.f32.gmra.mrb[0].mxu0 %v1717
        %v2455 = vpop.f32.mrb[0].mxu0
        %v2456 = vadd.f32 0.0, %v2455
        %v2457 = vpop.f32.mrb[0].mxu0
        %2458 = vmatprep.mubr.f32.mxu0 0.0
        %2459 = vmatmul.mubr.f32.gmra.mrb[0].mxu0 %v1720
        %v2460 = vpop.f32.mrb[0].mxu0
        %v2461 = vadd.f32 0.0, %v2460
        %v2462 = vpop.f32.mrb[0].mxu0
        %2463 = vmatprep.mubr.f32.mxu0 0.0
        %2464 = vmatmul.mubr.f32.gmra.mrb[0].mxu0 %v1723
        %v2465 = vpop.f32.mrb[0].mxu0
        %v2466 = vadd.f32 0.0, %v2465
        %v2467 = vpop.f32.mrb[0].mxu0
        %2468 = vmatprep.mubr.f32.mxu0 0.0
        %2469 = vmatmul.mubr.f32.gmra.mrb[0].mxu0 %v2249
        %v2470 = vpop.f32.mrb[0].mxu0
        %v2471 = vadd.f32 0.0, %v2470
        %v2472 = vpop.f32.mrb[0].mxu0
        %2473 = vmatprep.mubr.f32.mxu0 0.0
        %2474 = vmatmul.mubr.f32.gmra.mrb[0].mxu0 %v2252
        %v2475 = vpop.f32.mrb[0].mxu0
        %v2476 = vadd.f32 0.0, %v2475
        %v2477 = vpop.f32.mrb[0].mxu0
        %2478 = vdwg.mxu0
        // Predicated region
        $region41: #{tpu_custom_call.1} parent=35 // pred_check
          %p2479 = pneg %p211
        $region42: #{tpu_custom_call.1} parent=35 // pred_check_branch
          %2481 = sbr.rel (%p2479) target = $region44
        $region43: #{tpu_custom_call.1} parent=35 // pred_region
          %v2482 = vsel %vm766, %v998, 0.0
          %v2483 = vsel %vm766, %v1003, 0.0
          %v2484 = vadd.f32 %v2482, %v2483
          %v2485 = vsel %vm766, %v1008, 0.0
          %v2486 = vadd.f32 %v2484, %v2485
          %v2487 = vsel %vm766, %v1013, 0.0
          %v2488 = vadd.f32 %v2486, %v2487
          %v2489 = vsel %vm766, %v1018, 0.0
          %v2490 = vadd.f32 %v2488, %v2489
          %v2491 = vsel %vm766, %v1023, 0.0
          %v2492 = vadd.f32 %v2490, %v2491
          %v2493 = vsel %vm766, %v1028, 0.0
          %v2494 = vadd.f32 %v2492, %v2493
          %v2495 = vsel %vm766, %v1033, 0.0
          %v2496 = vadd.f32 %v2494, %v2495
          %v2497 = vsel %vm766, %v1038, 0.0
          %v2498 = vadd.f32 %v2496, %v2497
          %v2499 = vsel %vm766, %v1043, 0.0
          %v2500 = vadd.f32 %v2498, %v2499
          %v2501 = vsel %vm766, %v1048, 0.0
          %v2502 = vadd.f32 %v2500, %v2501
          %v2503 = vsel %vm766, %v1053, 0.0
          %v2504 = vadd.f32 %v2502, %v2503
          %v2505 = vsel %vm766, %v1058, 0.0
          %v2506 = vadd.f32 %v2504, %v2505
          %v2507 = vsel %vm766, %v1063, 0.0
          %v2508 = vadd.f32 %v2506, %v2507
          %v2509 = vsel %vm766, %v1068, 0.0
          %v2510 = vadd.f32 %v2508, %v2509
          %v2511 = vsel %vm766, %v1073, 0.0
          %v2512 = vadd.f32 %v2510, %v2511
          %v2513 = vsel %vm766, %v1078, 0.0
          %v2514 = vadd.f32 %v2512, %v2513
          %v2515 = vsel %vm766, %v1083, 0.0
          %v2516 = vadd.f32 %v2514, %v2515
          %v2517 = vsel %vm766, %v1088, 0.0
          %v2518 = vadd.f32 %v2516, %v2517
          %v2519 = vsel %vm766, %v1093, 0.0
          %v2520 = vadd.f32 %v2518, %v2519
          %v2521 = vsel %vm766, %v1098, 0.0
          %v2522 = vadd.f32 %v2520, %v2521
          %v2523 = vsel %vm766, %v1103, 0.0
          %v2524 = vadd.f32 %v2522, %v2523
          %v2525 = vsel %vm766, %v1108, 0.0
          %v2526 = vadd.f32 %v2524, %v2525
          %v2527 = vsel %vm766, %v1113, 0.0
          %v2528 = vadd.f32 %v2526, %v2527
          %v2529 = vsel %vm766, %v1118, 0.0
          %v2530 = vadd.f32 %v2528, %v2529
          %v2531 = vsel %vm766, %v1123, 0.0
          %v2532 = vadd.f32 %v2530, %v2531
          %v2533 = vsel %vm766, %v1128, 0.0
          %v2534 = vadd.f32 %v2532, %v2533
          %v2535 = vsel %vm766, %v1133, 0.0
          %v2536 = vadd.f32 %v2534, %v2535
          %v2537 = vsel %vm766, %v1138, 0.0
          %v2538 = vadd.f32 %v2536, %v2537
          %v2539 = vsel %vm766, %v1143, 0.0
          %v2540 = vadd.f32 %v2538, %v2539
          %v2541 = vsel %vm766, %v1148, 0.0
          %v2542 = vadd.f32 %v2540, %v2541
          %v2543 = vsel %vm766, %v1153, 0.0
          %v2544 = vadd.f32 %v2542, %v2543
          %v2545 = vrot.slane %v2544, 4
          %v2546 = vadd.f32 %v2544, %v2545
          %v2547 = vrot.slane %v2546, 2
          %v2548 = vadd.f32 %v2546, %v2547
          %v2549 = vrot.slane %v2548, 1
          %v2550 = vadd.f32 %v2548, %v2549
          %v2551 = vadd.f32 %v2550, 0.0
          %v2552 = vmul.f32 %v998, %v998
          %v2553 = vmul.f32 %v1003, %v1003
          %v2554 = vmul.f32 %v1008, %v1008
          %v2555 = vmul.f32 %v1013, %v1013
          %v2556 = vmul.f32 %v1018, %v1018
          %v2557 = vmul.f32 %v1023, %v1023
          %v2558 = vmul.f32 %v1028, %v1028
          %v2559 = vmul.f32 %v1033, %v1033
          %v2560 = vmul.f32 %v1038, %v1038
          %v2561 = vmul.f32 %v1043, %v1043
          %v2562 = vmul.f32 %v1048, %v1048
          %v2563 = vmul.f32 %v1053, %v1053
          %v2564 = vmul.f32 %v1058, %v1058
          %v2565 = vmul.f32 %v1063, %v1063
          %v2566 = vmul.f32 %v1068, %v1068
          %v2567 = vmul.f32 %v1073, %v1073
          %v2568 = vmul.f32 %v1078, %v1078
          %v2569 = vmul.f32 %v1083, %v1083
          %v2570 = vmul.f32 %v1088, %v1088
          %v2571 = vmul.f32 %v1093, %v1093
          %v2572 = vmul.f32 %v1098, %v1098
          %v2573 = vmul.f32 %v1103, %v1103
          %v2574 = vmul.f32 %v1108, %v1108
          %v2575 = vmul.f32 %v1113, %v1113
          %v2576 = vmul.f32 %v1118, %v1118
          %v2577 = vmul.f32 %v1123, %v1123
          %v2578 = vmul.f32 %v1128, %v1128
          %v2579 = vmul.f32 %v1133, %v1133
          %v2580 = vmul.f32 %v1138, %v1138
          %v2581 = vmul.f32 %v1143, %v1143
          %v2582 = vmul.f32 %v1148, %v1148
          %v2583 = vmul.f32 %v1153, %v1153
          %v2584 = vsel %vm766, %v2552, 0.0
          %v2585 = vsel %vm766, %v2553, 0.0
          %v2586 = vadd.f32 %v2584, %v2585
          %v2587 = vsel %vm766, %v2554, 0.0
          %v2588 = vadd.f32 %v2586, %v2587
          %v2589 = vsel %vm766, %v2555, 0.0
          %v2590 = vadd.f32 %v2588, %v2589
          %v2591 = vsel %vm766, %v2556, 0.0
          %v2592 = vadd.f32 %v2590, %v2591
          %v2593 = vsel %vm766, %v2557, 0.0
          %v2594 = vadd.f32 %v2592, %v2593
          %v2595 = vsel %vm766, %v2558, 0.0
          %v2596 = vadd.f32 %v2594, %v2595
          %v2597 = vsel %vm766, %v2559, 0.0
          %v2598 = vadd.f32 %v2596, %v2597
          %v2599 = vsel %vm766, %v2560, 0.0
          %v2600 = vadd.f32 %v2598, %v2599
          %v2601 = vsel %vm766, %v2561, 0.0
          %v2602 = vadd.f32 %v2600, %v2601
          %v2603 = vsel %vm766, %v2562, 0.0
          %v2604 = vadd.f32 %v2602, %v2603
          %v2605 = vsel %vm766, %v2563, 0.0
          %v2606 = vadd.f32 %v2604, %v2605
          %v2607 = vsel %vm766, %v2564, 0.0
          %v2608 = vadd.f32 %v2606, %v2607
          %v2609 = vsel %vm766, %v2565, 0.0
          %v2610 = vadd.f32 %v2608, %v2609
          %v2611 = vsel %vm766, %v2566, 0.0
          %v2612 = vadd.f32 %v2610, %v2611
          %v2613 = vsel %vm766, %v2567, 0.0
          %v2614 = vadd.f32 %v2612, %v2613
          %v2615 = vsel %vm766, %v2568, 0.0
          %v2616 = vadd.f32 %v2614, %v2615
          %v2617 = vsel %vm766, %v2569, 0.0
          %v2618 = vadd.f32 %v2616, %v2617
          %v2619 = vsel %vm766, %v2570, 0.0
          %v2620 = vadd.f32 %v2618, %v2619
          %v2621 = vsel %vm766, %v2571, 0.0
          %v2622 = vadd.f32 %v2620, %v2621
          %v2623 = vsel %vm766, %v2572, 0.0
          %v2624 = vadd.f32 %v2622, %v2623
          %v2625 = vsel %vm766, %v2573, 0.0
          %v2626 = vadd.f32 %v2624, %v2625
          %v2627 = vsel %vm766, %v2574, 0.0
          %v2628 = vadd.f32 %v2626, %v2627
          %v2629 = vsel %vm766, %v2575, 0.0
          %v2630 = vadd.f32 %v2628, %v2629
          %v2631 = vsel %vm766, %v2576, 0.0
          %v2632 = vadd.f32 %v2630, %v2631
          %v2633 = vsel %vm766, %v2577, 0.0
          %v2634 = vadd.f32 %v2632, %v2633
          %v2635 = vsel %vm766, %v2578, 0.0
          %v2636 = vadd.f32 %v2634, %v2635
          %v2637 = vsel %vm766, %v2579, 0.0
          %v2638 = vadd.f32 %v2636, %v2637
          %v2639 = vsel %vm766, %v2580, 0.0
          %v2640 = vadd.f32 %v2638, %v2639
          %v2641 = vsel %vm766, %v2581, 0.0
          %v2642 = vadd.f32 %v2640, %v2641
          %v2643 = vsel %vm766, %v2582, 0.0
          %v2644 = vadd.f32 %v2642, %v2643
          %v2645 = vsel %vm766, %v2583, 0.0
          %v2646 = vadd.f32 %v2644, %v2645
          %v2647 = vrot.slane %v2646, 4
          %v2648 = vadd.f32 %v2646, %v2647
          %v2649 = vrot.slane %v2648, 2
          %v2650 = vadd.f32 %v2648, %v2649
          %v2651 = vrot.slane %v2650, 1
          %v2652 = vadd.f32 %v2650, %v2651
          %v2653 = vadd.f32 %v2652, 0.0
          %v2654 = vsel %vm766, %v1792, 0.0
          %v2655 = vsel %vm766, %v1797, 0.0
          %v2656 = vadd.f32 %v2654, %v2655
          %v2657 = vsel %vm766, %v1802, 0.0
          %v2658 = vadd.f32 %v2656, %v2657
          %v2659 = vsel %vm766, %v1807, 0.0
          %v2660 = vadd.f32 %v2658, %v2659
          %v2661 = vsel %vm766, %v1812, 0.0
          %v2662 = vadd.f32 %v2660, %v2661
          %v2663 = vsel %vm766, %v1817, 0.0
          %v2664 = vadd.f32 %v2662, %v2663
          %v2665 = vsel %vm766, %v1822, 0.0
          %v2666 = vadd.f32 %v2664, %v2665
          %v2667 = vsel %vm766, %v1827, 0.0
          %v2668 = vadd.f32 %v2666, %v2667
          %v2669 = vsel %vm766, %v1832, 0.0
          %v2670 = vadd.f32 %v2668, %v2669
          %v2671 = vsel %vm766, %v1837, 0.0
          %v2672 = vadd.f32 %v2670, %v2671
          %v2673 = vsel %vm766, %v1842, 0.0
          %v2674 = vadd.f32 %v2672, %v2673
          %v2675 = vsel %vm766, %v1847, 0.0
          %v2676 = vadd.f32 %v2674, %v2675
          %v2677 = vsel %vm766, %v1852, 0.0
          %v2678 = vadd.f32 %v2676, %v2677
          %v2679 = vsel %vm766, %v1857, 0.0
          %v2680 = vadd.f32 %v2678, %v2679
          %v2681 = vsel %vm766, %v1862, 0.0
          %v2682 = vadd.f32 %v2680, %v2681
          %v2683 = vsel %vm766, %v1867, 0.0
          %v2684 = vadd.f32 %v2682, %v2683
          %v2685 = vsel %vm766, %v1872, 0.0
          %v2686 = vadd.f32 %v2684, %v2685
          %v2687 = vsel %vm766, %v1877, 0.0
          %v2688 = vadd.f32 %v2686, %v2687
          %v2689 = vsel %vm766, %v1882, 0.0
          %v2690 = vadd.f32 %v2688, %v2689
          %v2691 = vsel %vm766, %v1887, 0.0
          %v2692 = vadd.f32 %v2690, %v2691
          %v2693 = vsel %vm766, %v1892, 0.0
          %v2694 = vadd.f32 %v2692, %v2693
          %v2695 = vsel %vm766, %v1897, 0.0
          %v2696 = vadd.f32 %v2694, %v2695
          %v2697 = vsel %vm766, %v1902, 0.0
          %v2698 = vadd.f32 %v2696, %v2697
          %v2699 = vsel %vm766, %v1907, 0.0
          %v2700 = vadd.f32 %v2698, %v2699
          %v2701 = vsel %vm766, %v1912, 0.0
          %v2702 = vadd.f32 %v2700, %v2701
          %v2703 = vsel %vm766, %v1917, 0.0
          %v2704 = vadd.f32 %v2702, %v2703
          %v2705 = vsel %vm766, %v1922, 0.0
          %v2706 = vadd.f32 %v2704, %v2705
          %v2707 = vsel %vm766, %v1927, 0.0
          %v2708 = vadd.f32 %v2706, %v2707
          %v2709 = vsel %vm766, %v1932, 0.0
          %v2710 = vadd.f32 %v2708, %v2709
          %v2711 = vsel %vm766, %v1937, 0.0
          %v2712 = vadd.f32 %v2710, %v2711
          %v2713 = vsel %vm766, %v1942, 0.0
          %v2714 = vadd.f32 %v2712, %v2713
          %v2715 = vsel %vm766, %v1947, 0.0
          %v2716 = vadd.f32 %v2714, %v2715
          %v2717 = vrot.slane %v2716, 4
          %v2718 = vadd.f32 %v2716, %v2717
          %v2719 = vrot.slane %v2718, 2
          %v2720 = vadd.f32 %v2718, %v2719
          %v2721 = vrot.slane %v2720, 1
          %v2722 = vadd.f32 %v2720, %v2721
          %v2723 = vadd.f32 %v2551, %v2722
          %v2724 = vmul.f32 %v1792, %v1792
          %v2725 = vmul.f32 %v1797, %v1797
          %v2726 = vmul.f32 %v1802, %v1802
          %v2727 = vmul.f32 %v1807, %v1807
          %v2728 = vmul.f32 %v1812, %v1812
          %v2729 = vmul.f32 %v1817, %v1817
          %v2730 = vmul.f32 %v1822, %v1822
          %v2731 = vmul.f32 %v1827, %v1827
          %v2732 = vmul.f32 %v1832, %v1832
          %v2733 = vmul.f32 %v1837, %v1837
          %v2734 = vmul.f32 %v1842, %v1842
          %v2735 = vmul.f32 %v1847, %v1847
          %v2736 = vmul.f32 %v1852, %v1852
          %v2737 = vmul.f32 %v1857, %v1857
          %v2738 = vmul.f32 %v1862, %v1862
          %v2739 = vmul.f32 %v1867, %v1867
          %v2740 = vmul.f32 %v1872, %v1872
          %v2741 = vmul.f32 %v1877, %v1877
          %v2742 = vmul.f32 %v1882, %v1882
          %v2743 = vmul.f32 %v1887, %v1887
          %v2744 = vmul.f32 %v1892, %v1892
          %v2745 = vmul.f32 %v1897, %v1897
          %v2746 = vmul.f32 %v1902, %v1902
          %v2747 = vmul.f32 %v1907, %v1907
          %v2748 = vmul.f32 %v1912, %v1912
          %v2749 = vmul.f32 %v1917, %v1917
          %v2750 = vmul.f32 %v1922, %v1922
          %v2751 = vmul.f32 %v1927, %v1927
          %v2752 = vmul.f32 %v1932, %v1932
          %v2753 = vmul.f32 %v1937, %v1937
          %v2754 = vmul.f32 %v1942, %v1942
          %v2755 = vmul.f32 %v1947, %v1947
          %v2756 = vsel %vm766, %v2724, 0.0
          %v2757 = vsel %vm766, %v2725, 0.0
          %v2758 = vadd.f32 %v2756, %v2757
          %v2759 = vsel %vm766, %v2726, 0.0
          %v2760 = vadd.f32 %v2758, %v2759
          %v2761 = vsel %vm766, %v2727, 0.0
          %v2762 = vadd.f32 %v2760, %v2761
          %v2763 = vsel %vm766, %v2728, 0.0
          %v2764 = vadd.f32 %v2762, %v2763
          %v2765 = vsel %vm766, %v2729, 0.0
          %v2766 = vadd.f32 %v2764, %v2765
          %v2767 = vsel %vm766, %v2730, 0.0
          %v2768 = vadd.f32 %v2766, %v2767
          %v2769 = vsel %vm766, %v2731, 0.0
          %v2770 = vadd.f32 %v2768, %v2769
          %v2771 = vsel %vm766, %v2732, 0.0
          %v2772 = vadd.f32 %v2770, %v2771
          %v2773 = vsel %vm766, %v2733, 0.0
          %v2774 = vadd.f32 %v2772, %v2773
          %v2775 = vsel %vm766, %v2734, 0.0
          %v2776 = vadd.f32 %v2774, %v2775
          %v2777 = vsel %vm766, %v2735, 0.0
          %v2778 = vadd.f32 %v2776, %v2777
          %v2779 = vsel %vm766, %v2736, 0.0
          %v2780 = vadd.f32 %v2778, %v2779
          %v2781 = vsel %vm766, %v2737, 0.0
          %v2782 = vadd.f32 %v2780, %v2781
          %v2783 = vsel %vm766, %v2738, 0.0
          %v2784 = vadd.f32 %v2782, %v2783
          %v2785 = vsel %vm766, %v2739, 0.0
          %v2786 = vadd.f32 %v2784, %v2785
          %v2787 = vsel %vm766, %v2740, 0.0
          %v2788 = vadd.f32 %v2786, %v2787
          %v2789 = vsel %vm766, %v2741, 0.0
          %v2790 = vadd.f32 %v2788, %v2789
          %v2791 = vsel %vm766, %v2742, 0.0
          %v2792 = vadd.f32 %v2790, %v2791
          %v2793 = vsel %vm766, %v2743, 0.0
          %v2794 = vadd.f32 %v2792, %v2793
          %v2795 = vsel %vm766, %v2744, 0.0
          %v2796 = vadd.f32 %v2794, %v2795
          %v2797 = vsel %vm766, %v2745, 0.0
          %v2798 = vadd.f32 %v2796, %v2797
          %v2799 = vsel %vm766, %v2746, 0.0
          %v2800 = vadd.f32 %v2798, %v2799
          %v2801 = vsel %vm766, %v2747, 0.0
          %v2802 = vadd.f32 %v2800, %v2801
          %v2803 = vsel %vm766, %v2748, 0.0
          %v2804 = vadd.f32 %v2802, %v2803
          %v2805 = vsel %vm766, %v2749, 0.0
          %v2806 = vadd.f32 %v2804, %v2805
          %v2807 = vsel %vm766, %v2750, 0.0
          %v2808 = vadd.f32 %v2806, %v2807
          %v2809 = vsel %vm766, %v2751, 0.0
          %v2810 = vadd.f32 %v2808, %v2809
          %v2811 = vsel %vm766, %v2752, 0.0
          %v2812 = vadd.f32 %v2810, %v2811
          %v2813 = vsel %vm766, %v2753, 0.0
          %v2814 = vadd.f32 %v2812, %v2813
          %v2815 = vsel %vm766, %v2754, 0.0
          %v2816 = vadd.f32 %v2814, %v2815
          %v2817 = vsel %vm766, %v2755, 0.0
          %v2818 = vadd.f32 %v2816, %v2817
          %v2819 = vrot.slane %v2818, 4
          %v2820 = vadd.f32 %v2818, %v2819
          %v2821 = vrot.slane %v2820, 2
          %v2822 = vadd.f32 %v2820, %v2821
          %v2823 = vrot.slane %v2822, 1
          %v2824 = vadd.f32 %v2822, %v2823
          %v2825 = vadd.f32 %v2653, %v2824
          %v2826 = vsel %vm766, %v2058, 0.0
          %v2827 = vsel %vm766, %v2063, 0.0
          %v2828 = vadd.f32 %v2826, %v2827
          %v2829 = vsel %vm766, %v2068, 0.0
          %v2830 = vadd.f32 %v2828, %v2829
          %v2831 = vsel %vm766, %v2073, 0.0
          %v2832 = vadd.f32 %v2830, %v2831
          %v2833 = vsel %vm766, %v2078, 0.0
          %v2834 = vadd.f32 %v2832, %v2833
          %v2835 = vsel %vm766, %v2083, 0.0
          %v2836 = vadd.f32 %v2834, %v2835
          %v2837 = vsel %vm766, %v2088, 0.0
          %v2838 = vadd.f32 %v2836, %v2837
          %v2839 = vsel %vm766, %v2093, 0.0
          %v2840 = vadd.f32 %v2838, %v2839
          %v2841 = vsel %vm766, %v2098, 0.0
          %v2842 = vadd.f32 %v2840, %v2841
          %v2843 = vsel %vm766, %v2103, 0.0
          %v2844 = vadd.f32 %v2842, %v2843
          %v2845 = vsel %vm766, %v2108, 0.0
          %v2846 = vadd.f32 %v2844, %v2845
          %v2847 = vsel %vm766, %v2113, 0.0
          %v2848 = vadd.f32 %v2846, %v2847
          %v2849 = vsel %vm766, %v2118, 0.0
          %v2850 = vadd.f32 %v2848, %v2849
          %v2851 = vsel %vm766, %v2123, 0.0
          %v2852 = vadd.f32 %v2850, %v2851
          %v2853 = vsel %vm766, %v2128, 0.0
          %v2854 = vadd.f32 %v2852, %v2853
          %v2855 = vsel %vm766, %v2133, 0.0
          %v2856 = vadd.f32 %v2854, %v2855
          %v2857 = vsel %vm766, %v2138, 0.0
          %v2858 = vadd.f32 %v2856, %v2857
          %v2859 = vsel %vm766, %v2143, 0.0
          %v2860 = vadd.f32 %v2858, %v2859
          %v2861 = vsel %vm766, %v2148, 0.0
          %v2862 = vadd.f32 %v2860, %v2861
          %v2863 = vsel %vm766, %v2153, 0.0
          %v2864 = vadd.f32 %v2862, %v2863
          %v2865 = vsel %vm766, %v2158, 0.0
          %v2866 = vadd.f32 %v2864, %v2865
          %v2867 = vsel %vm766, %v2163, 0.0
          %v2868 = vadd.f32 %v2866, %v2867
          %v2869 = vsel %vm766, %v2168, 0.0
          %v2870 = vadd.f32 %v2868, %v2869
          %v2871 = vsel %vm766, %v2173, 0.0
          %v2872 = vadd.f32 %v2870, %v2871
          %v2873 = vsel %vm766, %v2178, 0.0
          %v2874 = vadd.f32 %v2872, %v2873
          %v2875 = vsel %vm766, %v2183, 0.0
          %v2876 = vadd.f32 %v2874, %v2875
          %v2877 = vsel %vm766, %v2188, 0.0
          %v2878 = vadd.f32 %v2876, %v2877
          %v2879 = vsel %vm766, %v2193, 0.0
          %v2880 = vadd.f32 %v2878, %v2879
          %v2881 = vsel %vm766, %v2198, 0.0
          %v2882 = vadd.f32 %v2880, %v2881
          %v2883 = vsel %vm766, %v2203, 0.0
          %v2884 = vadd.f32 %v2882, %v2883
          %v2885 = vsel %vm766, %v2208, 0.0
          %v2886 = vadd.f32 %v2884, %v2885
          %v2887 = vsel %vm766, %v2213, 0.0
          %v2888 = vadd.f32 %v2886, %v2887
          %v2889 = vrot.slane %v2888, 4
          %v2890 = vadd.f32 %v2888, %v2889
          %v2891 = vrot.slane %v2890, 2
          %v2892 = vadd.f32 %v2890, %v2891
          %v2893 = vrot.slane %v2892, 1
          %v2894 = vadd.f32 %v2892, %v2893
          %v2895 = vadd.f32 %v2723, %v2894
          %v2896 = vmul.f32 %v2058, %v2058
          %v2897 = vmul.f32 %v2063, %v2063
          %v2898 = vmul.f32 %v2068, %v2068
          %v2899 = vmul.f32 %v2073, %v2073
          %v2900 = vmul.f32 %v2078, %v2078
          %v2901 = vmul.f32 %v2083, %v2083
          %v2902 = vmul.f32 %v2088, %v2088
          %v2903 = vmul.f32 %v2093, %v2093
          %v2904 = vmul.f32 %v2098, %v2098
          %v2905 = vmul.f32 %v2103, %v2103
          %v2906 = vmul.f32 %v2108, %v2108
          %v2907 = vmul.f32 %v2113, %v2113
          %v2908 = vmul.f32 %v2118, %v2118
          %v2909 = vmul.f32 %v2123, %v2123
          %v2910 = vmul.f32 %v2128, %v2128
          %v2911 = vmul.f32 %v2133, %v2133
          %v2912 = vmul.f32 %v2138, %v2138
          %v2913 = vmul.f32 %v2143, %v2143
          %v2914 = vmul.f32 %v2148, %v2148
          %v2915 = vmul.f32 %v2153, %v2153
          %v2916 = vmul.f32 %v2158, %v2158
          %v2917 = vmul.f32 %v2163, %v2163
          %v2918 = vmul.f32 %v2168, %v2168
          %v2919 = vmul.f32 %v2173, %v2173
          %v2920 = vmul.f32 %v2178, %v2178
          %v2921 = vmul.f32 %v2183, %v2183
          %v2922 = vmul.f32 %v2188, %v2188
          %v2923 = vmul.f32 %v2193, %v2193
          %v2924 = vmul.f32 %v2198, %v2198
          %v2925 = vmul.f32 %v2203, %v2203
          %v2926 = vmul.f32 %v2208, %v2208
          %v2927 = vmul.f32 %v2213, %v2213
          %v2928 = vsel %vm766, %v2896, 0.0
          %v2929 = vsel %vm766, %v2897, 0.0
          %v2930 = vadd.f32 %v2928, %v2929
          %v2931 = vsel %vm766, %v2898, 0.0
          %v2932 = vadd.f32 %v2930, %v2931
          %v2933 = vsel %vm766, %v2899, 0.0
          %v2934 = vadd.f32 %v2932, %v2933
          %v2935 = vsel %vm766, %v2900, 0.0
          %v2936 = vadd.f32 %v2934, %v2935
          %v2937 = vsel %vm766, %v2901, 0.0
          %v2938 = vadd.f32 %v2936, %v2937
          %v2939 = vsel %vm766, %v2902, 0.0
          %v2940 = vadd.f32 %v2938, %v2939
          %v2941 = vsel %vm766, %v2903, 0.0
          %v2942 = vadd.f32 %v2940, %v2941
          %v2943 = vsel %vm766, %v2904, 0.0
          %v2944 = vadd.f32 %v2942, %v2943
          %v2945 = vsel %vm766, %v2905, 0.0
          %v2946 = vadd.f32 %v2944, %v2945
          %v2947 = vsel %vm766, %v2906, 0.0
          %v2948 = vadd.f32 %v2946, %v2947
          %v2949 = vsel %vm766, %v2907, 0.0
          %v2950 = vadd.f32 %v2948, %v2949
          %v2951 = vsel %vm766, %v2908, 0.0
          %v2952 = vadd.f32 %v2950, %v2951
          %v2953 = vsel %vm766, %v2909, 0.0
          %v2954 = vadd.f32 %v2952, %v2953
          %v2955 = vsel %vm766, %v2910, 0.0
          %v2956 = vadd.f32 %v2954, %v2955
          %v2957 = vsel %vm766, %v2911, 0.0
          %v2958 = vadd.f32 %v2956, %v2957
          %v2959 = vsel %vm766, %v2912, 0.0
          %v2960 = vadd.f32 %v2958, %v2959
          %v2961 = vsel %vm766, %v2913, 0.0
          %v2962 = vadd.f32 %v2960, %v2961
          %v2963 = vsel %vm766, %v2914, 0.0
          %v2964 = vadd.f32 %v2962, %v2963
          %v2965 = vsel %vm766, %v2915, 0.0
          %v2966 = vadd.f32 %v2964, %v2965
          %v2967 = vsel %vm766, %v2916, 0.0
          %v2968 = vadd.f32 %v2966, %v2967
          %v2969 = vsel %vm766, %v2917, 0.0
          %v2970 = vadd.f32 %v2968, %v2969
          %v2971 = vsel %vm766, %v2918, 0.0
          %v2972 = vadd.f32 %v2970, %v2971
          %v2973 = vsel %vm766, %v2919, 0.0
          %v2974 = vadd.f32 %v2972, %v2973
          %v2975 = vsel %vm766, %v2920, 0.0
          %v2976 = vadd.f32 %v2974, %v2975
          %v2977 = vsel %vm766, %v2921, 0.0
          %v2978 = vadd.f32 %v2976, %v2977
          %v2979 = vsel %vm766, %v2922, 0.0
          %v2980 = vadd.f32 %v2978, %v2979
          %v2981 = vsel %vm766, %v2923, 0.0
          %v2982 = vadd.f32 %v2980, %v2981
          %v2983 = vsel %vm766, %v2924, 0.0
          %v2984 = vadd.f32 %v2982, %v2983
          %v2985 = vsel %vm766, %v2925, 0.0
          %v2986 = vadd.f32 %v2984, %v2985
          %v2987 = vsel %vm766, %v2926, 0.0
          %v2988 = vadd.f32 %v2986, %v2987
          %v2989 = vsel %vm766, %v2927, 0.0
          %v2990 = vadd.f32 %v2988, %v2989
          %v2991 = vrot.slane %v2990, 4
          %v2992 = vadd.f32 %v2990, %v2991
          %v2993 = vrot.slane %v2992, 2
          %v2994 = vadd.f32 %v2992, %v2993
          %v2995 = vrot.slane %v2994, 1
          %v2996 = vadd.f32 %v2994, %v2995
          %v2997 = vadd.f32 %v2825, %v2996
          %v2998 = vsel %vm766, %v2321, 0.0
          %v2999 = vsel %vm766, %v2326, 0.0
          %v3000 = vadd.f32 %v2998, %v2999
          %v3001 = vsel %vm766, %v2331, 0.0
          %v3002 = vadd.f32 %v3000, %v3001
          %v3003 = vsel %vm766, %v2336, 0.0
          %v3004 = vadd.f32 %v3002, %v3003
          %v3005 = vsel %vm766, %v2341, 0.0
          %v3006 = vadd.f32 %v3004, %v3005
          %v3007 = vsel %vm766, %v2346, 0.0
          %v3008 = vadd.f32 %v3006, %v3007
          %v3009 = vsel %vm766, %v2351, 0.0
          %v3010 = vadd.f32 %v3008, %v3009
          %v3011 = vsel %vm766, %v2356, 0.0
          %v3012 = vadd.f32 %v3010, %v3011
          %v3013 = vsel %vm766, %v2361, 0.0
          %v3014 = vadd.f32 %v3012, %v3013
          %v3015 = vsel %vm766, %v2366, 0.0
          %v3016 = vadd.f32 %v3014, %v3015
          %v3017 = vsel %vm766, %v2371, 0.0
          %v3018 = vadd.f32 %v3016, %v3017
          %v3019 = vsel %vm766, %v2376, 0.0
          %v3020 = vadd.f32 %v3018, %v3019
          %v3021 = vsel %vm766, %v2381, 0.0
          %v3022 = vadd.f32 %v3020, %v3021
          %v3023 = vsel %vm766, %v2386, 0.0
          %v3024 = vadd.f32 %v3022, %v3023
          %v3025 = vsel %vm766, %v2391, 0.0
          %v3026 = vadd.f32 %v3024, %v3025
          %v3027 = vsel %vm766, %v2396, 0.0
          %v3028 = vadd.f32 %v3026, %v3027
          %v3029 = vsel %vm766, %v2401, 0.0
          %v3030 = vadd.f32 %v3028, %v3029
          %v3031 = vsel %vm766, %v2406, 0.0
          %v3032 = vadd.f32 %v3030, %v3031
          %v3033 = vsel %vm766, %v2411, 0.0
          %v3034 = vadd.f32 %v3032, %v3033
          %v3035 = vsel %vm766, %v2416, 0.0
          %v3036 = vadd.f32 %v3034, %v3035
          %v3037 = vsel %vm766, %v2421, 0.0
          %v3038 = vadd.f32 %v3036, %v3037
          %v3039 = vsel %vm766, %v2426, 0.0
          %v3040 = vadd.f32 %v3038, %v3039
          %v3041 = vsel %vm766, %v2431, 0.0
          %v3042 = vadd.f32 %v3040, %v3041
          %v3043 = vsel %vm766, %v2436, 0.0
          %v3044 = vadd.f32 %v3042, %v3043
          %v3045 = vsel %vm766, %v2441, 0.0
          %v3046 = vadd.f32 %v3044, %v3045
          %v3047 = vsel %vm766, %v2446, 0.0
          %v3048 = vadd.f32 %v3046, %v3047
          %v3049 = vsel %vm766, %v2451, 0.0
          %v3050 = vadd.f32 %v3048, %v3049
          %v3051 = vsel %vm766, %v2456, 0.0
          %v3052 = vadd.f32 %v3050, %v3051
          %v3053 = vsel %vm766, %v2461, 0.0
          %v3054 = vadd.f32 %v3052, %v3053
          %v3055 = vsel %vm766, %v2466, 0.0
          %v3056 = vadd.f32 %v3054, %v3055
          %v3057 = vsel %vm766, %v2471, 0.0
          %v3058 = vadd.f32 %v3056, %v3057
          %v3059 = vsel %vm766, %v2476, 0.0
          %v3060 = vadd.f32 %v3058, %v3059
          %v3061 = vrot.slane %v3060, 4
          %v3062 = vadd.f32 %v3060, %v3061
          %v3063 = vrot.slane %v3062, 2
          %v3064 = vadd.f32 %v3062, %v3063
          %v3065 = vrot.slane %v3064, 1
          %v3066 = vadd.f32 %v3064, %v3065
          %v3067 = vadd.f32 %v2895, %v3066
          %v3068 = vmul.f32 %v2321, %v2321
          %v3069 = vmul.f32 %v2326, %v2326
          %v3070 = vmul.f32 %v2331, %v2331
          %v3071 = vmul.f32 %v2336, %v2336
          %v3072 = vmul.f32 %v2341, %v2341
          %v3073 = vmul.f32 %v2346, %v2346
          %v3074 = vmul.f32 %v2351, %v2351
          %v3075 = vmul.f32 %v2356, %v2356
          %v3076 = vmul.f32 %v2361, %v2361
          %v3077 = vmul.f32 %v2366, %v2366
          %v3078 = vmul.f32 %v2371, %v2371
          %v3079 = vmul.f32 %v2376, %v2376
          %v3080 = vmul.f32 %v2381, %v2381
          %v3081 = vmul.f32 %v2386, %v2386
          %v3082 = vmul.f32 %v2391, %v2391
          %v3083 = vmul.f32 %v2396, %v2396
          %v3084 = vmul.f32 %v2401, %v2401
          %v3085 = vmul.f32 %v2406, %v2406
          %v3086 = vmul.f32 %v2411, %v2411
          %v3087 = vmul.f32 %v2416, %v2416
          %v3088 = vmul.f32 %v2421, %v2421
          %v3089 = vmul.f32 %v2426, %v2426
          %v3090 = vmul.f32 %v2431, %v2431
          %v3091 = vmul.f32 %v2436, %v2436
          %v3092 = vmul.f32 %v2441, %v2441
          %v3093 = vmul.f32 %v2446, %v2446
          %v3094 = vmul.f32 %v2451, %v2451
          %v3095 = vmul.f32 %v2456, %v2456
          %v3096 = vmul.f32 %v2461, %v2461
          %v3097 = vmul.f32 %v2466, %v2466
          %v3098 = vmul.f32 %v2471, %v2471
          %v3099 = vmul.f32 %v2476, %v2476
          %v3100 = vsel %vm766, %v3068, 0.0
          %v3101 = vsel %vm766, %v3069, 0.0
          %v3102 = vadd.f32 %v3100, %v3101
          %v3103 = vsel %vm766, %v3070, 0.0
          %v3104 = vadd.f32 %v3102, %v3103
          %v3105 = vsel %vm766, %v3071, 0.0
          %v3106 = vadd.f32 %v3104, %v3105
          %v3107 = vsel %vm766, %v3072, 0.0
          %v3108 = vadd.f32 %v3106, %v3107
          %v3109 = vsel %vm766, %v3073, 0.0
          %v3110 = vadd.f32 %v3108, %v3109
          %v3111 = vsel %vm766, %v3074, 0.0
          %v3112 = vadd.f32 %v3110, %v3111
          %v3113 = vsel %vm766, %v3075, 0.0
          %v3114 = vadd.f32 %v3112, %v3113
          %v3115 = vsel %vm766, %v3076, 0.0
          %v3116 = vadd.f32 %v3114, %v3115
          %v3117 = vsel %vm766, %v3077, 0.0
          %v3118 = vadd.f32 %v3116, %v3117
          %v3119 = vsel %vm766, %v3078, 0.0
          %v3120 = vadd.f32 %v3118, %v3119
          %v3121 = vsel %vm766, %v3079, 0.0
          %v3122 = vadd.f32 %v3120, %v3121
          %v3123 = vsel %vm766, %v3080, 0.0
          %v3124 = vadd.f32 %v3122, %v3123
          %v3125 = vsel %vm766, %v3081, 0.0
          %v3126 = vadd.f32 %v3124, %v3125
          %v3127 = vsel %vm766, %v3082, 0.0
          %v3128 = vadd.f32 %v3126, %v3127
          %v3129 = vsel %vm766, %v3083, 0.0
          %v3130 = vadd.f32 %v3128, %v3129
          %v3131 = vsel %vm766, %v3084, 0.0
          %v3132 = vadd.f32 %v3130, %v3131
          %v3133 = vsel %vm766, %v3085, 0.0
          %v3134 = vadd.f32 %v3132, %v3133
          %v3135 = vsel %vm766, %v3086, 0.0
          %v3136 = vadd.f32 %v3134, %v3135
          %v3137 = vsel %vm766, %v3087, 0.0
          %v3138 = vadd.f32 %v3136, %v3137
          %v3139 = vsel %vm766, %v3088, 0.0
          %v3140 = vadd.f32 %v3138, %v3139
          %v3141 = vsel %vm766, %v3089, 0.0
          %v3142 = vadd.f32 %v3140, %v3141
          %v3143 = vsel %vm766, %v3090, 0.0
          %v3144 = vadd.f32 %v3142, %v3143
          %v3145 = vsel %vm766, %v3091, 0.0
          %v3146 = vadd.f32 %v3144, %v3145
          %v3147 = vsel %vm766, %v3092, 0.0
          %v3148 = vadd.f32 %v3146, %v3147
          %v3149 = vsel %vm766, %v3093, 0.0
          %v3150 = vadd.f32 %v3148, %v3149
          %v3151 = vsel %vm766, %v3094, 0.0
          %v3152 = vadd.f32 %v3150, %v3151
          %v3153 = vsel %vm766, %v3095, 0.0
          %v3154 = vadd.f32 %v3152, %v3153
          %v3155 = vsel %vm766, %v3096, 0.0
          %v3156 = vadd.f32 %v3154, %v3155
          %v3157 = vsel %vm766, %v3097, 0.0
          %v3158 = vadd.f32 %v3156, %v3157
          %v3159 = vsel %vm766, %v3098, 0.0
          %v3160 = vadd.f32 %v3158, %v3159
          %v3161 = vsel %vm766, %v3099, 0.0
          %v3162 = vadd.f32 %v3160, %v3161
          %v3163 = vrot.slane %v3162, 4
          %v3164 = vadd.f32 %v3162, %v3163
          %v3165 = vrot.slane %v3164, 2
          %v3166 = vadd.f32 %v3164, %v3165
          %v3167 = vrot.slane %v3166, 1
          %v3168 = vadd.f32 %v3166, %v3167
          %v3169 = vadd.f32 %v2997, %v3168
          %v3170 = vld [vmem:[#allocation2] sm:$0x1]
          %v3171 = vadd.f32 %v3170, %v3067
          %vm3172 = vcmask 57344
          %3173 = vst.msk [vmem:[#allocation2] sm:$0x1] %vm3172, %v3171
          %v3174 = vld [vmem:[#allocation3] sm:$0x1]
          %v3175 = vadd.f32 %v3174, %v3169
          %3176 = vst.msk [vmem:[#allocation3] sm:$0x1] %vm3172, %v3175
        $region44: #{tpu_custom_call.1} parent=35 // pred_fallthru
          _
        %p3177 = scmp.eq.s32.totalorder %s22, 1
        // Predicated region
        $region45: #{tpu_custom_call.1} parent=35 // pred_check
          %p3178 = pneg %p3177
        $region46: #{tpu_custom_call.1} parent=35 // pred_check_branch
          %3180 = sbr.rel (%p3178) target = $region48
        $region47: #{tpu_custom_call.1} parent=35 // pred_region
          %v3181 = vld [vmem:[#allocation2] sm:$0x1]
          %v3182 = vmul.f32 %v3181, 0.00048828125
          %v3183 = vld [vmem:[#allocation3] sm:$0x1]
          %v3184 = vmul.f32 %v3183, 0.00048828125
          %v3185 = vmul.f32 %v3182, %v3182
          %v3186 = vsub.f32 %v3184, %v3185
          %v3187 = vadd.f32 %v3186, 1e-05
          %v3188 = vrsqrt.pop %v3187
          %v3189 = vld [vmem:[%s2] sm:$0x1]
          %v3190 = vmul.f32 %v3189, %v3188
          %v3191 = vld [vmem:[%s3] sm:$0x1]
          %v3192 = vmul.f32 %v3182, %v3190
          %v3193 = vsub.f32 %v3191, %v3192
          %v3195 = vlaneseq
          %v3196 = vshrl.u32 %v3195, 7
          %v3197 = vsub.s32 0, %v3196
          %v3198 = vrot.slane %v3190, %v3197
          %v3200 = vmul.f32 %v998, %v3198
          %v3201 = vmul.f32 %v1003, %v3198
          %v3202 = vmul.f32 %v1008, %v3198
          %v3203 = vmul.f32 %v1013, %v3198
          %v3204 = vmul.f32 %v1018, %v3198
          %v3205 = vmul.f32 %v1023, %v3198
          %v3206 = vmul.f32 %v1028, %v3198
          %v3207 = vmul.f32 %v1033, %v3198
          %v3208 = vmul.f32 %v1038, %v3198
          %v3209 = vmul.f32 %v1043, %v3198
          %v3210 = vmul.f32 %v1048, %v3198
          %v3211 = vmul.f32 %v1053, %v3198
          %v3212 = vmul.f32 %v1058, %v3198
          %v3213 = vmul.f32 %v1063, %v3198
          %v3214 = vmul.f32 %v1068, %v3198
          %v3215 = vmul.f32 %v1073, %v3198
          %v3216 = vmul.f32 %v1078, %v3198
          %v3217 = vmul.f32 %v1083, %v3198
          %v3218 = vmul.f32 %v1088, %v3198
          %v3219 = vmul.f32 %v1093, %v3198
          %v3220 = vmul.f32 %v1098, %v3198
          %v3221 = vmul.f32 %v1103, %v3198
          %v3222 = vmul.f32 %v1108, %v3198
          %v3223 = vmul.f32 %v1113, %v3198
          %v3224 = vmul.f32 %v1118, %v3198
          %v3225 = vmul.f32 %v1123, %v3198
          %v3226 = vmul.f32 %v1128, %v3198
          %v3227 = vmul.f32 %v1133, %v3198
          %v3228 = vmul.f32 %v1138, %v3198
          %v3229 = vmul.f32 %v1143, %v3198
          %v3230 = vmul.f32 %v1148, %v3198
          %v3231 = vmul.f32 %v1153, %v3198
          %v3233 = vlaneseq
          %v3234 = vshrl.u32 %v3233, 7
          %v3235 = vsub.s32 0, %v3234
          %v3236 = vrot.slane %v3193, %v3235
          %v3238 = vadd.f32 %v3200, %v3236
          %v3239 = vadd.f32 %v3201, %v3236
          %v3240 = vadd.f32 %v3202, %v3236
          %v3241 = vadd.f32 %v3203, %v3236
          %v3242 = vadd.f32 %v3204, %v3236
          %v3243 = vadd.f32 %v3205, %v3236
          %v3244 = vadd.f32 %v3206, %v3236
          %v3245 = vadd.f32 %v3207, %v3236
          %v3246 = vadd.f32 %v3208, %v3236
          %v3247 = vadd.f32 %v3209, %v3236
          %v3248 = vadd.f32 %v3210, %v3236
          %v3249 = vadd.f32 %v3211, %v3236
          %v3250 = vadd.f32 %v3212, %v3236
          %v3251 = vadd.f32 %v3213, %v3236
          %v3252 = vadd.f32 %v3214, %v3236
          %v3253 = vadd.f32 %v3215, %v3236
          %v3254 = vadd.f32 %v3216, %v3236
          %v3255 = vadd.f32 %v3217, %v3236
          %v3256 = vadd.f32 %v3218, %v3236
          %v3257 = vadd.f32 %v3219, %v3236
          %v3258 = vadd.f32 %v3220, %v3236
          %v3259 = vadd.f32 %v3221, %v3236
          %v3260 = vadd.f32 %v3222, %v3236
          %v3261 = vadd.f32 %v3223, %v3236
          %v3262 = vadd.f32 %v3224, %v3236
          %v3263 = vadd.f32 %v3225, %v3236
          %v3264 = vadd.f32 %v3226, %v3236
          %v3265 = vadd.f32 %v3227, %v3236
          %v3266 = vadd.f32 %v3228, %v3236
          %v3267 = vadd.f32 %v3229, %v3236
          %v3268 = vadd.f32 %v3230, %v3236
          %v3269 = vadd.f32 %v3231, %v3236
          %v3270 = vmax.f32 %v3238, 0.0
          %v3271 = vmax.f32 %v3239, 0.0
          %v3272 = vmax.f32 %v3240, 0.0
          %v3273 = vmax.f32 %v3241, 0.0
          %v3274 = vmax.f32 %v3242, 0.0
          %v3275 = vmax.f32 %v3243, 0.0
          %v3276 = vmax.f32 %v3244, 0.0
          %v3277 = vmax.f32 %v3245, 0.0
          %v3278 = vmax.f32 %v3246, 0.0
          %v3279 = vmax.f32 %v3247, 0.0
          %v3280 = vmax.f32 %v3248, 0.0
          %v3281 = vmax.f32 %v3249, 0.0
          %v3282 = vmax.f32 %v3250, 0.0
          %v3283 = vmax.f32 %v3251, 0.0
          %v3284 = vmax.f32 %v3252, 0.0
          %v3285 = vmax.f32 %v3253, 0.0
          %v3286 = vmax.f32 %v3254, 0.0
          %v3287 = vmax.f32 %v3255, 0.0
          %v3288 = vmax.f32 %v3256, 0.0
          %v3289 = vmax.f32 %v3257, 0.0
          %v3290 = vmax.f32 %v3258, 0.0
          %v3291 = vmax.f32 %v3259, 0.0
          %v3292 = vmax.f32 %v3260, 0.0
          %v3293 = vmax.f32 %v3261, 0.0
          %v3294 = vmax.f32 %v3262, 0.0
          %v3295 = vmax.f32 %v3263, 0.0
          %v3296 = vmax.f32 %v3264, 0.0
          %v3297 = vmax.f32 %v3265, 0.0
          %v3298 = vmax.f32 %v3266, 0.0
          %v3299 = vmax.f32 %v3267, 0.0
          %v3300 = vmax.f32 %v3268, 0.0
          %v3301 = vmax.f32 %v3269, 0.0
          %v3302 = vlaneseq
          %v3303 = vshrl.u32 %v3302, 7
          %v3304 = vlaneseq
          %v3305 = vand.u32 %v3304, 127
          %vm3306 = vcmp.eq.s32.totalorder %v3303, %v3305
          %v3307 = vsel %vm3306, 1, 0
          %v3308 = vcvt.s32.f32 %v3307
          %v3310 = vsel %vm766, %v3308, 0
          %v3313 = vsel %vm766, %v3270, 0
          %v3316 = vsel %vm766, %v3271, 0
          %v3319 = vsel %vm766, %v3272, 0
          %v3322 = vsel %vm766, %v3273, 0
          %v3325 = vsel %vm766, %v3274, 0
          %v3328 = vsel %vm766, %v3275, 0
          %v3331 = vsel %vm766, %v3276, 0
          %v3334 = vsel %vm766, %v3277, 0
          %v3337 = vsel %vm766, %v3278, 0
          %v3340 = vsel %vm766, %v3279, 0
          %v3343 = vsel %vm766, %v3280, 0
          %v3346 = vsel %vm766, %v3281, 0
          %v3349 = vsel %vm766, %v3282, 0
          %v3352 = vsel %vm766, %v3283, 0
          %v3355 = vsel %vm766, %v3284, 0
          %v3358 = vsel %vm766, %v3285, 0
          %v3361 = vsel %vm766, %v3286, 0
          %v3364 = vsel %vm766, %v3287, 0
          %v3367 = vsel %vm766, %v3288, 0
          %v3370 = vsel %vm766, %v3289, 0
          %v3373 = vsel %vm766, %v3290, 0
          %v3376 = vsel %vm766, %v3291, 0
          %v3379 = vsel %vm766, %v3292, 0
          %v3382 = vsel %vm766, %v3293, 0
          %v3385 = vsel %vm766, %v3294, 0
          %v3388 = vsel %vm766, %v3295, 0
          %v3391 = vsel %vm766, %v3296, 0
          %v3394 = vsel %vm766, %v3297, 0
          %v3397 = vsel %vm766, %v3298, 0
          %v3400 = vsel %vm766, %v3299, 0
          %v3403 = vsel %vm766, %v3300, 0
          %v3406 = vsel %vm766, %v3301, 0
          %3408 = vmatprep.subr.mxu0 0.0
          %3409 = vmatpush1.xpose.msra.mxu0 %v3313
          %3410 = vmatprep.subr.mxu0 0.0
          %3411 = vmatpush1.xpose.msra.mxu0 %v3316
          %3412 = vmatprep.subr.mxu0 0.0
          %3413 = vmatpush1.xpose.msra.mxu0 %v3319
          %3414 = vmatprep.subr.mxu0 0.0
          %3415 = vmatpush1.xpose.msra.mxu0 %v3322
          %3416 = vmatprep.subr.mxu0 0.0
          %3417 = vmatpush1.xpose.msra.mxu0 %v3325
          %3418 = vmatprep.subr.mxu0 0.0
          %3419 = vmatpush1.xpose.msra.mxu0 %v3328
          %3420 = vmatprep.subr.mxu0 0.0
          %3421 = vmatpush1.xpose.msra.mxu0 %v3331
          %3422 = vmatprep.subr.mxu0 0.0
          %3423 = vmatpush1.xpose.msra.mxu0 %v3334
          %3424 = vmatprep.subr.mxu0 0.0
          %3425 = vmatpush1.xpose.msra.mxu0 %v3337
          %3426 = vmatprep.subr.mxu0 0.0
          %3427 = vmatpush1.xpose.msra.mxu0 %v3340
          %3428 = vmatprep.subr.mxu0 0.0
          %3429 = vmatpush1.xpose.msra.mxu0 %v3343
          %3430 = vmatprep.subr.mxu0 0.0
          %3431 = vmatpush1.xpose.msra.mxu0 %v3346
          %3432 = vmatprep.subr.mxu0 0.0
          %3433 = vmatpush1.xpose.msra.mxu0 %v3349
          %3434 = vmatprep.subr.mxu0 0.0
          %3435 = vmatpush1.xpose.msra.mxu0 %v3352
          %3436 = vmatprep.subr.mxu0 0.0
          %3437 = vmatpush1.xpose.msra.mxu0 %v3355
          %3438 = vmatprep.subr.mxu0 0.0
          %3439 = vmatpush1.xpose.msra.mxu0 %v3358
          %3440 = vmatprep.subr.mxu0 0.0
          %3441 = vmatpush1.xpose.msra.mxu0 %v3361
          %3442 = vmatprep.subr.mxu0 0.0
          %3443 = vmatpush1.xpose.msra.mxu0 %v3364
          %3444 = vmatprep.subr.mxu0 0.0
          %3445 = vmatpush1.xpose.msra.mxu0 %v3367
          %3446 = vmatprep.subr.mxu0 0.0
          %3447 = vmatpush1.xpose.msra.mxu0 %v3370
          %3448 = vmatprep.subr.mxu0 0.0
          %3449 = vmatpush1.xpose.msra.mxu0 %v3373
          %3450 = vmatprep.subr.mxu0 0.0
          %3451 = vmatpush1.xpose.msra.mxu0 %v3376
          %3452 = vmatprep.subr.mxu0 0.0
          %3453 = vmatpush1.xpose.msra.mxu0 %v3379
          %3454 = vmatprep.subr.mxu0 0.0
          %3455 = vmatpush1.xpose.msra.mxu0 %v3382
          %3456 = vmatprep.subr.mxu0 0.0
          %3457 = vmatpush1.xpose.msra.mxu0 %v3385
          %3458 = vmatprep.subr.mxu0 0.0
          %3459 = vmatpush1.xpose.msra.mxu0 %v3388
          %3460 = vmatprep.subr.mxu0 0.0
          %3461 = vmatpush1.xpose.msra.mxu0 %v3391
          %3462 = vmatprep.subr.mxu0 0.0
          %3463 = vmatpush1.xpose.msra.mxu0 %v3394
          %3464 = vmatprep.subr.mxu0 0.0
          %3465 = vmatpush1.xpose.msra.mxu0 %v3397
          %3466 = vmatprep.subr.mxu0 0.0
          %3467 = vmatpush1.xpose.msra.mxu0 %v3400
          %3468 = vmatprep.subr.mxu0 0.0
          %3469 = vmatpush1.xpose.msra.mxu0 %v3403
          %3470 = vmatprep.subr.mxu0 0.0
          %3471 = vmatpush1.xpose.msra.mxu0 %v3406
          %3472 = vmatprep.mubr.f32.mxu0 0.0
          %3473 = vmatmul.mubr.f32.gmra.mrb[0].mxu0 %v3310
          %v3474 = vpop.f32.mrb[0].mxu0
          %v3475 = vadd.f32 0.0, %v3474
          %v3476 = vpop.f32.mrb[0].mxu0
          %v3477 = vadd.f32 0.0, %v3476
          %3478 = vdwg.mxu0
          %v3479 = vmul.f32 %v1792, %v3198
          %v3480 = vmul.f32 %v1797, %v3198
          %v3481 = vmul.f32 %v1802, %v3198
          %v3482 = vmul.f32 %v1807, %v3198
          %v3483 = vmul.f32 %v1812, %v3198
          %v3484 = vmul.f32 %v1817, %v3198
          %v3485 = vmul.f32 %v1822, %v3198
          %v3486 = vmul.f32 %v1827, %v3198
          %v3487 = vmul.f32 %v1832, %v3198
          %v3488 = vmul.f32 %v1837, %v3198
          %v3489 = vmul.f32 %v1842, %v3198
          %v3490 = vmul.f32 %v1847, %v3198
          %v3491 = vmul.f32 %v1852, %v3198
          %v3492 = vmul.f32 %v1857, %v3198
          %v3493 = vmul.f32 %v1862, %v3198
          %v3494 = vmul.f32 %v1867, %v3198
          %v3495 = vmul.f32 %v1872, %v3198
          %v3496 = vmul.f32 %v1877, %v3198
          %v3497 = vmul.f32 %v1882, %v3198
          %v3498 = vmul.f32 %v1887, %v3198
          %v3499 = vmul.f32 %v1892, %v3198
          %v3500 = vmul.f32 %v1897, %v3198
          %v3501 = vmul.f32 %v1902, %v3198
          %v3502 = vmul.f32 %v1907, %v3198
          %v3503 = vmul.f32 %v1912, %v3198
          %v3504 = vmul.f32 %v1917, %v3198
          %v3505 = vmul.f32 %v1922, %v3198
          %v3506 = vmul.f32 %v1927, %v3198
          %v3507 = vmul.f32 %v1932, %v3198
          %v3508 = vmul.f32 %v1937, %v3198
          %v3509 = vmul.f32 %v1942, %v3198
          %v3510 = vmul.f32 %v1947, %v3198
          %v3511 = vadd.f32 %v3479, %v3236
          %v3512 = vadd.f32 %v3480, %v3236
          %v3513 = vadd.f32 %v3481, %v3236
          %v3514 = vadd.f32 %v3482, %v3236
          %v3515 = vadd.f32 %v3483, %v3236
          %v3516 = vadd.f32 %v3484, %v3236
          %v3517 = vadd.f32 %v3485, %v3236
          %v3518 = vadd.f32 %v3486, %v3236
          %v3519 = vadd.f32 %v3487, %v3236
          %v3520 = vadd.f32 %v3488, %v3236
          %v3521 = vadd.f32 %v3489, %v3236
          %v3522 = vadd.f32 %v3490, %v3236
          %v3523 = vadd.f32 %v3491, %v3236
          %v3524 = vadd.f32 %v3492, %v3236
          %v3525 = vadd.f32 %v3493, %v3236
          %v3526 = vadd.f32 %v3494, %v3236
          %v3527 = vadd.f32 %v3495, %v3236
          %v3528 = vadd.f32 %v3496, %v3236
          %v3529 = vadd.f32 %v3497, %v3236
          %v3530 = vadd.f32 %v3498, %v3236
          %v3531 = vadd.f32 %v3499, %v3236
          %v3532 = vadd.f32 %v3500, %v3236
          %v3533 = vadd.f32 %v3501, %v3236
          %v3534 = vadd.f32 %v3502, %v3236
          %v3535 = vadd.f32 %v3503, %v3236
          %v3536 = vadd.f32 %v3504, %v3236
          %v3537 = vadd.f32 %v3505, %v3236
          %v3538 = vadd.f32 %v3506, %v3236
          %v3539 = vadd.f32 %v3507, %v3236
          %v3540 = vadd.f32 %v3508, %v3236
          %v3541 = vadd.f32 %v3509, %v3236
          %v3542 = vadd.f32 %v3510, %v3236
          %v3543 = vmax.f32 %v3511, 0.0
          %v3544 = vmax.f32 %v3512, 0.0
          %v3545 = vmax.f32 %v3513, 0.0
          %v3546 = vmax.f32 %v3514, 0.0
          %v3547 = vmax.f32 %v3515, 0.0
          %v3548 = vmax.f32 %v3516, 0.0
          %v3549 = vmax.f32 %v3517, 0.0
          %v3550 = vmax.f32 %v3518, 0.0
          %v3551 = vmax.f32 %v3519, 0.0
          %v3552 = vmax.f32 %v3520, 0.0
          %v3553 = vmax.f32 %v3521, 0.0
          %v3554 = vmax.f32 %v3522, 0.0
          %v3555 = vmax.f32 %v3523, 0.0
          %v3556 = vmax.f32 %v3524, 0.0
          %v3557 = vmax.f32 %v3525, 0.0
          %v3558 = vmax.f32 %v3526, 0.0
          %v3559 = vmax.f32 %v3527, 0.0
          %v3560 = vmax.f32 %v3528, 0.0
          %v3561 = vmax.f32 %v3529, 0.0
          %v3562 = vmax.f32 %v3530, 0.0
          %v3563 = vmax.f32 %v3531, 0.0
          %v3564 = vmax.f32 %v3532, 0.0
          %v3565 = vmax.f32 %v3533, 0.0
          %v3566 = vmax.f32 %v3534, 0.0
          %v3567 = vmax.f32 %v3535, 0.0
          %v3568 = vmax.f32 %v3536, 0.0
          %v3569 = vmax.f32 %v3537, 0.0
          %v3570 = vmax.f32 %v3538, 0.0
          %v3571 = vmax.f32 %v3539, 0.0
          %v3572 = vmax.f32 %v3540, 0.0
          %v3573 = vmax.f32 %v3541, 0.0
          %v3574 = vmax.f32 %v3542, 0.0
          %v3576 = vsel %vm766, %v3543, 0
          %v3579 = vsel %vm766, %v3544, 0
          %v3582 = vsel %vm766, %v3545, 0
          %v3585 = vsel %vm766, %v3546, 0
          %v3588 = vsel %vm766, %v3547, 0
          %v3591 = vsel %vm766, %v3548, 0
          %v3594 = vsel %vm766, %v3549, 0
          %v3597 = vsel %vm766, %v3550, 0
          %v3600 = vsel %vm766, %v3551, 0
          %v3603 = vsel %vm766, %v3552, 0
          %v3606 = vsel %vm766, %v3553, 0
          %v3609 = vsel %vm766, %v3554, 0
          %v3612 = vsel %vm766, %v3555, 0
          %v3615 = vsel %vm766, %v3556, 0
          %v3618 = vsel %vm766, %v3557, 0
          %v3621 = vsel %vm766, %v3558, 0
          %v3624 = vsel %vm766, %v3559, 0
          %v3627 = vsel %vm766, %v3560, 0
          %v3630 = vsel %vm766, %v3561, 0
          %v3633 = vsel %vm766, %v3562, 0
          %v3636 = vsel %vm766, %v3563, 0
          %v3639 = vsel %vm766, %v3564, 0
          %v3642 = vsel %vm766, %v3565, 0
          %v3645 = vsel %vm766, %v3566, 0
          %v3648 = vsel %vm766, %v3567, 0
          %v3651 = vsel %vm766, %v3568, 0
          %v3654 = vsel %vm766, %v3569, 0
          %v3657 = vsel %vm766, %v3570, 0
          %v3660 = vsel %vm766, %v3571, 0
          %v3663 = vsel %vm766, %v3572, 0
          %v3666 = vsel %vm766, %v3573, 0
          %v3669 = vsel %vm766, %v3574, 0
          %3671 = vmatprep.subr.mxu0 0.0
          %3672 = vmatpush1.xpose.msra.mxu0 %v3576
          %3673 = vmatprep.subr.mxu0 0.0
          %3674 = vmatpush1.xpose.msra.mxu0 %v3579
          %3675 = vmatprep.subr.mxu0 0.0
          %3676 = vmatpush1.xpose.msra.mxu0 %v3582
          %3677 = vmatprep.subr.mxu0 0.0
          %3678 = vmatpush1.xpose.msra.mxu0 %v3585
          %3679 = vmatprep.subr.mxu0 0.0
          %3680 = vmatpush1.xpose.msra.mxu0 %v3588
          %3681 = vmatprep.subr.mxu0 0.0
          %3682 = vmatpush1.xpose.msra.mxu0 %v3591
          %3683 = vmatprep.subr.mxu0 0.0
          %3684 = vmatpush1.xpose.msra.mxu0 %v3594
          %3685 = vmatprep.subr.mxu0 0.0
          %3686 = vmatpush1.xpose.msra.mxu0 %v3597
          %3687 = vmatprep.subr.mxu0 0.0
          %3688 = vmatpush1.xpose.msra.mxu0 %v3600
          %3689 = vmatprep.subr.mxu0 0.0
          %3690 = vmatpush1.xpose.msra.mxu0 %v3603
          %3691 = vmatprep.subr.mxu0 0.0
          %3692 = vmatpush1.xpose.msra.mxu0 %v3606
          %3693 = vmatprep.subr.mxu0 0.0
          %3694 = vmatpush1.xpose.msra.mxu0 %v3609
          %3695 = vmatprep.subr.mxu0 0.0
          %3696 = vmatpush1.xpose.msra.mxu0 %v3612
          %3697 = vmatprep.subr.mxu0 0.0
          %3698 = vmatpush1.xpose.msra.mxu0 %v3615
          %3699 = vmatprep.subr.mxu0 0.0
          %3700 = vmatpush1.xpose.msra.mxu0 %v3618
          %3701 = vmatprep.subr.mxu0 0.0
          %3702 = vmatpush1.xpose.msra.mxu0 %v3621
          %3703 = vmatprep.subr.mxu0 0.0
          %3704 = vmatpush1.xpose.msra.mxu0 %v3624
          %3705 = vmatprep.subr.mxu0 0.0
          %3706 = vmatpush1.xpose.msra.mxu0 %v3627
          %3707 = vmatprep.subr.mxu0 0.0
          %3708 = vmatpush1.xpose.msra.mxu0 %v3630
          %3709 = vmatprep.subr.mxu0 0.0
          %3710 = vmatpush1.xpose.msra.mxu0 %v3633
          %3711 = vmatprep.subr.mxu0 0.0
          %3712 = vmatpush1.xpose.msra.mxu0 %v3636
          %3713 = vmatprep.subr.mxu0 0.0
          %3714 = vmatpush1.xpose.msra.mxu0 %v3639
          %3715 = vmatprep.subr.mxu0 0.0
          %3716 = vmatpush1.xpose.msra.mxu0 %v3642
          %3717 = vmatprep.subr.mxu0 0.0
          %3718 = vmatpush1.xpose.msra.mxu0 %v3645
          %3719 = vmatprep.subr.mxu0 0.0
          %3720 = vmatpush1.xpose.msra.mxu0 %v3648
          %3721 = vmatprep.subr.mxu0 0.0
          %3722 = vmatpush1.xpose.msra.mxu0 %v3651
          %3723 = vmatprep.subr.mxu0 0.0
          %3724 = vmatpush1.xpose.msra.mxu0 %v3654
          %3725 = vmatprep.subr.mxu0 0.0
          %3726 = vmatpush1.xpose.msra.mxu0 %v3657
          %3727 = vmatprep.subr.mxu0 0.0
          %3728 = vmatpush1.xpose.msra.mxu0 %v3660
          %3729 = vmatprep.subr.mxu0 0.0
          %3730 = vmatpush1.xpose.msra.mxu0 %v3663
          %3731 = vmatprep.subr.mxu0 0.0
          %3732 = vmatpush1.xpose.msra.mxu0 %v3666
          %3733 = vmatprep.subr.mxu0 0.0
          %3734 = vmatpush1.xpose.msra.mxu0 %v3669
          %3735 = vmatprep.mubr.f32.mxu0 0.0
          %3736 = vmatmul.mubr.f32.gmra.mrb[0].mxu0 %v3310
          %v3737 = vpop.f32.mrb[0].mxu0
          %v3738 = vadd.f32 0.0, %v3737
          %v3739 = vpop.f32.mrb[0].mxu0
          %v3740 = vadd.f32 0.0, %v3739
          %3741 = vdwg.mxu0
          %v3742 = vmul.f32 %v2058, %v3198
          %v3743 = vmul.f32 %v2063, %v3198
          %v3744 = vmul.f32 %v2068, %v3198
          %v3745 = vmul.f32 %v2073, %v3198
          %v3746 = vmul.f32 %v2078, %v3198
          %v3747 = vmul.f32 %v2083, %v3198
          %v3748 = vmul.f32 %v2088, %v3198
          %v3749 = vmul.f32 %v2093, %v3198
          %v3750 = vmul.f32 %v2098, %v3198
          %v3751 = vmul.f32 %v2103, %v3198
          %v3752 = vmul.f32 %v2108, %v3198
          %v3753 = vmul.f32 %v2113, %v3198
          %v3754 = vmul.f32 %v2118, %v3198
          %v3755 = vmul.f32 %v2123, %v3198
          %v3756 = vmul.f32 %v2128, %v3198
          %v3757 = vmul.f32 %v2133, %v3198
          %v3758 = vmul.f32 %v2138, %v3198
          %v3759 = vmul.f32 %v2143, %v3198
          %v3760 = vmul.f32 %v2148, %v3198
          %v3761 = vmul.f32 %v2153, %v3198
          %v3762 = vmul.f32 %v2158, %v3198
          %v3763 = vmul.f32 %v2163, %v3198
          %v3764 = vmul.f32 %v2168, %v3198
          %v3765 = vmul.f32 %v2173, %v3198
          %v3766 = vmul.f32 %v2178, %v3198
          %v3767 = vmul.f32 %v2183, %v3198
          %v3768 = vmul.f32 %v2188, %v3198
          %v3769 = vmul.f32 %v2193, %v3198
          %v3770 = vmul.f32 %v2198, %v3198
          %v3771 = vmul.f32 %v2203, %v3198
          %v3772 = vmul.f32 %v2208, %v3198
          %v3773 = vmul.f32 %v2213, %v3198
          %v3774 = vadd.f32 %v3742, %v3236
          %v3775 = vadd.f32 %v3743, %v3236
          %v3776 = vadd.f32 %v3744, %v3236
          %v3777 = vadd.f32 %v3745, %v3236
          %v3778 = vadd.f32 %v3746, %v3236
          %v3779 = vadd.f32 %v3747, %v3236
          %v3780 = vadd.f32 %v3748, %v3236
          %v3781 = vadd.f32 %v3749, %v3236
          %v3782 = vadd.f32 %v3750, %v3236
          %v3783 = vadd.f32 %v3751, %v3236
          %v3784 = vadd.f32 %v3752, %v3236
          %v3785 = vadd.f32 %v3753, %v3236
          %v3786 = vadd.f32 %v3754, %v3236
          %v3787 = vadd.f32 %v3755, %v3236
          %v3788 = vadd.f32 %v3756, %v3236
          %v3789 = vadd.f32 %v3757, %v3236
          %v3790 = vadd.f32 %v3758, %v3236
          %v3791 = vadd.f32 %v3759, %v3236
          %v3792 = vadd.f32 %v3760, %v3236
          %v3793 = vadd.f32 %v3761, %v3236
          %v3794 = vadd.f32 %v3762, %v3236
          %v3795 = vadd.f32 %v3763, %v3236
          %v3796 = vadd.f32 %v3764, %v3236
          %v3797 = vadd.f32 %v3765, %v3236
          %v3798 = vadd.f32 %v3766, %v3236
          %v3799 = vadd.f32 %v3767, %v3236
          %v3800 = vadd.f32 %v3768, %v3236
          %v3801 = vadd.f32 %v3769, %v3236
          %v3802 = vadd.f32 %v3770, %v3236
          %v3803 = vadd.f32 %v3771, %v3236
          %v3804 = vadd.f32 %v3772, %v3236
          %v3805 = vadd.f32 %v3773, %v3236
          %v3806 = vmax.f32 %v3774, 0.0
          %v3807 = vmax.f32 %v3775, 0.0
          %v3808 = vmax.f32 %v3776, 0.0
          %v3809 = vmax.f32 %v3777, 0.0
          %v3810 = vmax.f32 %v3778, 0.0
          %v3811 = vmax.f32 %v3779, 0.0
          %v3812 = vmax.f32 %v3780, 0.0
          %v3813 = vmax.f32 %v3781, 0.0
          %v3814 = vmax.f32 %v3782, 0.0
          %v3815 = vmax.f32 %v3783, 0.0
          %v3816 = vmax.f32 %v3784, 0.0
          %v3817 = vmax.f32 %v3785, 0.0
          %v3818 = vmax.f32 %v3786, 0.0
          %v3819 = vmax.f32 %v3787, 0.0
          %v3820 = vmax.f32 %v3788, 0.0
          %v3821 = vmax.f32 %v3789, 0.0
          %v3822 = vmax.f32 %v3790, 0.0
          %v3823 = vmax.f32 %v3791, 0.0
          %v3824 = vmax.f32 %v3792, 0.0
          %v3825 = vmax.f32 %v3793, 0.0
          %v3826 = vmax.f32 %v3794, 0.0
          %v3827 = vmax.f32 %v3795, 0.0
          %v3828 = vmax.f32 %v3796, 0.0
          %v3829 = vmax.f32 %v3797, 0.0
          %v3830 = vmax.f32 %v3798, 0.0
          %v3831 = vmax.f32 %v3799, 0.0
          %v3832 = vmax.f32 %v3800, 0.0
          %v3833 = vmax.f32 %v3801, 0.0
          %v3834 = vmax.f32 %v3802, 0.0
          %v3835 = vmax.f32 %v3803, 0.0
          %v3836 = vmax.f32 %v3804, 0.0
          %v3837 = vmax.f32 %v3805, 0.0
          %v3839 = vsel %vm766, %v3806, 0
          %v3842 = vsel %vm766, %v3807, 0
          %v3845 = vsel %vm766, %v3808, 0
          %v3848 = vsel %vm766, %v3809, 0
          %v3851 = vsel %vm766, %v3810, 0
          %v3854 = vsel %vm766, %v3811, 0
          %v3857 = vsel %vm766, %v3812, 0
          %v3860 = vsel %vm766, %v3813, 0
          %v3863 = vsel %vm766, %v3814, 0
          %v3866 = vsel %vm766, %v3815, 0
          %v3869 = vsel %vm766, %v3816, 0
          %v3872 = vsel %vm766, %v3817, 0
          %v3875 = vsel %vm766, %v3818, 0
          %v3878 = vsel %vm766, %v3819, 0
          %v3881 = vsel %vm766, %v3820, 0
          %v3884 = vsel %vm766, %v3821, 0
          %v3887 = vsel %vm766, %v3822, 0
          %v3890 = vsel %vm766, %v3823, 0
          %v3893 = vsel %vm766, %v3824, 0
          %v3896 = vsel %vm766, %v3825, 0
          %v3899 = vsel %vm766, %v3826, 0
          %v3902 = vsel %vm766, %v3827, 0
          %v3905 = vsel %vm766, %v3828, 0
          %v3908 = vsel %vm766, %v3829, 0
          %v3911 = vsel %vm766, %v3830, 0
          %v3914 = vsel %vm766, %v3831, 0
          %v3917 = vsel %vm766, %v3832, 0
          %v3920 = vsel %vm766, %v3833, 0
          %v3923 = vsel %vm766, %v3834, 0
          %v3926 = vsel %vm766, %v3835, 0
          %v3929 = vsel %vm766, %v3836, 0
          %v3932 = vsel %vm766, %v3837, 0
          %3934 = vmatprep.subr.mxu0 0.0
          %3935 = vmatpush1.xpose.msra.mxu0 %v3839
          %3936 = vmatprep.subr.mxu0 0.0
          %3937 = vmatpush1.xpose.msra.mxu0 %v3842
          %3938 = vmatprep.subr.mxu0 0.0
          %3939 = vmatpush1.xpose.msra.mxu0 %v3845
          %3940 = vmatprep.subr.mxu0 0.0
          %3941 = vmatpush1.xpose.msra.mxu0 %v3848
          %3942 = vmatprep.subr.mxu0 0.0
          %3943 = vmatpush1.xpose.msra.mxu0 %v3851
          %3944 = vmatprep.subr.mxu0 0.0
          %3945 = vmatpush1.xpose.msra.mxu0 %v3854
          %3946 = vmatprep.subr.mxu0 0.0
          %3947 = vmatpush1.xpose.msra.mxu0 %v3857
          %3948 = vmatprep.subr.mxu0 0.0
          %3949 = vmatpush1.xpose.msra.mxu0 %v3860
          %3950 = vmatprep.subr.mxu0 0.0
          %3951 = vmatpush1.xpose.msra.mxu0 %v3863
          %3952 = vmatprep.subr.mxu0 0.0
          %3953 = vmatpush1.xpose.msra.mxu0 %v3866
          %3954 = vmatprep.subr.mxu0 0.0
          %3955 = vmatpush1.xpose.msra.mxu0 %v3869
          %3956 = vmatprep.subr.mxu0 0.0
          %3957 = vmatpush1.xpose.msra.mxu0 %v3872
          %3958 = vmatprep.subr.mxu0 0.0
          %3959 = vmatpush1.xpose.msra.mxu0 %v3875
          %3960 = vmatprep.subr.mxu0 0.0
          %3961 = vmatpush1.xpose.msra.mxu0 %v3878
          %3962 = vmatprep.subr.mxu0 0.0
          %3963 = vmatpush1.xpose.msra.mxu0 %v3881
          %3964 = vmatprep.subr.mxu0 0.0
          %3965 = vmatpush1.xpose.msra.mxu0 %v3884
          %3966 = vmatprep.subr.mxu0 0.0
          %3967 = vmatpush1.xpose.msra.mxu0 %v3887
          %3968 = vmatprep.subr.mxu0 0.0
          %3969 = vmatpush1.xpose.msra.mxu0 %v3890
          %3970 = vmatprep.subr.mxu0 0.0
          %3971 = vmatpush1.xpose.msra.mxu0 %v3893
          %3972 = vmatprep.subr.mxu0 0.0
          %3973 = vmatpush1.xpose.msra.mxu0 %v3896
          %3974 = vmatprep.subr.mxu0 0.0
          %3975 = vmatpush1.xpose.msra.mxu0 %v3899
          %3976 = vmatprep.subr.mxu0 0.0
          %3977 = vmatpush1.xpose.msra.mxu0 %v3902
          %3978 = vmatprep.subr.mxu0 0.0
          %3979 = vmatpush1.xpose.msra.mxu0 %v3905
          %3980 = vmatprep.subr.mxu0 0.0
          %3981 = vmatpush1.xpose.msra.mxu0 %v3908
          %3982 = vmatprep.subr.mxu0 0.0
          %3983 = vmatpush1.xpose.msra.mxu0 %v3911
          %3984 = vmatprep.subr.mxu0 0.0
          %3985 = vmatpush1.xpose.msra.mxu0 %v3914
          %3986 = vmatprep.subr.mxu0 0.0
          %3987 = vmatpush1.xpose.msra.mxu0 %v3917
          %3988 = vmatprep.subr.mxu0 0.0
          %3989 = vmatpush1.xpose.msra.mxu0 %v3920
          %3990 = vmatprep.subr.mxu0 0.0
          %3991 = vmatpush1.xpose.msra.mxu0 %v3923
          %3992 = vmatprep.subr.mxu0 0.0
          %3993 = vmatpush1.xpose.msra.mxu0 %v3926
          %3994 = vmatprep.subr.mxu0 0.0
          %3995 = vmatpush1.xpose.msra.mxu0 %v3929
          %3996 = vmatprep.subr.mxu0 0.0
          %3997 = vmatpush1.xpose.msra.mxu0 %v3932
          %3998 = vmatprep.mubr.f32.mxu0 0.0
          %3999 = vmatmul.mubr.f32.gmra.mrb[0].mxu0 %v3310
          %v4000 = vpop.f32.mrb[0].mxu0
          %v4001 = vadd.f32 0.0, %v4000
          %v4002 = vpop.f32.mrb[0].mxu0
          %v4003 = vadd.f32 0.0, %v4002
          %4004 = vdwg.mxu0
          %v4005 = vmul.f32 %v2321, %v3198
          %v4006 = vmul.f32 %v2326, %v3198
          %v4007 = vmul.f32 %v2331, %v3198
          %v4008 = vmul.f32 %v2336, %v3198
          %v4009 = vmul.f32 %v2341, %v3198
          %v4010 = vmul.f32 %v2346, %v3198
          %v4011 = vmul.f32 %v2351, %v3198
          %v4012 = vmul.f32 %v2356, %v3198
          %v4013 = vmul.f32 %v2361, %v3198
          %v4014 = vmul.f32 %v2366, %v3198
          %v4015 = vmul.f32 %v2371, %v3198
          %v4016 = vmul.f32 %v2376, %v3198
          %v4017 = vmul.f32 %v2381, %v3198
          %v4018 = vmul.f32 %v2386, %v3198
          %v4019 = vmul.f32 %v2391, %v3198
          %v4020 = vmul.f32 %v2396, %v3198
          %v4021 = vmul.f32 %v2401, %v3198
          %v4022 = vmul.f32 %v2406, %v3198
          %v4023 = vmul.f32 %v2411, %v3198
          %v4024 = vmul.f32 %v2416, %v3198
          %v4025 = vmul.f32 %v2421, %v3198
          %v4026 = vmul.f32 %v2426, %v3198
          %v4027 = vmul.f32 %v2431, %v3198
          %v4028 = vmul.f32 %v2436, %v3198
          %v4029 = vmul.f32 %v2441, %v3198
          %v4030 = vmul.f32 %v2446, %v3198
          %v4031 = vmul.f32 %v2451, %v3198
          %v4032 = vmul.f32 %v2456, %v3198
          %v4033 = vmul.f32 %v2461, %v3198
          %v4034 = vmul.f32 %v2466, %v3198
          %v4035 = vmul.f32 %v2471, %v3198
          %v4036 = vmul.f32 %v2476, %v3198
          %v4037 = vadd.f32 %v4005, %v3236
          %v4038 = vadd.f32 %v4006, %v3236
          %v4039 = vadd.f32 %v4007, %v3236
          %v4040 = vadd.f32 %v4008, %v3236
          %v4041 = vadd.f32 %v4009, %v3236
          %v4042 = vadd.f32 %v4010, %v3236
          %v4043 = vadd.f32 %v4011, %v3236
          %v4044 = vadd.f32 %v4012, %v3236
          %v4045 = vadd.f32 %v4013, %v3236
          %v4046 = vadd.f32 %v4014, %v3236
          %v4047 = vadd.f32 %v4015, %v3236
          %v4048 = vadd.f32 %v4016, %v3236
          %v4049 = vadd.f32 %v4017, %v3236
          %v4050 = vadd.f32 %v4018, %v3236
          %v4051 = vadd.f32 %v4019, %v3236
          %v4052 = vadd.f32 %v4020, %v3236
          %v4053 = vadd.f32 %v4021, %v3236
          %v4054 = vadd.f32 %v4022, %v3236
          %v4055 = vadd.f32 %v4023, %v3236
          %v4056 = vadd.f32 %v4024, %v3236
          %v4057 = vadd.f32 %v4025, %v3236
          %v4058 = vadd.f32 %v4026, %v3236
          %v4059 = vadd.f32 %v4027, %v3236
          %v4060 = vadd.f32 %v4028, %v3236
          %v4061 = vadd.f32 %v4029, %v3236
          %v4062 = vadd.f32 %v4030, %v3236
          %v4063 = vadd.f32 %v4031, %v3236
          %v4064 = vadd.f32 %v4032, %v3236
          %v4065 = vadd.f32 %v4033, %v3236
          %v4066 = vadd.f32 %v4034, %v3236
          %v4067 = vadd.f32 %v4035, %v3236
          %v4068 = vadd.f32 %v4036, %v3236
          %v4069 = vmax.f32 %v4037, 0.0
          %v4070 = vmax.f32 %v4038, 0.0
          %v4071 = vmax.f32 %v4039, 0.0
          %v4072 = vmax.f32 %v4040, 0.0
          %v4073 = vmax.f32 %v4041, 0.0
          %v4074 = vmax.f32 %v4042, 0.0
          %v4075 = vmax.f32 %v4043, 0.0
          %v4076 = vmax.f32 %v4044, 0.0
          %v4077 = vmax.f32 %v4045, 0.0
          %v4078 = vmax.f32 %v4046, 0.0
          %v4079 = vmax.f32 %v4047, 0.0
          %v4080 = vmax.f32 %v4048, 0.0
          %v4081 = vmax.f32 %v4049, 0.0
          %v4082 = vmax.f32 %v4050, 0.0
          %v4083 = vmax.f32 %v4051, 0.0
          %v4084 = vmax.f32 %v4052, 0.0
          %v4085 = vmax.f32 %v4053, 0.0
          %v4086 = vmax.f32 %v4054, 0.0
          %v4087 = vmax.f32 %v4055, 0.0
          %v4088 = vmax.f32 %v4056, 0.0
          %v4089 = vmax.f32 %v4057, 0.0
          %v4090 = vmax.f32 %v4058, 0.0
          %v4091 = vmax.f32 %v4059, 0.0
          %v4092 = vmax.f32 %v4060, 0.0
          %v4093 = vmax.f32 %v4061, 0.0
          %v4094 = vmax.f32 %v4062, 0.0
          %v4095 = vmax.f32 %v4063, 0.0
          %v4096 = vmax.f32 %v4064, 0.0
          %v4097 = vmax.f32 %v4065, 0.0
          %v4098 = vmax.f32 %v4066, 0.0
          %v4099 = vmax.f32 %v4067, 0.0
          %v4100 = vmax.f32 %v4068, 0.0
          %v4102 = vsel %vm766, %v4069, 0
          %v4105 = vsel %vm766, %v4070, 0
          %v4108 = vsel %vm766, %v4071, 0
          %v4111 = vsel %vm766, %v4072, 0
          %v4114 = vsel %vm766, %v4073, 0
          %v4117 = vsel %vm766, %v4074, 0
          %v4120 = vsel %vm766, %v4075, 0
          %v4123 = vsel %vm766, %v4076, 0
          %v4126 = vsel %vm766, %v4077, 0
          %v4129 = vsel %vm766, %v4078, 0
          %v4132 = vsel %vm766, %v4079, 0
          %v4135 = vsel %vm766, %v4080, 0
          %v4138 = vsel %vm766, %v4081, 0
          %v4141 = vsel %vm766, %v4082, 0
          %v4144 = vsel %vm766, %v4083, 0
          %v4147 = vsel %vm766, %v4084, 0
          %v4150 = vsel %vm766, %v4085, 0
          %v4153 = vsel %vm766, %v4086, 0
          %v4156 = vsel %vm766, %v4087, 0
          %v4159 = vsel %vm766, %v4088, 0
          %v4162 = vsel %vm766, %v4089, 0
          %v4165 = vsel %vm766, %v4090, 0
          %v4168 = vsel %vm766, %v4091, 0
          %v4171 = vsel %vm766, %v4092, 0
          %v4174 = vsel %vm766, %v4093, 0
          %v4177 = vsel %vm766, %v4094, 0
          %v4180 = vsel %vm766, %v4095, 0
          %v4183 = vsel %vm766, %v4096, 0
          %v4186 = vsel %vm766, %v4097, 0
          %v4189 = vsel %vm766, %v4098, 0
          %v4192 = vsel %vm766, %v4099, 0
          %v4195 = vsel %vm766, %v4100, 0
          %4197 = vmatprep.subr.mxu0 0.0
          %4198 = vmatpush1.xpose.msra.mxu0 %v4102
          %4199 = vmatprep.subr.mxu0 0.0
          %4200 = vmatpush1.xpose.msra.mxu0 %v4105
          %4201 = vmatprep.subr.mxu0 0.0
          %4202 = vmatpush1.xpose.msra.mxu0 %v4108
          %4203 = vmatprep.subr.mxu0 0.0
          %4204 = vmatpush1.xpose.msra.mxu0 %v4111
          %4205 = vmatprep.subr.mxu0 0.0
          %4206 = vmatpush1.xpose.msra.mxu0 %v4114
          %4207 = vmatprep.subr.mxu0 0.0
          %4208 = vmatpush1.xpose.msra.mxu0 %v4117
          %4209 = vmatprep.subr.mxu0 0.0
          %4210 = vmatpush1.xpose.msra.mxu0 %v4120
          %4211 = vmatprep.subr.mxu0 0.0
          %4212 = vmatpush1.xpose.msra.mxu0 %v4123
          %4213 = vmatprep.subr.mxu0 0.0
          %4214 = vmatpush1.xpose.msra.mxu0 %v4126
          %4215 = vmatprep.subr.mxu0 0.0
          %4216 = vmatpush1.xpose.msra.mxu0 %v4129
          %4217 = vmatprep.subr.mxu0 0.0
          %4218 = vmatpush1.xpose.msra.mxu0 %v4132
          %4219 = vmatprep.subr.mxu0 0.0
          %4220 = vmatpush1.xpose.msra.mxu0 %v4135
          %4221 = vmatprep.subr.mxu0 0.0
          %4222 = vmatpush1.xpose.msra.mxu0 %v4138
          %4223 = vmatprep.subr.mxu0 0.0
          %4224 = vmatpush1.xpose.msra.mxu0 %v4141
          %4225 = vmatprep.subr.mxu0 0.0
          %4226 = vmatpush1.xpose.msra.mxu0 %v4144
          %4227 = vmatprep.subr.mxu0 0.0
          %4228 = vmatpush1.xpose.msra.mxu0 %v4147
          %4229 = vmatprep.subr.mxu0 0.0
          %4230 = vmatpush1.xpose.msra.mxu0 %v4150
          %4231 = vmatprep.subr.mxu0 0.0
          %4232 = vmatpush1.xpose.msra.mxu0 %v4153
          %4233 = vmatprep.subr.mxu0 0.0
          %4234 = vmatpush1.xpose.msra.mxu0 %v4156
          %4235 = vmatprep.subr.mxu0 0.0
          %4236 = vmatpush1.xpose.msra.mxu0 %v4159
          %4237 = vmatprep.subr.mxu0 0.0
          %4238 = vmatpush1.xpose.msra.mxu0 %v4162
          %4239 = vmatprep.subr.mxu0 0.0
          %4240 = vmatpush1.xpose.msra.mxu0 %v4165
          %4241 = vmatprep.subr.mxu0 0.0
          %4242 = vmatpush1.xpose.msra.mxu0 %v4168
          %4243 = vmatprep.subr.mxu0 0.0
          %4244 = vmatpush1.xpose.msra.mxu0 %v4171
          %4245 = vmatprep.subr.mxu0 0.0
          %4246 = vmatpush1.xpose.msra.mxu0 %v4174
          %4247 = vmatprep.subr.mxu0 0.0
          %4248 = vmatpush1.xpose.msra.mxu0 %v4177
          %4249 = vmatprep.subr.mxu0 0.0
          %4250 = vmatpush1.xpose.msra.mxu0 %v4180
          %4251 = vmatprep.subr.mxu0 0.0
          %4252 = vmatpush1.xpose.msra.mxu0 %v4183
          %4253 = vmatprep.subr.mxu0 0.0
          %4254 = vmatpush1.xpose.msra.mxu0 %v4186
          %4255 = vmatprep.subr.mxu0 0.0
          %4256 = vmatpush1.xpose.msra.mxu0 %v4189
          %4257 = vmatprep.subr.mxu0 0.0
          %4258 = vmatpush1.xpose.msra.mxu0 %v4192
          %4259 = vmatprep.subr.mxu0 0.0
          %4260 = vmatpush1.xpose.msra.mxu0 %v4195
          %4261 = vmatprep.mubr.f32.mxu0 0.0
          %4262 = vmatmul.mubr.f32.gmra.mrb[0].mxu0 %v3310
          %v4263 = vpop.f32.mrb[0].mxu0
          %v4264 = vadd.f32 0.0, %v4263
          %v4265 = vpop.f32.mrb[0].mxu0
          %v4266 = vadd.f32 0.0, %v4265
          %4267 = vdwg.mxu0
          %4268 = vst [vmem:[%s204] sm:$0xff] %v3475
          %4269 = vst [vmem:[%s204 + $0x8] sm:$0xff] %v3477
          %4270 = vst [vmem:[%s204 + $0x10] sm:$0xff] %v3738
          %4271 = vst [vmem:[%s204 + $0x18] sm:$0xff] %v3740
          %4272 = vst [vmem:[%s204 + $0x20] sm:$0xff] %v4001
          %4273 = vst [vmem:[%s204 + $0x28] sm:$0xff] %v4003
          %4274 = vst [vmem:[%s204 + $0x30] sm:$0xff] %v4264
          %4275 = vst [vmem:[%s204 + $0x38] sm:$0xff] %v4266
        $region48: #{tpu_custom_call.1} parent=35 // pred_fallthru
          _
        %s4276 = sand.u32 %s129, 1
        %s4277 = scalar_lea.sflag [#allocation5], %s4276
        %s4278 = sand.u32 %s129, 1
        %s4279 = smul.addr %s4278, 64
        %s4280 = scalar_lea.vmem [#allocation4], %s4279
        // Predicated region
        $region49: #{tpu_custom_call.1} parent=35 // pred_check
          %p4281 = pneg %p139
        $region50: #{tpu_custom_call.1} parent=35 // pred_check_branch
          %4283 = sbr.rel (%p4281) target = $region52
        $region51: #{tpu_custom_call.1} parent=35 // pred_region
          %s4284 = smul.u32 %s22, %s23
          %s4286 = ssub.s32 1024, 1024
          %4287 = vsyncadd %s4277, %s4286
          %s4288 = smul.addr %s4284, 8
          %s4289 = smul.addr %s4288, 128
          %s4290 = scalar_lea.hbm %s4, %s4289
          %s4291 = sshll.u32 %s4280, 4
          %s4292 = int_to_ptr.vmem [resolvable:$true] %s4291
          %4297 = dma.vmem_to_hbm [thread:$0]  %s4292, 1024, %s4290, %s4277, 256, 256, 16
        $region52: #{tpu_custom_call.1} parent=35 // pred_fallthru
          _
      $region36: #{tpu_custom_call.1} parent=5 // pred_fallthru
        _
      %p4298 = scmp.le.s32.totalorder 2, %s13
      // Predicated region
      $region53: #{tpu_custom_call.1} parent=5 // pred_check
        %p4299 = pneg %p4298
      $region54: #{tpu_custom_call.1} parent=5 // pred_check_branch
        %4301 = sbr.rel (%p4299) target = $region56
      $region55: #{tpu_custom_call.1} parent=5 // pred_region
        %s4302 = ssub.s32 %s13, 2
        // Predicated region
        $region57: #{tpu_custom_call.1} parent=55 // pred_check
          %p4303 = pneg %p145
        $region58: #{tpu_custom_call.1} parent=55 // pred_check_branch
          %4305 = sbr.rel (%p4303) target = $region60
        $region59: #{tpu_custom_call.1} parent=55 // pred_region
          %s4306 = sand.u32 %s130, 1
          %s4307 = scalar_lea.sflag [#allocation5], %s4306
          %s4308 = sand.u32 %s130, 1
          %s4309 = smul.addr %s4308, 64
          %s4310 = scalar_lea.vmem [#allocation4], %s4309
          %4311 = dma.done %s4307, 1024
        $region60: #{tpu_custom_call.1} parent=55 // pred_fallthru
          _
      $region56: #{tpu_custom_call.1} parent=5 // pred_fallthru
        _
    $region6: #{tpu_custom_call.1} parent=1 // loop_footer
      %s17 = sadd.s32 1, %s13
    $region7: #{tpu_custom_call.1} parent=1 // loop_footer_branch
      %12 = sbr.rel target = $region3
    $region8: #{tpu_custom_call.1} parent=1 // loop_exit
      _
    %4312 = vsyncpa [#allocation5], 1
    %s4313 = scalar_lea.sflag [#allocation5], 1
    %4314 = vsyncpa %s4313, 1

</llo_original>
